<compile_context>
chip_gen: v7x
topology: tpu7x:2x2x1
jax: 0.10.0
libtpu: 0.0.40
codegen_flags: <defaults>
</compile_context>

<pallas_src>
import functools

import numpy as np
import jax
import jax.numpy as jnp
from jax.experimental import pallas as pl
from jax.experimental.pallas import tpu as pltpu


N_PRE_NMS = 12000
N_POST_NMS = 2000
NMS_THRESH = 0.7


# --------------------------------------------------------------------------
# Anchor utilities / NMS (host-side NumPy, mirroring the reference code).
# --------------------------------------------------------------------------
def generate_anchor_base(side_length=16, ratios=(0.5, 1, 2), scales=(0.5, 1, 2),
                         strides=16):
    py = side_length / 2.0
    px = side_length / 2.0
    anchor_base = np.zeros((len(ratios) * len(scales), 4), dtype=np.float32)
    for i, r in enumerate(ratios):
        for j, s in enumerate(scales):
            h = side_length * s * np.sqrt(r)
            w = side_length * s * np.sqrt(1.0 / r)
            idx = i * len(scales) + j
            anchor_base[idx, 0] = py - h / 2.0
            anchor_base[idx, 1] = px - w / 2.0
            anchor_base[idx, 2] = py + h / 2.0
            anchor_base[idx, 3] = px + w / 2.0
    return anchor_base


def get_anchors(anchor_base, feat_stride, hh, ww):
    shift_y = np.arange(0, hh * feat_stride, feat_stride)
    shift_x = np.arange(0, ww * feat_stride, feat_stride)
    shift_x, shift_y = np.meshgrid(shift_x, shift_y)
    shift = np.stack((shift_y.ravel(), shift_x.ravel(),
                      shift_y.ravel(), shift_x.ravel()), axis=1)
    A = anchor_base.shape[0]
    K = shift.shape[0]
    anchor = (anchor_base.reshape((1, A, 4)) +
              shift.reshape((1, K, 4)).transpose((1, 0, 2)))
    return anchor.reshape((K * A, 4)).astype(np.float32)


def py_cpu_nms(dets, thresh):
    if dets.shape[0] == 0:
        return np.zeros((0,), dtype=np.int64)
    y1, x1, y2, x2 = dets[:, 0], dets[:, 1], dets[:, 2], dets[:, 3]
    areas = (x2 - x1 + 1) * (y2 - y1 + 1)
    order = np.arange(dets.shape[0])
    keep = []
    while order.size > 0:
        i = order[0]
        keep.append(i)
        yy1 = np.maximum(y1[i], y1[order[1:]])
        xx1 = np.maximum(x1[i], x1[order[1:]])
        yy2 = np.minimum(y2[i], y2[order[1:]])
        xx2 = np.minimum(x2[i], x2[order[1:]])
        w = np.maximum(0.0, xx2 - xx1 + 1)
        h = np.maximum(0.0, yy2 - yy1 + 1)
        inter = w * h
        ovr = inter / (areas[i] + areas[order[1:]] - inter)
        inds = np.where(ovr <= thresh)[0]
        order = order[inds + 1]
    return np.asarray(keep, dtype=np.int64)


# --------------------------------------------------------------------------
# Pallas kernel: fused conv1(3x3)+ReLU + fused loc/score 1x1 heads, per band.
# --------------------------------------------------------------------------
def _rpn_head_kernel(x_ref, w3_ref, b1_ref, wh_ref, bh_ref, out_ref,
                     *, band_rows, Wr):
    # x_ref : (1, 1, (band_rows+2)*Wr, 3*Cin) bf16 — band + 2 halo rows of the
    #         padded feature slab, flattened row-major over the 8-aligned Wr
    #         grid; dx taps pre-shifted & concatenated on the channel axis.
    # w3_ref: (3, 3*Cin, mid) bf16 — 3x3 taps grouped per dy (dx folded into K).
    # wh_ref: (mid, CPAD)     bf16 — [loc | score | zero-pad] fused 1x1 heads.
    # out   : (1, 1, band_rows*Wr, CPAD) f32 — lane-dense store; junk columns
    #         (x >= W) and junk rows (y >= H) are dropped in the wrapper.
    rows = band_rows * Wr

    # Accumulator initialized from the first tap (no zero-fill + add pass).
    acc = jnp.dot(x_ref[0, 0, 0:rows, :], w3_ref[0],
                  preferred_element_type=jnp.float32)
    for dy in (1, 2):                      # static unroll: 2 more MXU passes
        start = dy * Wr                    # multiple of 8 -> aligned free view
        acc = acc + jnp.dot(x_ref[0, 0, start:start + rows, :], w3_ref[dy],
                            preferred_element_type=jnp.float32)

    hid = jnp.maximum(acc + b1_ref[...], 0.0)            # f32 bias + ReLU
    out = jnp.dot(hid.astype(jnp.bfloat16), wh_ref[...],
                  preferred_element_type=jnp.float32) + bh_ref[...]
    out_ref[0, 0] = out


def _vmem_capacity_bytes():
    try:
        return int(pltpu.get_tpu_info().vmem_capacity_bytes)
    except Exception:
        return 64 << 20   # conservative fallback (v7x-sized)


def _default_band_rows(hh, Wr, c3, mid, cpad):
    """Generation-aware band height: the largest band whose per-step working
    set fits a conservative slice of this chip's VMEM, capped so production
    feature maps still get a second (parallel / pipelinable) grid axis."""
    budget = _vmem_capacity_bytes() // 3
    # Rough per-output-row bytes: double-buffered input/output blocks plus the
    # in-step f32 accumulator, bf16 hid copy and f32 head output.
    per_row = Wr * (2 * c3 * 2 + 2 * cpad * 4
                    + mid * 4 + mid * 2 + cpad * 4 + c3 * 2)
    fixed = 3 * c3 * mid * 2 + mid * 4 + mid * cpad * 2 + cpad * 4  # weights (1-buf)
    rows = max(8, (budget - fixed) // max(per_row, 1) - 2)
    return int(min(rows, hh, 32))


def rpn_heads_pallas(h_nchw, params, band_rows=None):
    """Fused conv1(3x3)+ReLU and loc/score 1x1 heads.

    Returns rpn_locs (N, H*W*A, 4) and rpn_scores (N, H*W*A, 2) in f32 with the
    same ordering as PyTorch's conv(...).permute(0, 2, 3, 1).view(n, -1, 4/2).
    """
    n, c, hh, ww = h_nchw.shape
    mid = params["w1"].shape[2]
    a4 = params["wloc"].shape[1]
    a2 = params["wsc"].shape[1]
    a6 = a4 + a2
    cpad = max(128, -(-a6 // 128) * 128)      # lane-dense fused-head width
    c3 = 3 * c
    Wr = -(-ww // 8) * 8                      # 8-aligned padded row width

    if band_rows is None:
        band_rows = _default_band_rows(hh, Wr, c3, mid, cpad)
    band_rows = max(1, min(int(band_rows), hh))
    num_bands = -(-hh // band_rows)
    h_pad = num_bands * band_rows

    # NCHW -> NHWC -> bf16 -> conv pad + alignment pad to (h_pad+2, Wr+2).
    x = jnp.transpose(h_nchw, (0, 2, 3, 1)).astype(jnp.bfloat16)
    x = jnp.pad(x, ((0, 0), (1, h_pad + 1 - hh), (1, Wr + 1 - ww), (0, 0)))
    # dx = 0/1/2 pre-shifted copies concatenated on the channel axis: the 3x3
    # conv becomes 3 matmuls with K = 3*Cin and every in-kernel tap offset is
    # dy*Wr (a multiple of 8, so slices are free aligned views).
    x3 = jnp.concatenate([x[:, :, dx:dx + Wr, :] for dx in range(3)], axis=-1)
    # Materialize per-band windows (band + 2 halo rows from the SAME padded
    # slab) so each grid step is a plain Blocked DMA.  Halo rows are duplicated
    # (~2/band_rows extra input bytes).
    # TODO(synk): switch to pl.Element windows over one shared slab to avoid
    # the halo duplication entirely.
    bands = jnp.stack([x3[:, j * band_rows: j * band_rows + band_rows + 2]
                       for j in range(num_bands)], axis=1)
    x_b = bands.reshape(n, num_bands, (band_rows + 2) * Wr, c3)

    # 3x3 taps grouped per dy with dx folded into the contraction dim:
    # w3[dy][dx*c + ci, m] == w1[dy*3 + dx][ci, m].
    w3 = params["w1"].reshape(3, c3, mid).astype(jnp.bfloat16)

    # Fused 1x1 heads, zero-padded to a lane-dense width.
    # TODO(synk): only a6 of cpad lanes are real and the store is f32; a
    # cpad-aware / bf16 writeback would trim HBM bytes (low priority).
    w_heads = jnp.zeros((mid, cpad), jnp.float32)
    w_heads = w_heads.at[:, :a4].set(params["wloc"]).at[:, a4:a6].set(params["wsc"])
    b_heads = jnp.zeros((1, cpad), jnp.float32)
    b_heads = b_heads.at[:, :a4].set(params["bloc"][0]).at[:, a4:a6].set(params["bsc"][0])

    vmem_limit = int(min(3 * _vmem_capacity_bytes() // 4, 100 << 20))

    kernel = functools.partial(_rpn_head_kernel, band_rows=band_rows, Wr=Wr)
    heads = pl.pallas_call(
        kernel,
        out_shape=jax.ShapeDtypeStruct((n, num_bands, band_rows * Wr, cpad),
                                       jnp.float32),
        grid_spec=pltpu.PrefetchScalarGridSpec(
            num_scalar_prefetch=0,
            grid=(n, num_bands),
            in_specs=[
                pl.BlockSpec((1, 1, (band_rows + 2) * Wr, c3),
                             lambda i, j: (i, j, 0, 0)),
                # Constant-index weight blocks: single-buffered to save VMEM.
                pl.BlockSpec((3, c3, mid), lambda i, j: (0, 0, 0),
                             pipeline_mode=pl.Buffered(1)),
                pl.BlockSpec((1, mid), lambda i, j: (0, 0),
                             pipeline_mode=pl.Buffered(1)),
                pl.BlockSpec((mid, cpad), lambda i, j: (0, 0),
                             pipeline_mode=pl.Buffered(1)),
                pl.BlockSpec((1, cpad), lambda i, j: (0, 0),
                             pipeline_mode=pl.Buffered(1)),
            ],
            out_specs=pl.BlockSpec((1, 1, band_rows * Wr, cpad),
                                   lambda i, j: (i, j, 0, 0)),
        ),
        compiler_params=pltpu.CompilerParams(
            dimension_semantics=("parallel", "parallel"),
            vmem_limit_bytes=vmem_limit,
        ),
    )(x_b, w3, params["b1"].astype(jnp.float32),
      w_heads.astype(jnp.bfloat16), b_heads)

    # Drop alignment-junk columns/rows and the zero-padded head lanes, then
    # reshape exactly like PyTorch's permute(0, 2, 3, 1).contiguous().view().
    heads = heads.reshape(n, h_pad, Wr, cpad)[:, :hh, :ww, :]
    rpn_locs = heads[..., :a4].reshape(n, hh * ww * (a4 // 4), 4)
    rpn_scores = heads[..., a4:a6].reshape(n, hh * ww * (a2 // 2), 2)
    return rpn_locs, rpn_scores


# --------------------------------------------------------------------------
# Device-side proposal preprocessing (decode, clip, min-size mask, top-k).
# --------------------------------------------------------------------------
def _propose_rois_device(locs, scores_fg, anchors, img_h, img_w, min_size):
    src_h = anchors[:, 2] - anchors[:, 0]
    src_w = anchors[:, 3] - anchors[:, 1]
    src_cy = anchors[:, 0] + 0.5 * src_h
    src_cx = anchors[:, 1] + 0.5 * src_w
    cy = locs[:, 0] * src_h + src_cy
    cx = locs[:, 1] * src_w + src_cx
    h = jnp.exp(locs[:, 2]) * src_h
    w = jnp.exp(locs[:, 3]) * src_w
    y1 = jnp.clip(cy - 0.5 * h, 0.0, img_h)
    x1 = jnp.clip(cx - 0.5 * w, 0.0, img_w)
    y2 = jnp.clip(cy + 0.5 * h, 0.0, img_h)
    x2 = jnp.clip(cx + 0.5 * w, 0.0, img_w)
    rois = jnp.stack([y1, x1, y2, x2], axis=1)
    keep = ((y2 - y1) >= min_size) & ((x2 - x1) >= min_size)
    masked = jnp.where(keep, scores_fg, -jnp.inf)   # filtered boxes sort last
    k = min(N_PRE_NMS, masked.shape[0])
    top_scores, top_idx = jax.lax.top_k(masked, k)
    return rois[top_idx], top_scores


@functools.partial(jax.jit, static_argnames=("band_rows",))
def _rpn_device(h_nchw, params, anchors, img_h, img_w, min_size, band_rows=None):
    rpn_locs, rpn_scores = rpn_heads_pallas(h_nchw, params, band_rows=band_rows)
    # Proposals only for batch element 0, ranked by raw fg logit — as the
    # reference module does.
    scores_fg = rpn_scores[0, :, 1]
    top_rois, top_scores = _propose_rois_device(
        rpn_locs[0], scores_fg, anchors, img_h, img_w, min_size)
    return rpn_locs, rpn_scores, top_rois, top_scores


def rpn_forward(h_nchw, params, img_size, scale, feat_stride, anchor_base,
                band_rows=None):
    n, _, hh, ww = h_nchw.shape
    anchors = get_anchors(anchor_base, feat_stride, hh, ww)
    min_size = 16.0 * float(scale)

    rpn_locs, rpn_scores, top_rois, top_scores = _rpn_device(
        h_nchw, params, jnp.asarray(anchors),
        float(img_size[0]), float(img_size[1]), min_size, band_rows=band_rows)

    # TODO(synk): NMS has data-dependent output shapes (no clean fixed-shape
    # Pallas equivalent); the reference also runs it on host via .cpu().numpy().
    rois = np.asarray(top_rois)
    scores = np.asarray(top_scores)
    rois = rois[np.isfinite(scores)]         # drop boxes failing min-size test
    keep = py_cpu_nms(rois, NMS_THRESH)[:N_POST_NMS]
    rois = rois[keep]
    roi_indices = [0] * len(rois)
    return rpn_locs, rpn_scores, rois, roi_indices, anchors


def init_rpn_params(key, in_channels, mid_channels, n_anchor):
    # normal_init(m, 0, 0.01): N(0, 0.01) weights, zero bias.
    k1, k2, k3 = jax.random.split(key, 3)
    return dict(
        w1=0.01 * jax.random.normal(k1, (9, in_channels, mid_channels), jnp.float32),
        b1=jnp.zeros((1, mid_channels), jnp.float32),
        wloc=0.01 * jax.random.normal(k2, (mid_channels, n_anchor * 4), jnp.float32),
        bloc=jnp.zeros((1, n_anchor * 4), jnp.float32),
        wsc=0.01 * jax.random.normal(k3, (mid_channels, n_anchor * 2), jnp.float32),
        bsc=jnp.zeros((1, n_anchor * 2), jnp.float32),
    )


def _rpn_heads_reference(h_nchw, params):
    """Pure-JAX reference (bf16-rounded operands, f32 accumulation)."""
    x = jnp.transpose(h_nchw, (0, 2, 3, 1)).astype(jnp.bfloat16).astype(jnp.float32)
    w1 = params["w1"].astype(jnp.bfloat16).astype(jnp.float32)
    wl = params["wloc"].astype(jnp.bfloat16).astype(jnp.float32)
    ws = params["wsc"].astype(jnp.bfloat16).astype(jnp.float32)
    n, H, W, _ = x.shape
    xp = jnp.pad(x, ((0, 0), (1, 1), (1, 1), (0, 0)))
    acc = jnp.zeros((n, H, W, w1.shape[-1]), jnp.float32)
    for k in range(9):
        dy, dx = divmod(k, 3)
        acc = acc + jnp.einsum("nhwc,cm->nhwm", xp[:, dy:dy + H, dx:dx + W, :], w1[k])
    hid = jnp.maximum(acc + params["b1"][0], 0.0)
    hid = hid.astype(jnp.bfloat16).astype(jnp.float32)
    loc = jnp.einsum("nhwm,mo->nhwo", hid, wl) + params["bloc"][0]
    sc = jnp.einsum("nhwm,mo->nhwo", hid, ws) + params["bsc"][0]
    return loc.reshape(n, -1, 4), sc.reshape(n, -1, 2)


if __name__ == "__main__":
    # Small shapes consistent with the module: N=2, C_in=4, mid=8, H=W=16.
    in_channels, mid_channels = 4, 8
    ratios, anchor_scales, feat_stride = [0.5, 1, 2], [0.5, 1, 2], 16
    anchor_base = generate_anchor_base(16, ratios, anchor_scales, feat_stride)
    n_anchor = anchor_base.shape[0]  # 9

    key = jax.random.PRNGKey(0)
    kx, kp = jax.random.split(key)
    N, H, W = 2, 16, 16
    h = jax.random.normal(kx, (N, in_channels, H, W), jnp.float32)  # NCHW input
    params = init_rpn_params(kp, in_channels, mid_channels, n_anchor)

    img_size = (H * feat_stride, W * feat_stride)
    # band_rows=4 -> grid=(2, 4): exercises the multi-band / halo path.
    rpn_locs, rpn_scores, rois, roi_indices, anchors = rpn_forward(
        h, params, img_size, scale=1.0, feat_stride=feat_stride,
        anchor_base=anchor_base, band_rows=4)
    jax.block_until_ready((rpn_locs, rpn_scores))

    # Numerical self-check against a pure-JAX reference (multi-band path).
    ref_locs, ref_scores = _rpn_heads_reference(h, params)
    np.testing.assert_allclose(np.asarray(rpn_locs), np.asarray(ref_locs),
                               rtol=5e-2, atol=5e-3)
    np.testing.assert_allclose(np.asarray(rpn_scores), np.asarray(ref_scores),
                               rtol=5e-2, atol=5e-3)

    # And the auto (generation-aware) band-size path (single band at toy size).
    auto_locs, auto_scores = jax.jit(
        functools.partial(rpn_heads_pallas, params=params))(h)
    jax.block_until_ready((auto_locs, auto_scores))
    np.testing.assert_allclose(np.asarray(auto_locs), np.asarray(ref_locs),
                               rtol=5e-2, atol=5e-3)
    np.testing.assert_allclose(np.asarray(auto_scores), np.asarray(ref_scores),
                               rtol=5e-2, atol=5e-3)

    assert rpn_locs.shape == (N, H * W * n_anchor, 4)
    assert rpn_scores.shape == (N, H * W * n_anchor, 2)
    assert anchors.shape == (H * W * n_anchor, 4)
    assert rois.shape[1] == 4 and len(roi_indices) == rois.shape[0]
    print("KERNEL_OK")
</pallas_src>

<mosaic_0001>
module attributes {stable_mosaic.version = 11 : i64} {
  func.func private @main(%arg0: i32) attributes {dimension_semantics = [#tpu.dimension_semantics<core_parallel>], iteration_bounds = array<i64: 2>, tpu.core_type = #tpu.core_type<sc_scalar_subcore>, window_params = []} {
    return
  }
}

module attributes {stable_mosaic.version = 11 : i64} {
  func.func private @main(%arg0: i32) attributes {dimension_semantics = [#tpu.dimension_semantics<core_parallel>], iteration_bounds = array<i64: 2>, tpu.core_type = #tpu.core_type<sc_scalar_subcore>, window_params = []} {
    return
  }
}

module attributes {stable_mosaic.version = 11 : i64} {
  func.func @_rpn_head_kernel(%arg0: i32, %arg1: i32, %arg2: memref<1x1x96x12xbf16, #tpu.memory_space<vmem>>, %arg3: memref<3x12x8xbf16, #tpu.memory_space<vmem>>, %arg4: memref<1x8xf32, #tpu.memory_space<vmem>>, %arg5: memref<8x128xbf16, #tpu.memory_space<vmem>>, %arg6: memref<1x128xf32, #tpu.memory_space<vmem>>, %arg7: memref<1x1x64x128xf32, #tpu.memory_space<vmem>>) attributes {dimension_semantics = [#tpu.dimension_semantics<parallel>, #tpu.dimension_semantics<parallel>], iteration_bounds = array<i64: 2, 4>, scalar_prefetch = 0 : i64, scratch_operands = 0 : i64, tpu.core_type = #tpu.core_type<tc>, window_params = [{transform_indices = @transform_0, window_bounds = array<i64: 1, 1, 96, 12>}, {pipeline_mode = #tpu.pipeline_mode<synchronous>, transform_indices = @transform_1, window_bounds = array<i64: 3, 12, 8>}, {pipeline_mode = #tpu.pipeline_mode<synchronous>, transform_indices = @transform_2, window_bounds = array<i64: 1, 8>}, {pipeline_mode = #tpu.pipeline_mode<synchronous>, transform_indices = @transform_3, window_bounds = array<i64: 8, 128>}, {pipeline_mode = #tpu.pipeline_mode<synchronous>, transform_indices = @transform_4, window_bounds = array<i64: 1, 128>}, {transform_indices = @transform_5, window_bounds = array<i64: 1, 1, 64, 128>}]} {
    %c0 = arith.constant 0 : index
    %c0_0 = arith.constant 0 : index
    %c0_1 = arith.constant 0 : index
    %c0_2 = arith.constant 0 : index
    %0 = vector.load %arg2[%c0, %c0_0, %c0_1, %c0_2] : memref<1x1x96x12xbf16, #tpu.memory_space<vmem>>, vector<1x1x64x12xbf16>
    %1 = vector.shape_cast %0 : vector<1x1x64x12xbf16> to vector<64x12xbf16>
    %c0_3 = arith.constant 0 : index
    %c0_4 = arith.constant 0 : index
    %c0_5 = arith.constant 0 : index
    %2 = vector.load %arg3[%c0_3, %c0_4, %c0_5] : memref<3x12x8xbf16, #tpu.memory_space<vmem>>, vector<1x12x8xbf16>
    %3 = vector.shape_cast %2 : vector<1x12x8xbf16> to vector<12x8xbf16>
    %cst = arith.constant dense<0.000000e+00> : vector<64x8xf32>
    %4 = tpu.matmul %1, %3, %cst {dimension_numbers = #tpu.dot_dimension_numbers<[1], [0], [0], [1], [0, 0, 1, 1], [], []>} : vector<64x12xbf16>, vector<12x8xbf16>, vector<64x8xf32> -> vector<64x8xf32>
    %c0_6 = arith.constant 0 : index
    %c0_7 = arith.constant 0 : index
    %c16 = arith.constant 16 : index
    %c0_8 = arith.constant 0 : index
    %5 = vector.load %arg2[%c0_6, %c0_7, %c16, %c0_8] : memref<1x1x96x12xbf16, #tpu.memory_space<vmem>>, vector<1x1x64x12xbf16>
    %6 = vector.shape_cast %5 : vector<1x1x64x12xbf16> to vector<64x12xbf16>
    %c1 = arith.constant 1 : index
    %c0_9 = arith.constant 0 : index
    %c0_10 = arith.constant 0 : index
    %7 = vector.load %arg3[%c1, %c0_9, %c0_10] : memref<3x12x8xbf16, #tpu.memory_space<vmem>>, vector<1x12x8xbf16>
    %8 = vector.shape_cast %7 : vector<1x12x8xbf16> to vector<12x8xbf16>
    %cst_11 = arith.constant dense<0.000000e+00> : vector<64x8xf32>
    %9 = tpu.matmul %6, %8, %cst_11 {dimension_numbers = #tpu.dot_dimension_numbers<[1], [0], [0], [1], [0, 0, 1, 1], [], []>} : vector<64x12xbf16>, vector<12x8xbf16>, vector<64x8xf32> -> vector<64x8xf32>
    %10 = arith.addf %4, %9 : vector<64x8xf32>
    %c0_12 = arith.constant 0 : index
    %c0_13 = arith.constant 0 : index
    %c32 = arith.constant 32 : index
    %c0_14 = arith.constant 0 : index
    %11 = vector.load %arg2[%c0_12, %c0_13, %c32, %c0_14] : memref<1x1x96x12xbf16, #tpu.memory_space<vmem>>, vector<1x1x64x12xbf16>
    %12 = vector.shape_cast %11 : vector<1x1x64x12xbf16> to vector<64x12xbf16>
    %c2 = arith.constant 2 : index
    %c0_15 = arith.constant 0 : index
    %c0_16 = arith.constant 0 : index
    %13 = vector.load %arg3[%c2, %c0_15, %c0_16] : memref<3x12x8xbf16, #tpu.memory_space<vmem>>, vector<1x12x8xbf16>
    %14 = vector.shape_cast %13 : vector<1x12x8xbf16> to vector<12x8xbf16>
    %cst_17 = arith.constant dense<0.000000e+00> : vector<64x8xf32>
    %15 = tpu.matmul %12, %14, %cst_17 {dimension_numbers = #tpu.dot_dimension_numbers<[1], [0], [0], [1], [0, 0, 1, 1], [], []>} : vector<64x12xbf16>, vector<12x8xbf16>, vector<64x8xf32> -> vector<64x8xf32>
    %16 = arith.addf %10, %15 : vector<64x8xf32>
    %c0_18 = arith.constant 0 : index
    %c0_19 = arith.constant 0 : index
    %17 = vector.load %arg4[%c0_18, %c0_19] : memref<1x8xf32, #tpu.memory_space<vmem>>, vector<1x8xf32>
    %18 = vector.broadcast %17 : vector<1x8xf32> to vector<64x8xf32>
    %19 = arith.addf %16, %18 : vector<64x8xf32>
    %cst_20 = arith.constant 0.000000e+00 : f32
    %20 = vector.broadcast %cst_20 : f32 to vector<64x8xf32>
    %21 = arith.maximumf %19, %20 : vector<64x8xf32>
    %22 = arith.truncf %21 : vector<64x8xf32> to vector<64x8xbf16>
    %c0_21 = arith.constant 0 : index
    %c0_22 = arith.constant 0 : index
    %23 = vector.load %arg5[%c0_21, %c0_22] : memref<8x128xbf16, #tpu.memory_space<vmem>>, vector<8x128xbf16>
    %cst_23 = arith.constant dense<0.000000e+00> : vector<64x128xf32>
    %24 = tpu.matmul %22, %23, %cst_23 {dimension_numbers = #tpu.dot_dimension_numbers<[1], [0], [0], [1], [0, 0, 1, 1], [], []>} : vector<64x8xbf16>, vector<8x128xbf16>, vector<64x128xf32> -> vector<64x128xf32>
    %c0_24 = arith.constant 0 : index
    %c0_25 = arith.constant 0 : index
    %25 = vector.load %arg6[%c0_24, %c0_25] : memref<1x128xf32, #tpu.memory_space<vmem>>, vector<1x128xf32>
    %26 = vector.broadcast %25 : vector<1x128xf32> to vector<64x128xf32>
    %27 = arith.addf %24, %26 : vector<64x128xf32>
    %c0_26 = arith.constant 0 : index
    %c0_27 = arith.constant 0 : index
    %c0_28 = arith.constant 0 : index
    %c0_29 = arith.constant 0 : index
    %28 = vector.load %arg7[%c0_26, %c0_27, %c0_28, %c0_29] : memref<1x1x64x128xf32, #tpu.memory_space<vmem>>, vector<1x1x64x128xf32>
    %29 = vector.shape_cast %28 : vector<1x1x64x128xf32> to vector<64x128xf32>
    %30 = vector.shape_cast %27 : vector<64x128xf32> to vector<1x1x64x128xf32>
    tpu.vector_store %arg7[%c0_26, %c0_27, %c0_28, %c0_29], %30 {strides = array<i32>} : memref<1x1x64x128xf32, #tpu.memory_space<vmem>>, vector<1x1x64x128xf32>,
    return
  }
  func.func @transform_0(%arg0: i32, %arg1: i32) -> (i32, i32, i32, i32) {
    %c0_i32 = arith.constant 0 : i32
    %c0_i32_0 = arith.constant 0 : i32
    %c0_i32_1 = arith.constant 0 : i32
    return %arg0, %arg1, %c0_i32, %c0_i32_0 : i32, i32, i32, i32
  }
  func.func @transform_1(%arg0: i32, %arg1: i32) -> (i32, i32, i32) {
    %c0_i32 = arith.constant 0 : i32
    %c0_i32_0 = arith.constant 0 : i32
    %c0_i32_1 = arith.constant 0 : i32
    %c0_i32_2 = arith.constant 0 : i32
    return %c0_i32, %c0_i32_0, %c0_i32_1 : i32, i32, i32
  }
  func.func @transform_2(%arg0: i32, %arg1: i32) -> (i32, i32) {
    %c0_i32 = arith.constant 0 : i32
    %c0_i32_0 = arith.constant 0 : i32
    %c0_i32_1 = arith.constant 0 : i32
    return %c0_i32, %c0_i32_0 : i32, i32
  }
  func.func @transform_3(%arg0: i32, %arg1: i32) -> (i32, i32) {
    %c0_i32 = arith.constant 0 : i32
    %c0_i32_0 = arith.constant 0 : i32
    %c0_i32_1 = arith.constant 0 : i32
    return %c0_i32, %c0_i32_0 : i32, i32
  }
  func.func @transform_4(%arg0: i32, %arg1: i32) -> (i32, i32) {
    %c0_i32 = arith.constant 0 : i32
    %c0_i32_0 = arith.constant 0 : i32
    %c0_i32_1 = arith.constant 0 : i32
    return %c0_i32, %c0_i32_0 : i32, i32
  }
  func.func @transform_5(%arg0: i32, %arg1: i32) -> (i32, i32, i32, i32) {
    %c0_i32 = arith.constant 0 : i32
    %c0_i32_0 = arith.constant 0 : i32
    %c0_i32_1 = arith.constant 0 : i32
    return %arg0, %arg1, %c0_i32, %c0_i32_0 : i32, i32, i32, i32
  }
}

</mosaic_0001>

<llo_original>
// kernel: squeeze.13
$region0: #{squeeze.13}
  %s0 = inlined_call_operand.vmem [shape: f32[1,16,16,36], index: 0, kind: input, shape index: {}]
  %s1 = inlined_call_operand.vmem [shape: f32[2304,4], index: 1, kind: output, shape index: {}]
  %v2 = vld [vmem:[%s0] sm:$0xff]
  %vm3 = vcmask 31744
  %4 = vst.msk [vmem:[%s1] ss:$9 sm:$0xff] %vm3, %v2
  %s5 = scalar_lea.vmem %s0, 8
  %v6 = vld [vmem:[%s5] sm:$0xff]
  %vm7 = vcmask 31744
  %s8 = scalar_lea.vmem %s1, 72
  %9 = vst.msk [vmem:[%s8] ss:$9 sm:$0xff] %vm7, %v6
  %s10 = scalar_lea.vmem %s0, 16
  %v11 = vld [vmem:[%s10] sm:$0xff]
  %vm12 = vcmask 31744
  %s13 = scalar_lea.vmem %s1, 144
  %14 = vst.msk [vmem:[%s13] ss:$9 sm:$0xff] %vm12, %v11
  %s15 = scalar_lea.vmem %s0, 24
  %v16 = vld [vmem:[%s15] sm:$0xff]
  %vm17 = vcmask 31744
  %s18 = scalar_lea.vmem %s1, 216
  %19 = vst.msk [vmem:[%s18] ss:$9 sm:$0xff] %vm17, %v16
  %s20 = scalar_lea.vmem %s0, 32
  %v21 = vld [vmem:[%s20] sm:$0xff]
  %vm22 = vcmask 31744
  %s23 = scalar_lea.vmem %s1, 288
  %24 = vst.msk [vmem:[%s23] ss:$9 sm:$0xff] %vm22, %v21
  %s25 = scalar_lea.vmem %s0, 40
  %v26 = vld [vmem:[%s25] sm:$0xff]
  %vm27 = vcmask 31744
  %s28 = scalar_lea.vmem %s1, 360
  %29 = vst.msk [vmem:[%s28] ss:$9 sm:$0xff] %vm27, %v26
  %s30 = scalar_lea.vmem %s0, 48
  %v31 = vld [vmem:[%s30] sm:$0xff]
  %vm32 = vcmask 31744
  %s33 = scalar_lea.vmem %s1, 432
  %34 = vst.msk [vmem:[%s33] ss:$9 sm:$0xff] %vm32, %v31
  %s35 = scalar_lea.vmem %s0, 56
  %v36 = vld [vmem:[%s35] sm:$0xff]
  %vm37 = vcmask 31744
  %s38 = scalar_lea.vmem %s1, 504
  %39 = vst.msk [vmem:[%s38] ss:$9 sm:$0xff] %vm37, %v36
  %s40 = scalar_lea.vmem %s0, 64
  %v41 = vld [vmem:[%s40] sm:$0xff]
  %vm42 = vcmask 31744
  %s43 = scalar_lea.vmem %s1, 576
  %44 = vst.msk [vmem:[%s43] ss:$9 sm:$0xff] %vm42, %v41
  %s45 = scalar_lea.vmem %s0, 72
  %v46 = vld [vmem:[%s45] sm:$0xff]
  %vm47 = vcmask 31744
  %s48 = scalar_lea.vmem %s1, 648
  %49 = vst.msk [vmem:[%s48] ss:$9 sm:$0xff] %vm47, %v46
  %s50 = scalar_lea.vmem %s0, 80
  %v51 = vld [vmem:[%s50] sm:$0xff]
  %vm52 = vcmask 31744
  %s53 = scalar_lea.vmem %s1, 720
  %54 = vst.msk [vmem:[%s53] ss:$9 sm:$0xff] %vm52, %v51
  %s55 = scalar_lea.vmem %s0, 88
  %v56 = vld [vmem:[%s55] sm:$0xff]
  %vm57 = vcmask 31744
  %s58 = scalar_lea.vmem %s1, 792
  %59 = vst.msk [vmem:[%s58] ss:$9 sm:$0xff] %vm57, %v56
  %s60 = scalar_lea.vmem %s0, 96
  %v61 = vld [vmem:[%s60] sm:$0xff]
  %vm62 = vcmask 31744
  %s63 = scalar_lea.vmem %s1, 864
  %64 = vst.msk [vmem:[%s63] ss:$9 sm:$0xff] %vm62, %v61
  %s65 = scalar_lea.vmem %s0, 104
  %v66 = vld [vmem:[%s65] sm:$0xff]
  %vm67 = vcmask 31744
  %s68 = scalar_lea.vmem %s1, 936
  %69 = vst.msk [vmem:[%s68] ss:$9 sm:$0xff] %vm67, %v66
  %s70 = scalar_lea.vmem %s0, 112
  %v71 = vld [vmem:[%s70] sm:$0xff]
  %vm72 = vcmask 31744
  %s73 = scalar_lea.vmem %s1, 1008
  %74 = vst.msk [vmem:[%s73] ss:$9 sm:$0xff] %vm72, %v71
  %s75 = scalar_lea.vmem %s0, 120
  %v76 = vld [vmem:[%s75] sm:$0xff]
  %vm77 = vcmask 31744
  %s78 = scalar_lea.vmem %s1, 1080
  %79 = vst.msk [vmem:[%s78] ss:$9 sm:$0xff] %vm77, %v76
  %s80 = scalar_lea.vmem %s0, 128
  %v81 = vld [vmem:[%s80] sm:$0xff]
  %vm82 = vcmask 31744
  %s83 = scalar_lea.vmem %s1, 1152
  %84 = vst.msk [vmem:[%s83] ss:$9 sm:$0xff] %vm82, %v81
  %s85 = scalar_lea.vmem %s0, 136
  %v86 = vld [vmem:[%s85] sm:$0xff]
  %vm87 = vcmask 31744
  %s88 = scalar_lea.vmem %s1, 1224
  %89 = vst.msk [vmem:[%s88] ss:$9 sm:$0xff] %vm87, %v86
  %s90 = scalar_lea.vmem %s0, 144
  %v91 = vld [vmem:[%s90] sm:$0xff]
  %vm92 = vcmask 31744
  %s93 = scalar_lea.vmem %s1, 1296
  %94 = vst.msk [vmem:[%s93] ss:$9 sm:$0xff] %vm92, %v91
  %s95 = scalar_lea.vmem %s0, 152
  %v96 = vld [vmem:[%s95] sm:$0xff]
  %vm97 = vcmask 31744
  %s98 = scalar_lea.vmem %s1, 1368
  %99 = vst.msk [vmem:[%s98] ss:$9 sm:$0xff] %vm97, %v96
  %s100 = scalar_lea.vmem %s0, 160
  %v101 = vld [vmem:[%s100] sm:$0xff]
  %vm102 = vcmask 31744
  %s103 = scalar_lea.vmem %s1, 1440
  %104 = vst.msk [vmem:[%s103] ss:$9 sm:$0xff] %vm102, %v101
  %s105 = scalar_lea.vmem %s0, 168
  %v106 = vld [vmem:[%s105] sm:$0xff]
  %vm107 = vcmask 31744
  %s108 = scalar_lea.vmem %s1, 1512
  %109 = vst.msk [vmem:[%s108] ss:$9 sm:$0xff] %vm107, %v106
  %s110 = scalar_lea.vmem %s0, 176
  %v111 = vld [vmem:[%s110] sm:$0xff]
  %vm112 = vcmask 31744
  %s113 = scalar_lea.vmem %s1, 1584
  %114 = vst.msk [vmem:[%s113] ss:$9 sm:$0xff] %vm112, %v111
  %s115 = scalar_lea.vmem %s0, 184
  %v116 = vld [vmem:[%s115] sm:$0xff]
  %vm117 = vcmask 31744
  %s118 = scalar_lea.vmem %s1, 1656
  %119 = vst.msk [vmem:[%s118] ss:$9 sm:$0xff] %vm117, %v116
  %s120 = scalar_lea.vmem %s0, 192
  %v121 = vld [vmem:[%s120] sm:$0xff]
  %vm122 = vcmask 31744
  %s123 = scalar_lea.vmem %s1, 1728
  %124 = vst.msk [vmem:[%s123] ss:$9 sm:$0xff] %vm122, %v121
  %s125 = scalar_lea.vmem %s0, 200
  %v126 = vld [vmem:[%s125] sm:$0xff]
  %vm127 = vcmask 31744
  %s128 = scalar_lea.vmem %s1, 1800
  %129 = vst.msk [vmem:[%s128] ss:$9 sm:$0xff] %vm127, %v126
  %s130 = scalar_lea.vmem %s0, 208
  %v131 = vld [vmem:[%s130] sm:$0xff]
  %vm132 = vcmask 31744
  %s133 = scalar_lea.vmem %s1, 1872
  %134 = vst.msk [vmem:[%s133] ss:$9 sm:$0xff] %vm132, %v131
  %s135 = scalar_lea.vmem %s0, 216
  %v136 = vld [vmem:[%s135] sm:$0xff]
  %vm137 = vcmask 31744
  %s138 = scalar_lea.vmem %s1, 1944
  %139 = vst.msk [vmem:[%s138] ss:$9 sm:$0xff] %vm137, %v136
  %s140 = scalar_lea.vmem %s0, 224
  %v141 = vld [vmem:[%s140] sm:$0xff]
  %vm142 = vcmask 31744
  %s143 = scalar_lea.vmem %s1, 2016
  %144 = vst.msk [vmem:[%s143] ss:$9 sm:$0xff] %vm142, %v141
  %s145 = scalar_lea.vmem %s0, 232
  %v146 = vld [vmem:[%s145] sm:$0xff]
  %vm147 = vcmask 31744
  %s148 = scalar_lea.vmem %s1, 2088
  %149 = vst.msk [vmem:[%s148] ss:$9 sm:$0xff] %vm147, %v146
  %s150 = scalar_lea.vmem %s0, 240
  %v151 = vld [vmem:[%s150] sm:$0xff]
  %vm152 = vcmask 31744
  %s153 = scalar_lea.vmem %s1, 2160
  %154 = vst.msk [vmem:[%s153] ss:$9 sm:$0xff] %vm152, %v151
  %s155 = scalar_lea.vmem %s0, 248
  %v156 = vld [vmem:[%s155] sm:$0xff]
  %vm157 = vcmask 31744
  %s158 = scalar_lea.vmem %s1, 2232
  %159 = vst.msk [vmem:[%s158] ss:$9 sm:$0xff] %vm157, %v156
  %s160 = scalar_lea.vmem %s0, 7
  %s161 = smov 3
  %v162 = vld [vmem:[%s160] ss:$-7 sm:%s161]
  %s163 = scalar_lea.vmem %s0, 39
  %v164 = vld [vmem:[%s163] ss:$-7 sm:$0x3c]
  %vm165 = vcmask 1045506
  %v166 = vsel %vm165, %v164, %v162
  %s167 = scalar_lea.vmem %s0, 71
  %s168 = smov 192
  %v169 = vld [vmem:[%s167] ss:$-7 sm:%s168]
  %vm170 = vcmask 1047558
  %v171 = vsel %vm170, %v169, %v166
  %172 = vrot.lane.b32.xlu0 %v171, 124
  %v173 = vpop.permute.xlu0 %172
  %vm174 = vcmask 31744
  %s175 = scalar_lea.vmem %s1, 64
  %176 = vst.msk [vmem:[%s175] ss:$-63 sm:$0x3] %vm174, %v173
  %s177 = scalar_lea.vmem %s1, 352
  %178 = vst.msk [vmem:[%s177] ss:$-63 sm:$0x3c] %vm174, %v173
  %s179 = scalar_lea.vmem %s1, 640
  %180 = vst.msk [vmem:[%s179] ss:$-63 sm:$0xc0] %vm174, %v173
  %s181 = scalar_lea.vmem %s0, 39
  %s182 = smov 3
  %v183 = vld [vmem:[%s181] ss:$-7 sm:%s182]
  %s184 = scalar_lea.vmem %s0, 71
  %v185 = vld [vmem:[%s184] ss:$-7 sm:$0x3c]
  %vm186 = vcmask 1045506
  %v187 = vsel %vm186, %v185, %v183
  %s188 = scalar_lea.vmem %s0, 103
  %s189 = smov 192
  %v190 = vld [vmem:[%s188] ss:$-7 sm:%s189]
  %vm191 = vcmask 1047558
  %v192 = vsel %vm191, %v190, %v187
  %193 = vrot.lane.b32.xlu0 %v192, 124
  %v194 = vpop.permute.xlu0 %193
  %vm195 = vcmask 31744
  %s196 = scalar_lea.vmem %s1, 352
  %197 = vst.msk [vmem:[%s196] ss:$-63 sm:$0x3] %vm195, %v194
  %s198 = scalar_lea.vmem %s1, 640
  %199 = vst.msk [vmem:[%s198] ss:$-63 sm:$0x3c] %vm195, %v194
  %s200 = scalar_lea.vmem %s1, 928
  %201 = vst.msk [vmem:[%s200] ss:$-63 sm:$0xc0] %vm195, %v194
  %s202 = scalar_lea.vmem %s0, 71
  %s203 = smov 3
  %v204 = vld [vmem:[%s202] ss:$-7 sm:%s203]
  %s205 = scalar_lea.vmem %s0, 103
  %v206 = vld [vmem:[%s205] ss:$-7 sm:$0x3c]
  %vm207 = vcmask 1045506
  %v208 = vsel %vm207, %v206, %v204
  %s209 = scalar_lea.vmem %s0, 135
  %s210 = smov 192
  %v211 = vld [vmem:[%s209] ss:$-7 sm:%s210]
  %vm212 = vcmask 1047558
  %v213 = vsel %vm212, %v211, %v208
  %214 = vrot.lane.b32.xlu0 %v213, 124
  %v215 = vpop.permute.xlu0 %214
  %vm216 = vcmask 31744
  %s217 = scalar_lea.vmem %s1, 640
  %218 = vst.msk [vmem:[%s217] ss:$-63 sm:$0x3] %vm216, %v215
  %s219 = scalar_lea.vmem %s1, 928
  %220 = vst.msk [vmem:[%s219] ss:$-63 sm:$0x3c] %vm216, %v215
  %s221 = scalar_lea.vmem %s1, 1216
  %222 = vst.msk [vmem:[%s221] ss:$-63 sm:$0xc0] %vm216, %v215
  %s223 = scalar_lea.vmem %s0, 103
  %s224 = smov 3
  %v225 = vld [vmem:[%s223] ss:$-7 sm:%s224]
  %s226 = scalar_lea.vmem %s0, 135
  %v227 = vld [vmem:[%s226] ss:$-7 sm:$0x3c]
  %vm228 = vcmask 1045506
  %v229 = vsel %vm228, %v227, %v225
  %s230 = scalar_lea.vmem %s0, 167
  %s231 = smov 192
  %v232 = vld [vmem:[%s230] ss:$-7 sm:%s231]
  %vm233 = vcmask 1047558
  %v234 = vsel %vm233, %v232, %v229
  %235 = vrot.lane.b32.xlu0 %v234, 124
  %v236 = vpop.permute.xlu0 %235
  %vm237 = vcmask 31744
  %s238 = scalar_lea.vmem %s1, 928
  %239 = vst.msk [vmem:[%s238] ss:$-63 sm:$0x3] %vm237, %v236
  %s240 = scalar_lea.vmem %s1, 1216
  %241 = vst.msk [vmem:[%s240] ss:$-63 sm:$0x3c] %vm237, %v236
  %s242 = scalar_lea.vmem %s1, 1504
  %243 = vst.msk [vmem:[%s242] ss:$-63 sm:$0xc0] %vm237, %v236
  %s244 = scalar_lea.vmem %s0, 135
  %s245 = smov 3
  %v246 = vld [vmem:[%s244] ss:$-7 sm:%s245]
  %s247 = scalar_lea.vmem %s0, 167
  %v248 = vld [vmem:[%s247] ss:$-7 sm:$0x3c]
  %vm249 = vcmask 1045506
  %v250 = vsel %vm249, %v248, %v246
  %s251 = scalar_lea.vmem %s0, 199
  %s252 = smov 192
  %v253 = vld [vmem:[%s251] ss:$-7 sm:%s252]
  %vm254 = vcmask 1047558
  %v255 = vsel %vm254, %v253, %v250
  %256 = vrot.lane.b32.xlu0 %v255, 124
  %v257 = vpop.permute.xlu0 %256
  %vm258 = vcmask 31744
  %s259 = scalar_lea.vmem %s1, 1216
  %260 = vst.msk [vmem:[%s259] ss:$-63 sm:$0x3] %vm258, %v257
  %s261 = scalar_lea.vmem %s1, 1504
  %262 = vst.msk [vmem:[%s261] ss:$-63 sm:$0x3c] %vm258, %v257
  %s263 = scalar_lea.vmem %s1, 1792
  %264 = vst.msk [vmem:[%s263] ss:$-63 sm:$0xc0] %vm258, %v257
  %s265 = scalar_lea.vmem %s0, 167
  %s266 = smov 3
  %v267 = vld [vmem:[%s265] ss:$-7 sm:%s266]
  %s268 = scalar_lea.vmem %s0, 199
  %v269 = vld [vmem:[%s268] ss:$-7 sm:$0x3c]
  %vm270 = vcmask 1045506
  %v271 = vsel %vm270, %v269, %v267
  %s272 = scalar_lea.vmem %s0, 231
  %s273 = smov 192
  %v274 = vld [vmem:[%s272] ss:$-7 sm:%s273]
  %vm275 = vcmask 1047558
  %v276 = vsel %vm275, %v274, %v271
  %277 = vrot.lane.b32.xlu0 %v276, 124
  %v278 = vpop.permute.xlu0 %277
  %vm279 = vcmask 31744
  %s280 = scalar_lea.vmem %s1, 1504
  %281 = vst.msk [vmem:[%s280] ss:$-63 sm:$0x3] %vm279, %v278
  %s282 = scalar_lea.vmem %s1, 1792
  %283 = vst.msk [vmem:[%s282] ss:$-63 sm:$0x3c] %vm279, %v278
  %s284 = scalar_lea.vmem %s1, 2080
  %285 = vst.msk [vmem:[%s284] ss:$-63 sm:$0xc0] %vm279, %v278
  %s286 = scalar_lea.vmem %s0, 199
  %s287 = smov 3
  %v288 = vld [vmem:[%s286] ss:$-7 sm:%s287]
  %s289 = scalar_lea.vmem %s0, 231
  %v290 = vld [vmem:[%s289] ss:$-7 sm:$0x3c]
  %vm291 = vcmask 1045506
  %v292 = vsel %vm291, %v290, %v288
  %s293 = scalar_lea.vmem %s0, 263
  %s294 = smov 192
  %v295 = vld [vmem:[%s293] ss:$-7 sm:%s294]
  %vm296 = vcmask 1047558
  %v297 = vsel %vm296, %v295, %v292
  %298 = vrot.lane.b32.xlu0 %v297, 124
  %v299 = vpop.permute.xlu0 %298
  %vm300 = vcmask 31744
  %s301 = scalar_lea.vmem %s1, 1792
  %302 = vst.msk [vmem:[%s301] ss:$-63 sm:$0x3] %vm300, %v299
  %s303 = scalar_lea.vmem %s1, 2080
  %304 = vst.msk [vmem:[%s303] ss:$-63 sm:$0x3c] %vm300, %v299
  %s305 = scalar_lea.vmem %s1, 2368
  %306 = vst.msk [vmem:[%s305] ss:$-63 sm:$0xc0] %vm300, %v299
  %s307 = scalar_lea.vmem %s0, 231
  %s308 = smov 3
  %v309 = vld [vmem:[%s307] ss:$-7 sm:%s308]
  %s310 = scalar_lea.vmem %s0, 263
  %v311 = vld [vmem:[%s310] ss:$-7 sm:$0x3c]
  %vm312 = vcmask 1045506
  %v313 = vsel %vm312, %v311, %v309
  %s314 = scalar_lea.vmem %s0, 295
  %s315 = smov 192
  %v316 = vld [vmem:[%s314] ss:$-7 sm:%s315]
  %vm317 = vcmask 1047558
  %v318 = vsel %vm317, %v316, %v313
  %319 = vrot.lane.b32.xlu0 %v318, 124
  %v320 = vpop.permute.xlu0 %319
  %vm321 = vcmask 31744
  %s322 = scalar_lea.vmem %s1, 2080
  %323 = vst.msk [vmem:[%s322] ss:$-63 sm:$0x3] %vm321, %v320
  %s324 = scalar_lea.vmem %s1, 2368
  %325 = vst.msk [vmem:[%s324] ss:$-63 sm:$0x3c] %vm321, %v320
  %s326 = scalar_lea.vmem %s1, 2656
  %327 = vst.msk [vmem:[%s326] ss:$-63 sm:$0xc0] %vm321, %v320
  %s328 = scalar_lea.vmem %s0, 15
  %v329 = vld [vmem:[%s328] ss:$-7 sm:$0x7]
  %s330 = scalar_lea.vmem %s0, 47
  %v331 = vld [vmem:[%s330] ss:$-7 sm:$0x78]
  %vm332 = vcmask 1046531
  %v333 = vsel %vm332, %v331, %v329
  %s334 = scalar_lea.vmem %s0, 23
  %v335 = vld [vmem:[%s334] sm:$0x80]
  %vm336 = vcmask 1047559
  %v337 = vsel %vm336, %v335, %v333
  %338 = vrot.lane.b32.xlu0 %v337, 124
  %v339 = vpop.permute.xlu0 %338
  %vm340 = vcmask 31744
  %s341 = scalar_lea.vmem %s1, 136
  %342 = vst.msk [vmem:[%s341] ss:$-63 sm:$0x7] %vm340, %v339
  %s343 = scalar_lea.vmem %s1, 424
  %344 = vst.msk [vmem:[%s343] ss:$-63 sm:$0x78] %vm340, %v339
  %s345 = scalar_lea.vmem %s1, 264
  %346 = vst.msk [vmem:[%s345] sm:$0x80] %vm340, %v339
  %s347 = scalar_lea.vmem %s0, 47
  %v348 = vld [vmem:[%s347] ss:$-7 sm:$0x7]
  %s349 = scalar_lea.vmem %s0, 79
  %v350 = vld [vmem:[%s349] ss:$-7 sm:$0x78]
  %vm351 = vcmask 1046531
  %v352 = vsel %vm351, %v350, %v348
  %s353 = scalar_lea.vmem %s0, 55
  %v354 = vld [vmem:[%s353] sm:$0x80]
  %vm355 = vcmask 1047559
  %v356 = vsel %vm355, %v354, %v352
  %357 = vrot.lane.b32.xlu0 %v356, 124
  %v358 = vpop.permute.xlu0 %357
  %vm359 = vcmask 31744
  %s360 = scalar_lea.vmem %s1, 424
  %361 = vst.msk [vmem:[%s360] ss:$-63 sm:$0x7] %vm359, %v358
  %s362 = scalar_lea.vmem %s1, 712
  %363 = vst.msk [vmem:[%s362] ss:$-63 sm:$0x78] %vm359, %v358
  %s364 = scalar_lea.vmem %s1, 552
  %365 = vst.msk [vmem:[%s364] sm:$0x80] %vm359, %v358
  %s366 = scalar_lea.vmem %s0, 79
  %v367 = vld [vmem:[%s366] ss:$-7 sm:$0x7]
  %s368 = scalar_lea.vmem %s0, 111
  %v369 = vld [vmem:[%s368] ss:$-7 sm:$0x78]
  %vm370 = vcmask 1046531
  %v371 = vsel %vm370, %v369, %v367
  %s372 = scalar_lea.vmem %s0, 87
  %v373 = vld [vmem:[%s372] sm:$0x80]
  %vm374 = vcmask 1047559
  %v375 = vsel %vm374, %v373, %v371
  %376 = vrot.lane.b32.xlu0 %v375, 124
  %v377 = vpop.permute.xlu0 %376
  %vm378 = vcmask 31744
  %s379 = scalar_lea.vmem %s1, 712
  %380 = vst.msk [vmem:[%s379] ss:$-63 sm:$0x7] %vm378, %v377
  %s381 = scalar_lea.vmem %s1, 1000
  %382 = vst.msk [vmem:[%s381] ss:$-63 sm:$0x78] %vm378, %v377
  %s383 = scalar_lea.vmem %s1, 840
  %384 = vst.msk [vmem:[%s383] sm:$0x80] %vm378, %v377
  %s385 = scalar_lea.vmem %s0, 111
  %v386 = vld [vmem:[%s385] ss:$-7 sm:$0x7]
  %s387 = scalar_lea.vmem %s0, 143
  %v388 = vld [vmem:[%s387] ss:$-7 sm:$0x78]
  %vm389 = vcmask 1046531
  %v390 = vsel %vm389, %v388, %v386
  %s391 = scalar_lea.vmem %s0, 119
  %v392 = vld [vmem:[%s391] sm:$0x80]
  %vm393 = vcmask 1047559
  %v394 = vsel %vm393, %v392, %v390
  %395 = vrot.lane.b32.xlu0 %v394, 124
  %v396 = vpop.permute.xlu0 %395
  %vm397 = vcmask 31744
  %s398 = scalar_lea.vmem %s1, 1000
  %399 = vst.msk [vmem:[%s398] ss:$-63 sm:$0x7] %vm397, %v396
  %s400 = scalar_lea.vmem %s1, 1288
  %401 = vst.msk [vmem:[%s400] ss:$-63 sm:$0x78] %vm397, %v396
  %s402 = scalar_lea.vmem %s1, 1128
  %403 = vst.msk [vmem:[%s402] sm:$0x80] %vm397, %v396
  %s404 = scalar_lea.vmem %s0, 143
  %v405 = vld [vmem:[%s404] ss:$-7 sm:$0x7]
  %s406 = scalar_lea.vmem %s0, 175
  %v407 = vld [vmem:[%s406] ss:$-7 sm:$0x78]
  %vm408 = vcmask 1046531
  %v409 = vsel %vm408, %v407, %v405
  %s410 = scalar_lea.vmem %s0, 151
  %v411 = vld [vmem:[%s410] sm:$0x80]
  %vm412 = vcmask 1047559
  %v413 = vsel %vm412, %v411, %v409
  %414 = vrot.lane.b32.xlu0 %v413, 124
  %v415 = vpop.permute.xlu0 %414
  %vm416 = vcmask 31744
  %s417 = scalar_lea.vmem %s1, 1288
  %418 = vst.msk [vmem:[%s417] ss:$-63 sm:$0x7] %vm416, %v415
  %s419 = scalar_lea.vmem %s1, 1576
  %420 = vst.msk [vmem:[%s419] ss:$-63 sm:$0x78] %vm416, %v415
  %s421 = scalar_lea.vmem %s1, 1416
  %422 = vst.msk [vmem:[%s421] sm:$0x80] %vm416, %v415
  %s423 = scalar_lea.vmem %s0, 175
  %v424 = vld [vmem:[%s423] ss:$-7 sm:$0x7]
  %s425 = scalar_lea.vmem %s0, 207
  %v426 = vld [vmem:[%s425] ss:$-7 sm:$0x78]
  %vm427 = vcmask 1046531
  %v428 = vsel %vm427, %v426, %v424
  %s429 = scalar_lea.vmem %s0, 183
  %v430 = vld [vmem:[%s429] sm:$0x80]
  %vm431 = vcmask 1047559
  %v432 = vsel %vm431, %v430, %v428
  %433 = vrot.lane.b32.xlu0 %v432, 124
  %v434 = vpop.permute.xlu0 %433
  %vm435 = vcmask 31744
  %s436 = scalar_lea.vmem %s1, 1576
  %437 = vst.msk [vmem:[%s436] ss:$-63 sm:$0x7] %vm435, %v434
  %s438 = scalar_lea.vmem %s1, 1864
  %439 = vst.msk [vmem:[%s438] ss:$-63 sm:$0x78] %vm435, %v434
  %s440 = scalar_lea.vmem %s1, 1704
  %441 = vst.msk [vmem:[%s440] sm:$0x80] %vm435, %v434
  %s442 = scalar_lea.vmem %s0, 207
  %v443 = vld [vmem:[%s442] ss:$-7 sm:$0x7]
  %s444 = scalar_lea.vmem %s0, 239
  %v445 = vld [vmem:[%s444] ss:$-7 sm:$0x78]
  %vm446 = vcmask 1046531
  %v447 = vsel %vm446, %v445, %v443
  %s448 = scalar_lea.vmem %s0, 215
  %v449 = vld [vmem:[%s448] sm:$0x80]
  %vm450 = vcmask 1047559
  %v451 = vsel %vm450, %v449, %v447
  %452 = vrot.lane.b32.xlu0 %v451, 124
  %v453 = vpop.permute.xlu0 %452
  %vm454 = vcmask 31744
  %s455 = scalar_lea.vmem %s1, 1864
  %456 = vst.msk [vmem:[%s455] ss:$-63 sm:$0x7] %vm454, %v453
  %s457 = scalar_lea.vmem %s1, 2152
  %458 = vst.msk [vmem:[%s457] ss:$-63 sm:$0x78] %vm454, %v453
  %s459 = scalar_lea.vmem %s1, 1992
  %460 = vst.msk [vmem:[%s459] sm:$0x80] %vm454, %v453
  %s461 = scalar_lea.vmem %s0, 239
  %v462 = vld [vmem:[%s461] ss:$-7 sm:$0x7]
  %s463 = scalar_lea.vmem %s0, 271
  %v464 = vld [vmem:[%s463] ss:$-7 sm:$0x78]
  %vm465 = vcmask 1046531
  %v466 = vsel %vm465, %v464, %v462
  %s467 = scalar_lea.vmem %s0, 247
  %v468 = vld [vmem:[%s467] sm:$0x80]
  %vm469 = vcmask 1047559
  %v470 = vsel %vm469, %v468, %v466
  %471 = vrot.lane.b32.xlu0 %v470, 124
  %v472 = vpop.permute.xlu0 %471
  %vm473 = vcmask 31744
  %s474 = scalar_lea.vmem %s1, 2152
  %475 = vst.msk [vmem:[%s474] ss:$-63 sm:$0x7] %vm473, %v472
  %s476 = scalar_lea.vmem %s1, 2440
  %477 = vst.msk [vmem:[%s476] ss:$-63 sm:$0x78] %vm473, %v472
  %s478 = scalar_lea.vmem %s1, 2280
  %479 = vst.msk [vmem:[%s478] sm:$0x80] %vm473, %v472
  %s480 = scalar_lea.vmem %s0, 23
  %v481 = vld [vmem:[%s480] ss:$-7 sm:$0xf]
  %s482 = scalar_lea.vmem %s0, 55
  %v483 = vld [vmem:[%s482] ss:$-7 sm:$0xf0]
  %vm484 = vcmask 1047556
  %v485 = vsel %vm484, %v483, %v481
  %486 = vrot.lane.b32.xlu0 %v485, 124
  %v487 = vpop.permute.xlu0 %486
  %vm488 = vcmask 31744
  %s489 = scalar_lea.vmem %s1, 208
  %490 = vst.msk [vmem:[%s489] ss:$-63 sm:$0xf] %vm488, %v487
  %s491 = scalar_lea.vmem %s1, 496
  %492 = vst.msk [vmem:[%s491] ss:$-63 sm:$0xf0] %vm488, %v487
  %s493 = scalar_lea.vmem %s0, 55
  %v494 = vld [vmem:[%s493] ss:$-7 sm:$0xf]
  %s495 = scalar_lea.vmem %s0, 87
  %v496 = vld [vmem:[%s495] ss:$-7 sm:$0xf0]
  %vm497 = vcmask 1047556
  %v498 = vsel %vm497, %v496, %v494
  %499 = vrot.lane.b32.xlu0 %v498, 124
  %v500 = vpop.permute.xlu0 %499
  %vm501 = vcmask 31744
  %s502 = scalar_lea.vmem %s1, 496
  %503 = vst.msk [vmem:[%s502] ss:$-63 sm:$0xf] %vm501, %v500
  %s504 = scalar_lea.vmem %s1, 784
  %505 = vst.msk [vmem:[%s504] ss:$-63 sm:$0xf0] %vm501, %v500
  %s506 = scalar_lea.vmem %s0, 87
  %v507 = vld [vmem:[%s506] ss:$-7 sm:$0xf]
  %s508 = scalar_lea.vmem %s0, 119
  %v509 = vld [vmem:[%s508] ss:$-7 sm:$0xf0]
  %vm510 = vcmask 1047556
  %v511 = vsel %vm510, %v509, %v507
  %512 = vrot.lane.b32.xlu0 %v511, 124
  %v513 = vpop.permute.xlu0 %512
  %vm514 = vcmask 31744
  %s515 = scalar_lea.vmem %s1, 784
  %516 = vst.msk [vmem:[%s515] ss:$-63 sm:$0xf] %vm514, %v513
  %s517 = scalar_lea.vmem %s1, 1072
  %518 = vst.msk [vmem:[%s517] ss:$-63 sm:$0xf0] %vm514, %v513
  %s519 = scalar_lea.vmem %s0, 119
  %v520 = vld [vmem:[%s519] ss:$-7 sm:$0xf]
  %s521 = scalar_lea.vmem %s0, 151
  %v522 = vld [vmem:[%s521] ss:$-7 sm:$0xf0]
  %vm523 = vcmask 1047556
  %v524 = vsel %vm523, %v522, %v520
  %525 = vrot.lane.b32.xlu0 %v524, 124
  %v526 = vpop.permute.xlu0 %525
  %vm527 = vcmask 31744
  %s528 = scalar_lea.vmem %s1, 1072
  %529 = vst.msk [vmem:[%s528] ss:$-63 sm:$0xf] %vm527, %v526
  %s530 = scalar_lea.vmem %s1, 1360
  %531 = vst.msk [vmem:[%s530] ss:$-63 sm:$0xf0] %vm527, %v526
  %s532 = scalar_lea.vmem %s0, 151
  %v533 = vld [vmem:[%s532] ss:$-7 sm:$0xf]
  %s534 = scalar_lea.vmem %s0, 183
  %v535 = vld [vmem:[%s534] ss:$-7 sm:$0xf0]
  %vm536 = vcmask 1047556
  %v537 = vsel %vm536, %v535, %v533
  %538 = vrot.lane.b32.xlu0 %v537, 124
  %v539 = vpop.permute.xlu0 %538
  %vm540 = vcmask 31744
  %s541 = scalar_lea.vmem %s1, 1360
  %542 = vst.msk [vmem:[%s541] ss:$-63 sm:$0xf] %vm540, %v539
  %s543 = scalar_lea.vmem %s1, 1648
  %544 = vst.msk [vmem:[%s543] ss:$-63 sm:$0xf0] %vm540, %v539
  %s545 = scalar_lea.vmem %s0, 183
  %v546 = vld [vmem:[%s545] ss:$-7 sm:$0xf]
  %s547 = scalar_lea.vmem %s0, 215
  %v548 = vld [vmem:[%s547] ss:$-7 sm:$0xf0]
  %vm549 = vcmask 1047556
  %v550 = vsel %vm549, %v548, %v546
  %551 = vrot.lane.b32.xlu0 %v550, 124
  %v552 = vpop.permute.xlu0 %551
  %vm553 = vcmask 31744
  %s554 = scalar_lea.vmem %s1, 1648
  %555 = vst.msk [vmem:[%s554] ss:$-63 sm:$0xf] %vm553, %v552
  %s556 = scalar_lea.vmem %s1, 1936
  %557 = vst.msk [vmem:[%s556] ss:$-63 sm:$0xf0] %vm553, %v552
  %s558 = scalar_lea.vmem %s0, 215
  %v559 = vld [vmem:[%s558] ss:$-7 sm:$0xf]
  %s560 = scalar_lea.vmem %s0, 247
  %v561 = vld [vmem:[%s560] ss:$-7 sm:$0xf0]
  %vm562 = vcmask 1047556
  %v563 = vsel %vm562, %v561, %v559
  %564 = vrot.lane.b32.xlu0 %v563, 124
  %v565 = vpop.permute.xlu0 %564
  %vm566 = vcmask 31744
  %s567 = scalar_lea.vmem %s1, 1936
  %568 = vst.msk [vmem:[%s567] ss:$-63 sm:$0xf] %vm566, %v565
  %s569 = scalar_lea.vmem %s1, 2224
  %570 = vst.msk [vmem:[%s569] ss:$-63 sm:$0xf0] %vm566, %v565
  %s571 = scalar_lea.vmem %s0, 247
  %v572 = vld [vmem:[%s571] ss:$-7 sm:$0xf]
  %s573 = scalar_lea.vmem %s0, 279
  %v574 = vld [vmem:[%s573] ss:$-7 sm:$0xf0]
  %vm575 = vcmask 1047556
  %v576 = vsel %vm575, %v574, %v572
  %577 = vrot.lane.b32.xlu0 %v576, 124
  %v578 = vpop.permute.xlu0 %577
  %vm579 = vcmask 31744
  %s580 = scalar_lea.vmem %s1, 2224
  %581 = vst.msk [vmem:[%s580] ss:$-63 sm:$0xf] %vm579, %v578
  %s582 = scalar_lea.vmem %s1, 2512
  %583 = vst.msk [vmem:[%s582] ss:$-63 sm:$0xf0] %vm579, %v578
  %s584 = scalar_lea.vmem %s0, 31
  %v585 = vld [vmem:[%s584] ss:$-7 sm:$0x1f]
  %s586 = scalar_lea.vmem %s0, 63
  %v587 = vld [vmem:[%s586] ss:$-7 sm:$0xe0]
  %vm588 = vcmask 1047557
  %v589 = vsel %vm588, %v587, %v585
  %590 = vrot.lane.b32.xlu0 %v589, 124
  %v591 = vpop.permute.xlu0 %590
  %vm592 = vcmask 31744
  %s593 = scalar_lea.vmem %s1, 280
  %594 = vst.msk [vmem:[%s593] ss:$-63 sm:$0x1f] %vm592, %v591
  %s595 = scalar_lea.vmem %s1, 568
  %596 = vst.msk [vmem:[%s595] ss:$-63 sm:$0xe0] %vm592, %v591
  %s597 = scalar_lea.vmem %s0, 63
  %v598 = vld [vmem:[%s597] ss:$-7 sm:$0x1f]
  %s599 = scalar_lea.vmem %s0, 95
  %v600 = vld [vmem:[%s599] ss:$-7 sm:$0xe0]
  %vm601 = vcmask 1047557
  %v602 = vsel %vm601, %v600, %v598
  %603 = vrot.lane.b32.xlu0 %v602, 124
  %v604 = vpop.permute.xlu0 %603
  %vm605 = vcmask 31744
  %s606 = scalar_lea.vmem %s1, 568
  %607 = vst.msk [vmem:[%s606] ss:$-63 sm:$0x1f] %vm605, %v604
  %s608 = scalar_lea.vmem %s1, 856
  %609 = vst.msk [vmem:[%s608] ss:$-63 sm:$0xe0] %vm605, %v604
  %s610 = scalar_lea.vmem %s0, 95
  %v611 = vld [vmem:[%s610] ss:$-7 sm:$0x1f]
  %s612 = scalar_lea.vmem %s0, 127
  %v613 = vld [vmem:[%s612] ss:$-7 sm:$0xe0]
  %vm614 = vcmask 1047557
  %v615 = vsel %vm614, %v613, %v611
  %616 = vrot.lane.b32.xlu0 %v615, 124
  %v617 = vpop.permute.xlu0 %616
  %vm618 = vcmask 31744
  %s619 = scalar_lea.vmem %s1, 856
  %620 = vst.msk [vmem:[%s619] ss:$-63 sm:$0x1f] %vm618, %v617
  %s621 = scalar_lea.vmem %s1, 1144
  %622 = vst.msk [vmem:[%s621] ss:$-63 sm:$0xe0] %vm618, %v617
  %s623 = scalar_lea.vmem %s0, 127
  %v624 = vld [vmem:[%s623] ss:$-7 sm:$0x1f]
  %s625 = scalar_lea.vmem %s0, 159
  %v626 = vld [vmem:[%s625] ss:$-7 sm:$0xe0]
  %vm627 = vcmask 1047557
  %v628 = vsel %vm627, %v626, %v624
  %629 = vrot.lane.b32.xlu0 %v628, 124
  %v630 = vpop.permute.xlu0 %629
  %vm631 = vcmask 31744
  %s632 = scalar_lea.vmem %s1, 1144
  %633 = vst.msk [vmem:[%s632] ss:$-63 sm:$0x1f] %vm631, %v630
  %s634 = scalar_lea.vmem %s1, 1432
  %635 = vst.msk [vmem:[%s634] ss:$-63 sm:$0xe0] %vm631, %v630
  %s636 = scalar_lea.vmem %s0, 159
  %v637 = vld [vmem:[%s636] ss:$-7 sm:$0x1f]
  %s638 = scalar_lea.vmem %s0, 191
  %v639 = vld [vmem:[%s638] ss:$-7 sm:$0xe0]
  %vm640 = vcmask 1047557
  %v641 = vsel %vm640, %v639, %v637
  %642 = vrot.lane.b32.xlu0 %v641, 124
  %v643 = vpop.permute.xlu0 %642
  %vm644 = vcmask 31744
  %s645 = scalar_lea.vmem %s1, 1432
  %646 = vst.msk [vmem:[%s645] ss:$-63 sm:$0x1f] %vm644, %v643
  %s647 = scalar_lea.vmem %s1, 1720
  %648 = vst.msk [vmem:[%s647] ss:$-63 sm:$0xe0] %vm644, %v643
  %s649 = scalar_lea.vmem %s0, 191
  %v650 = vld [vmem:[%s649] ss:$-7 sm:$0x1f]
  %s651 = scalar_lea.vmem %s0, 223
  %v652 = vld [vmem:[%s651] ss:$-7 sm:$0xe0]
  %vm653 = vcmask 1047557
  %v654 = vsel %vm653, %v652, %v650
  %655 = vrot.lane.b32.xlu0 %v654, 124
  %v656 = vpop.permute.xlu0 %655
  %vm657 = vcmask 31744
  %s658 = scalar_lea.vmem %s1, 1720
  %659 = vst.msk [vmem:[%s658] ss:$-63 sm:$0x1f] %vm657, %v656
  %s660 = scalar_lea.vmem %s1, 2008
  %661 = vst.msk [vmem:[%s660] ss:$-63 sm:$0xe0] %vm657, %v656
  %s662 = scalar_lea.vmem %s0, 223
  %v663 = vld [vmem:[%s662] ss:$-7 sm:$0x1f]
  %s664 = scalar_lea.vmem %s0, 255
  %v665 = vld [vmem:[%s664] ss:$-7 sm:$0xe0]
  %vm666 = vcmask 1047557
  %v667 = vsel %vm666, %v665, %v663
  %668 = vrot.lane.b32.xlu0 %v667, 124
  %v669 = vpop.permute.xlu0 %668
  %vm670 = vcmask 31744
  %s671 = scalar_lea.vmem %s1, 2008
  %672 = vst.msk [vmem:[%s671] ss:$-63 sm:$0x1f] %vm670, %v669
  %s673 = scalar_lea.vmem %s1, 2296
  %674 = vst.msk [vmem:[%s673] ss:$-63 sm:$0xe0] %vm670, %v669
  %s675 = scalar_lea.vmem %s0, 255
  %v676 = vld [vmem:[%s675] ss:$-7 sm:$0x1f]
  %s677 = scalar_lea.vmem %s0, 287
  %v678 = vld [vmem:[%s677] ss:$-7 sm:$0xe0]
  %vm679 = vcmask 1047557
  %v680 = vsel %vm679, %v678, %v676
  %681 = vrot.lane.b32.xlu0 %v680, 124
  %v682 = vpop.permute.xlu0 %681
  %vm683 = vcmask 31744
  %s684 = scalar_lea.vmem %s1, 2296
  %685 = vst.msk [vmem:[%s684] ss:$-63 sm:$0x1f] %vm683, %v682
  %s686 = scalar_lea.vmem %s1, 2584
  %687 = vst.msk [vmem:[%s686] ss:$-63 sm:$0xe0] %vm683, %v682
  %s688 = scalar_lea.vmem %s0, 14
  %v689 = vld [vmem:[%s688] ss:$-7 sm:$0x7]
  %s690 = scalar_lea.vmem %s0, 46
  %v691 = vld [vmem:[%s690] ss:$-7 sm:$0x78]
  %vm692 = vcmask 1046531
  %v693 = vsel %vm692, %v691, %v689
  %s694 = scalar_lea.vmem %s0, 22
  %v695 = vld [vmem:[%s694] sm:$0x80]
  %vm696 = vcmask 1047559
  %v697 = vsel %vm696, %v695, %v693
  %698 = vrot.lane.b32.xlu0 %v697, 120
  %v699 = vpop.permute.xlu0 %698
  %vm700 = vcmask 31744
  %s701 = scalar_lea.vmem %s1, 128
  %702 = vst.msk [vmem:[%s701] ss:$-63 sm:$0x7] %vm700, %v699
  %s703 = scalar_lea.vmem %s1, 416
  %704 = vst.msk [vmem:[%s703] ss:$-63 sm:$0x78] %vm700, %v699
  %s705 = scalar_lea.vmem %s1, 256
  %706 = vst.msk [vmem:[%s705] sm:$0x80] %vm700, %v699
  %s707 = scalar_lea.vmem %s0, 46
  %v708 = vld [vmem:[%s707] ss:$-7 sm:$0x7]
  %s709 = scalar_lea.vmem %s0, 78
  %v710 = vld [vmem:[%s709] ss:$-7 sm:$0x78]
  %vm711 = vcmask 1046531
  %v712 = vsel %vm711, %v710, %v708
  %s713 = scalar_lea.vmem %s0, 54
  %v714 = vld [vmem:[%s713] sm:$0x80]
  %vm715 = vcmask 1047559
  %v716 = vsel %vm715, %v714, %v712
  %717 = vrot.lane.b32.xlu0 %v716, 120
  %v718 = vpop.permute.xlu0 %717
  %vm719 = vcmask 31744
  %s720 = scalar_lea.vmem %s1, 416
  %721 = vst.msk [vmem:[%s720] ss:$-63 sm:$0x7] %vm719, %v718
  %s722 = scalar_lea.vmem %s1, 704
  %723 = vst.msk [vmem:[%s722] ss:$-63 sm:$0x78] %vm719, %v718
  %s724 = scalar_lea.vmem %s1, 544
  %725 = vst.msk [vmem:[%s724] sm:$0x80] %vm719, %v718
  %s726 = scalar_lea.vmem %s0, 78
  %v727 = vld [vmem:[%s726] ss:$-7 sm:$0x7]
  %s728 = scalar_lea.vmem %s0, 110
  %v729 = vld [vmem:[%s728] ss:$-7 sm:$0x78]
  %vm730 = vcmask 1046531
  %v731 = vsel %vm730, %v729, %v727
  %s732 = scalar_lea.vmem %s0, 86
  %v733 = vld [vmem:[%s732] sm:$0x80]
  %vm734 = vcmask 1047559
  %v735 = vsel %vm734, %v733, %v731
  %736 = vrot.lane.b32.xlu0 %v735, 120
  %v737 = vpop.permute.xlu0 %736
  %vm738 = vcmask 31744
  %s739 = scalar_lea.vmem %s1, 704
  %740 = vst.msk [vmem:[%s739] ss:$-63 sm:$0x7] %vm738, %v737
  %s741 = scalar_lea.vmem %s1, 992
  %742 = vst.msk [vmem:[%s741] ss:$-63 sm:$0x78] %vm738, %v737
  %s743 = scalar_lea.vmem %s1, 832
  %744 = vst.msk [vmem:[%s743] sm:$0x80] %vm738, %v737
  %s745 = scalar_lea.vmem %s0, 110
  %v746 = vld [vmem:[%s745] ss:$-7 sm:$0x7]
  %s747 = scalar_lea.vmem %s0, 142
  %v748 = vld [vmem:[%s747] ss:$-7 sm:$0x78]
  %vm749 = vcmask 1046531
  %v750 = vsel %vm749, %v748, %v746
  %s751 = scalar_lea.vmem %s0, 118
  %v752 = vld [vmem:[%s751] sm:$0x80]
  %vm753 = vcmask 1047559
  %v754 = vsel %vm753, %v752, %v750
  %755 = vrot.lane.b32.xlu0 %v754, 120
  %v756 = vpop.permute.xlu0 %755
  %vm757 = vcmask 31744
  %s758 = scalar_lea.vmem %s1, 992
  %759 = vst.msk [vmem:[%s758] ss:$-63 sm:$0x7] %vm757, %v756
  %s760 = scalar_lea.vmem %s1, 1280
  %761 = vst.msk [vmem:[%s760] ss:$-63 sm:$0x78] %vm757, %v756
  %s762 = scalar_lea.vmem %s1, 1120
  %763 = vst.msk [vmem:[%s762] sm:$0x80] %vm757, %v756
  %s764 = scalar_lea.vmem %s0, 142
  %v765 = vld [vmem:[%s764] ss:$-7 sm:$0x7]
  %s766 = scalar_lea.vmem %s0, 174
  %v767 = vld [vmem:[%s766] ss:$-7 sm:$0x78]
  %vm768 = vcmask 1046531
  %v769 = vsel %vm768, %v767, %v765
  %s770 = scalar_lea.vmem %s0, 150
  %v771 = vld [vmem:[%s770] sm:$0x80]
  %vm772 = vcmask 1047559
  %v773 = vsel %vm772, %v771, %v769
  %774 = vrot.lane.b32.xlu0 %v773, 120
  %v775 = vpop.permute.xlu0 %774
  %vm776 = vcmask 31744
  %s777 = scalar_lea.vmem %s1, 1280
  %778 = vst.msk [vmem:[%s777] ss:$-63 sm:$0x7] %vm776, %v775
  %s779 = scalar_lea.vmem %s1, 1568
  %780 = vst.msk [vmem:[%s779] ss:$-63 sm:$0x78] %vm776, %v775
  %s781 = scalar_lea.vmem %s1, 1408
  %782 = vst.msk [vmem:[%s781] sm:$0x80] %vm776, %v775
  %s783 = scalar_lea.vmem %s0, 174
  %v784 = vld [vmem:[%s783] ss:$-7 sm:$0x7]
  %s785 = scalar_lea.vmem %s0, 206
  %v786 = vld [vmem:[%s785] ss:$-7 sm:$0x78]
  %vm787 = vcmask 1046531
  %v788 = vsel %vm787, %v786, %v784
  %s789 = scalar_lea.vmem %s0, 182
  %v790 = vld [vmem:[%s789] sm:$0x80]
  %vm791 = vcmask 1047559
  %v792 = vsel %vm791, %v790, %v788
  %793 = vrot.lane.b32.xlu0 %v792, 120
  %v794 = vpop.permute.xlu0 %793
  %vm795 = vcmask 31744
  %s796 = scalar_lea.vmem %s1, 1568
  %797 = vst.msk [vmem:[%s796] ss:$-63 sm:$0x7] %vm795, %v794
  %s798 = scalar_lea.vmem %s1, 1856
  %799 = vst.msk [vmem:[%s798] ss:$-63 sm:$0x78] %vm795, %v794
  %s800 = scalar_lea.vmem %s1, 1696
  %801 = vst.msk [vmem:[%s800] sm:$0x80] %vm795, %v794
  %s802 = scalar_lea.vmem %s0, 206
  %v803 = vld [vmem:[%s802] ss:$-7 sm:$0x7]
  %s804 = scalar_lea.vmem %s0, 238
  %v805 = vld [vmem:[%s804] ss:$-7 sm:$0x78]
  %vm806 = vcmask 1046531
  %v807 = vsel %vm806, %v805, %v803
  %s808 = scalar_lea.vmem %s0, 214
  %v809 = vld [vmem:[%s808] sm:$0x80]
  %vm810 = vcmask 1047559
  %v811 = vsel %vm810, %v809, %v807
  %812 = vrot.lane.b32.xlu0 %v811, 120
  %v813 = vpop.permute.xlu0 %812
  %vm814 = vcmask 31744
  %s815 = scalar_lea.vmem %s1, 1856
  %816 = vst.msk [vmem:[%s815] ss:$-63 sm:$0x7] %vm814, %v813
  %s817 = scalar_lea.vmem %s1, 2144
  %818 = vst.msk [vmem:[%s817] ss:$-63 sm:$0x78] %vm814, %v813
  %s819 = scalar_lea.vmem %s1, 1984
  %820 = vst.msk [vmem:[%s819] sm:$0x80] %vm814, %v813
  %s821 = scalar_lea.vmem %s0, 238
  %v822 = vld [vmem:[%s821] ss:$-7 sm:$0x7]
  %s823 = scalar_lea.vmem %s0, 270
  %v824 = vld [vmem:[%s823] ss:$-7 sm:$0x78]
  %vm825 = vcmask 1046531
  %v826 = vsel %vm825, %v824, %v822
  %s827 = scalar_lea.vmem %s0, 246
  %v828 = vld [vmem:[%s827] sm:$0x80]
  %vm829 = vcmask 1047559
  %v830 = vsel %vm829, %v828, %v826
  %831 = vrot.lane.b32.xlu0 %v830, 120
  %v832 = vpop.permute.xlu0 %831
  %vm833 = vcmask 31744
  %s834 = scalar_lea.vmem %s1, 2144
  %835 = vst.msk [vmem:[%s834] ss:$-63 sm:$0x7] %vm833, %v832
  %s836 = scalar_lea.vmem %s1, 2432
  %837 = vst.msk [vmem:[%s836] ss:$-63 sm:$0x78] %vm833, %v832
  %s838 = scalar_lea.vmem %s1, 2272
  %839 = vst.msk [vmem:[%s838] sm:$0x80] %vm833, %v832
  %s840 = scalar_lea.vmem %s0, 22
  %v841 = vld [vmem:[%s840] ss:$-7 sm:$0xf]
  %s842 = scalar_lea.vmem %s0, 54
  %v843 = vld [vmem:[%s842] ss:$-7 sm:$0xf0]
  %vm844 = vcmask 1047556
  %v845 = vsel %vm844, %v843, %v841
  %846 = vrot.lane.b32.xlu0 %v845, 120
  %v847 = vpop.permute.xlu0 %846
  %vm848 = vcmask 31744
  %s849 = scalar_lea.vmem %s1, 200
  %850 = vst.msk [vmem:[%s849] ss:$-63 sm:$0xf] %vm848, %v847
  %s851 = scalar_lea.vmem %s1, 488
  %852 = vst.msk [vmem:[%s851] ss:$-63 sm:$0xf0] %vm848, %v847
  %s853 = scalar_lea.vmem %s0, 54
  %v854 = vld [vmem:[%s853] ss:$-7 sm:$0xf]
  %s855 = scalar_lea.vmem %s0, 86
  %v856 = vld [vmem:[%s855] ss:$-7 sm:$0xf0]
  %vm857 = vcmask 1047556
  %v858 = vsel %vm857, %v856, %v854
  %859 = vrot.lane.b32.xlu0 %v858, 120
  %v860 = vpop.permute.xlu0 %859
  %vm861 = vcmask 31744
  %s862 = scalar_lea.vmem %s1, 488
  %863 = vst.msk [vmem:[%s862] ss:$-63 sm:$0xf] %vm861, %v860
  %s864 = scalar_lea.vmem %s1, 776
  %865 = vst.msk [vmem:[%s864] ss:$-63 sm:$0xf0] %vm861, %v860
  %s866 = scalar_lea.vmem %s0, 86
  %v867 = vld [vmem:[%s866] ss:$-7 sm:$0xf]
  %s868 = scalar_lea.vmem %s0, 118
  %v869 = vld [vmem:[%s868] ss:$-7 sm:$0xf0]
  %vm870 = vcmask 1047556
  %v871 = vsel %vm870, %v869, %v867
  %872 = vrot.lane.b32.xlu0 %v871, 120
  %v873 = vpop.permute.xlu0 %872
  %vm874 = vcmask 31744
  %s875 = scalar_lea.vmem %s1, 776
  %876 = vst.msk [vmem:[%s875] ss:$-63 sm:$0xf] %vm874, %v873
  %s877 = scalar_lea.vmem %s1, 1064
  %878 = vst.msk [vmem:[%s877] ss:$-63 sm:$0xf0] %vm874, %v873
  %s879 = scalar_lea.vmem %s0, 118
  %v880 = vld [vmem:[%s879] ss:$-7 sm:$0xf]
  %s881 = scalar_lea.vmem %s0, 150
  %v882 = vld [vmem:[%s881] ss:$-7 sm:$0xf0]
  %vm883 = vcmask 1047556
  %v884 = vsel %vm883, %v882, %v880
  %885 = vrot.lane.b32.xlu0 %v884, 120
  %v886 = vpop.permute.xlu0 %885
  %vm887 = vcmask 31744
  %s888 = scalar_lea.vmem %s1, 1064
  %889 = vst.msk [vmem:[%s888] ss:$-63 sm:$0xf] %vm887, %v886
  %s890 = scalar_lea.vmem %s1, 1352
  %891 = vst.msk [vmem:[%s890] ss:$-63 sm:$0xf0] %vm887, %v886
  %s892 = scalar_lea.vmem %s0, 150
  %v893 = vld [vmem:[%s892] ss:$-7 sm:$0xf]
  %s894 = scalar_lea.vmem %s0, 182
  %v895 = vld [vmem:[%s894] ss:$-7 sm:$0xf0]
  %vm896 = vcmask 1047556
  %v897 = vsel %vm896, %v895, %v893
  %898 = vrot.lane.b32.xlu0 %v897, 120
  %v899 = vpop.permute.xlu0 %898
  %vm900 = vcmask 31744
  %s901 = scalar_lea.vmem %s1, 1352
  %902 = vst.msk [vmem:[%s901] ss:$-63 sm:$0xf] %vm900, %v899
  %s903 = scalar_lea.vmem %s1, 1640
  %904 = vst.msk [vmem:[%s903] ss:$-63 sm:$0xf0] %vm900, %v899
  %s905 = scalar_lea.vmem %s0, 182
  %v906 = vld [vmem:[%s905] ss:$-7 sm:$0xf]
  %s907 = scalar_lea.vmem %s0, 214
  %v908 = vld [vmem:[%s907] ss:$-7 sm:$0xf0]
  %vm909 = vcmask 1047556
  %v910 = vsel %vm909, %v908, %v906
  %911 = vrot.lane.b32.xlu0 %v910, 120
  %v912 = vpop.permute.xlu0 %911
  %vm913 = vcmask 31744
  %s914 = scalar_lea.vmem %s1, 1640
  %915 = vst.msk [vmem:[%s914] ss:$-63 sm:$0xf] %vm913, %v912
  %s916 = scalar_lea.vmem %s1, 1928
  %917 = vst.msk [vmem:[%s916] ss:$-63 sm:$0xf0] %vm913, %v912
  %s918 = scalar_lea.vmem %s0, 214
  %v919 = vld [vmem:[%s918] ss:$-7 sm:$0xf]
  %s920 = scalar_lea.vmem %s0, 246
  %v921 = vld [vmem:[%s920] ss:$-7 sm:$0xf0]
  %vm922 = vcmask 1047556
  %v923 = vsel %vm922, %v921, %v919
  %924 = vrot.lane.b32.xlu0 %v923, 120
  %v925 = vpop.permute.xlu0 %924
  %vm926 = vcmask 31744
  %s927 = scalar_lea.vmem %s1, 1928
  %928 = vst.msk [vmem:[%s927] ss:$-63 sm:$0xf] %vm926, %v925
  %s929 = scalar_lea.vmem %s1, 2216
  %930 = vst.msk [vmem:[%s929] ss:$-63 sm:$0xf0] %vm926, %v925
  %s931 = scalar_lea.vmem %s0, 246
  %v932 = vld [vmem:[%s931] ss:$-7 sm:$0xf]
  %s933 = scalar_lea.vmem %s0, 278
  %v934 = vld [vmem:[%s933] ss:$-7 sm:$0xf0]
  %vm935 = vcmask 1047556
  %v936 = vsel %vm935, %v934, %v932
  %937 = vrot.lane.b32.xlu0 %v936, 120
  %v938 = vpop.permute.xlu0 %937
  %vm939 = vcmask 31744
  %s940 = scalar_lea.vmem %s1, 2216
  %941 = vst.msk [vmem:[%s940] ss:$-63 sm:$0xf] %vm939, %v938
  %s942 = scalar_lea.vmem %s1, 2504
  %943 = vst.msk [vmem:[%s942] ss:$-63 sm:$0xf0] %vm939, %v938
  %s944 = scalar_lea.vmem %s0, 30
  %v945 = vld [vmem:[%s944] ss:$-7 sm:$0x1f]
  %s946 = scalar_lea.vmem %s0, 62
  %v947 = vld [vmem:[%s946] ss:$-7 sm:$0xe0]
  %vm948 = vcmask 1047557
  %v949 = vsel %vm948, %v947, %v945
  %950 = vrot.lane.b32.xlu0 %v949, 120
  %v951 = vpop.permute.xlu0 %950
  %vm952 = vcmask 31744
  %s953 = scalar_lea.vmem %s1, 272
  %954 = vst.msk [vmem:[%s953] ss:$-63 sm:$0x1f] %vm952, %v951
  %s955 = scalar_lea.vmem %s1, 560
  %956 = vst.msk [vmem:[%s955] ss:$-63 sm:$0xe0] %vm952, %v951
  %s957 = scalar_lea.vmem %s0, 62
  %v958 = vld [vmem:[%s957] ss:$-7 sm:$0x1f]
  %s959 = scalar_lea.vmem %s0, 94
  %v960 = vld [vmem:[%s959] ss:$-7 sm:$0xe0]
  %vm961 = vcmask 1047557
  %v962 = vsel %vm961, %v960, %v958
  %963 = vrot.lane.b32.xlu0 %v962, 120
  %v964 = vpop.permute.xlu0 %963
  %vm965 = vcmask 31744
  %s966 = scalar_lea.vmem %s1, 560
  %967 = vst.msk [vmem:[%s966] ss:$-63 sm:$0x1f] %vm965, %v964
  %s968 = scalar_lea.vmem %s1, 848
  %969 = vst.msk [vmem:[%s968] ss:$-63 sm:$0xe0] %vm965, %v964
  %s970 = scalar_lea.vmem %s0, 94
  %v971 = vld [vmem:[%s970] ss:$-7 sm:$0x1f]
  %s972 = scalar_lea.vmem %s0, 126
  %v973 = vld [vmem:[%s972] ss:$-7 sm:$0xe0]
  %vm974 = vcmask 1047557
  %v975 = vsel %vm974, %v973, %v971
  %976 = vrot.lane.b32.xlu0 %v975, 120
  %v977 = vpop.permute.xlu0 %976
  %vm978 = vcmask 31744
  %s979 = scalar_lea.vmem %s1, 848
  %980 = vst.msk [vmem:[%s979] ss:$-63 sm:$0x1f] %vm978, %v977
  %s981 = scalar_lea.vmem %s1, 1136
  %982 = vst.msk [vmem:[%s981] ss:$-63 sm:$0xe0] %vm978, %v977
  %s983 = scalar_lea.vmem %s0, 126
  %v984 = vld [vmem:[%s983] ss:$-7 sm:$0x1f]
  %s985 = scalar_lea.vmem %s0, 158
  %v986 = vld [vmem:[%s985] ss:$-7 sm:$0xe0]
  %vm987 = vcmask 1047557
  %v988 = vsel %vm987, %v986, %v984
  %989 = vrot.lane.b32.xlu0 %v988, 120
  %v990 = vpop.permute.xlu0 %989
  %vm991 = vcmask 31744
  %s992 = scalar_lea.vmem %s1, 1136
  %993 = vst.msk [vmem:[%s992] ss:$-63 sm:$0x1f] %vm991, %v990
  %s994 = scalar_lea.vmem %s1, 1424
  %995 = vst.msk [vmem:[%s994] ss:$-63 sm:$0xe0] %vm991, %v990
  %s996 = scalar_lea.vmem %s0, 158
  %v997 = vld [vmem:[%s996] ss:$-7 sm:$0x1f]
  %s998 = scalar_lea.vmem %s0, 190
  %v999 = vld [vmem:[%s998] ss:$-7 sm:$0xe0]
  %vm1000 = vcmask 1047557
  %v1001 = vsel %vm1000, %v999, %v997
  %1002 = vrot.lane.b32.xlu0 %v1001, 120
  %v1003 = vpop.permute.xlu0 %1002
  %vm1004 = vcmask 31744
  %s1005 = scalar_lea.vmem %s1, 1424
  %1006 = vst.msk [vmem:[%s1005] ss:$-63 sm:$0x1f] %vm1004, %v1003
  %s1007 = scalar_lea.vmem %s1, 1712
  %1008 = vst.msk [vmem:[%s1007] ss:$-63 sm:$0xe0] %vm1004, %v1003
  %s1009 = scalar_lea.vmem %s0, 190
  %v1010 = vld [vmem:[%s1009] ss:$-7 sm:$0x1f]
  %s1011 = scalar_lea.vmem %s0, 222
  %v1012 = vld [vmem:[%s1011] ss:$-7 sm:$0xe0]
  %vm1013 = vcmask 1047557
  %v1014 = vsel %vm1013, %v1012, %v1010
  %1015 = vrot.lane.b32.xlu0 %v1014, 120
  %v1016 = vpop.permute.xlu0 %1015
  %vm1017 = vcmask 31744
  %s1018 = scalar_lea.vmem %s1, 1712
  %1019 = vst.msk [vmem:[%s1018] ss:$-63 sm:$0x1f] %vm1017, %v1016
  %s1020 = scalar_lea.vmem %s1, 2000
  %1021 = vst.msk [vmem:[%s1020] ss:$-63 sm:$0xe0] %vm1017, %v1016
  %s1022 = scalar_lea.vmem %s0, 222
  %v1023 = vld [vmem:[%s1022] ss:$-7 sm:$0x1f]
  %s1024 = scalar_lea.vmem %s0, 254
  %v1025 = vld [vmem:[%s1024] ss:$-7 sm:$0xe0]
  %vm1026 = vcmask 1047557
  %v1027 = vsel %vm1026, %v1025, %v1023
  %1028 = vrot.lane.b32.xlu0 %v1027, 120
  %v1029 = vpop.permute.xlu0 %1028
  %vm1030 = vcmask 31744
  %s1031 = scalar_lea.vmem %s1, 2000
  %1032 = vst.msk [vmem:[%s1031] ss:$-63 sm:$0x1f] %vm1030, %v1029
  %s1033 = scalar_lea.vmem %s1, 2288
  %1034 = vst.msk [vmem:[%s1033] ss:$-63 sm:$0xe0] %vm1030, %v1029
  %s1035 = scalar_lea.vmem %s0, 254
  %v1036 = vld [vmem:[%s1035] ss:$-7 sm:$0x1f]
  %s1037 = scalar_lea.vmem %s0, 286
  %v1038 = vld [vmem:[%s1037] ss:$-7 sm:$0xe0]
  %vm1039 = vcmask 1047557
  %v1040 = vsel %vm1039, %v1038, %v1036
  %1041 = vrot.lane.b32.xlu0 %v1040, 120
  %v1042 = vpop.permute.xlu0 %1041
  %vm1043 = vcmask 31744
  %s1044 = scalar_lea.vmem %s1, 2288
  %1045 = vst.msk [vmem:[%s1044] ss:$-63 sm:$0x1f] %vm1043, %v1042
  %s1046 = scalar_lea.vmem %s1, 2576
  %1047 = vst.msk [vmem:[%s1046] ss:$-63 sm:$0xe0] %vm1043, %v1042
  %s1048 = scalar_lea.vmem %s0, 6
  %s1049 = smov 3
  %v1050 = vld [vmem:[%s1048] ss:$25 sm:%s1049]
  %s1051 = scalar_lea.vmem %s0, 38
  %v1052 = vld [vmem:[%s1051] ss:$-7 sm:$0x3c]
  %vm1053 = vcmask 1045506
  %v1054 = vsel %vm1053, %v1052, %v1050
  %s1055 = scalar_lea.vmem %s0, 70
  %s1056 = smov 192
  %v1057 = vld [vmem:[%s1055] ss:$-7 sm:%s1056]
  %vm1058 = vcmask 1047558
  %v1059 = vsel %vm1058, %v1057, %v1054
  %1060 = vrot.lane.b32.xlu0 %v1059, 120
  %v1061 = vpop.permute.xlu0 %1060
  %vm1062 = vcmask 31744
  %s1063 = scalar_lea.vmem %s1, 56
  %1064 = vst.msk [vmem:[%s1063] ss:$225 sm:$0x3] %vm1062, %v1061
  %s1065 = scalar_lea.vmem %s1, 344
  %1066 = vst.msk [vmem:[%s1065] ss:$-63 sm:$0x3c] %vm1062, %v1061
  %s1067 = scalar_lea.vmem %s1, 632
  %1068 = vst.msk [vmem:[%s1067] ss:$-63 sm:$0xc0] %vm1062, %v1061
  %s1069 = scalar_lea.vmem %s0, 38
  %s1070 = smov 3
  %v1071 = vld [vmem:[%s1069] ss:$25 sm:%s1070]
  %s1072 = scalar_lea.vmem %s0, 70
  %v1073 = vld [vmem:[%s1072] ss:$-7 sm:$0x3c]
  %vm1074 = vcmask 1045506
  %v1075 = vsel %vm1074, %v1073, %v1071
  %s1076 = scalar_lea.vmem %s0, 102
  %s1077 = smov 192
  %v1078 = vld [vmem:[%s1076] ss:$-7 sm:%s1077]
  %vm1079 = vcmask 1047558
  %v1080 = vsel %vm1079, %v1078, %v1075
  %1081 = vrot.lane.b32.xlu0 %v1080, 120
  %v1082 = vpop.permute.xlu0 %1081
  %vm1083 = vcmask 31744
  %s1084 = scalar_lea.vmem %s1, 344
  %1085 = vst.msk [vmem:[%s1084] ss:$225 sm:$0x3] %vm1083, %v1082
  %s1086 = scalar_lea.vmem %s1, 632
  %1087 = vst.msk [vmem:[%s1086] ss:$-63 sm:$0x3c] %vm1083, %v1082
  %s1088 = scalar_lea.vmem %s1, 920
  %1089 = vst.msk [vmem:[%s1088] ss:$-63 sm:$0xc0] %vm1083, %v1082
  %s1090 = scalar_lea.vmem %s0, 70
  %s1091 = smov 3
  %v1092 = vld [vmem:[%s1090] ss:$25 sm:%s1091]
  %s1093 = scalar_lea.vmem %s0, 102
  %v1094 = vld [vmem:[%s1093] ss:$-7 sm:$0x3c]
  %vm1095 = vcmask 1045506
  %v1096 = vsel %vm1095, %v1094, %v1092
  %s1097 = scalar_lea.vmem %s0, 134
  %s1098 = smov 192
  %v1099 = vld [vmem:[%s1097] ss:$-7 sm:%s1098]
  %vm1100 = vcmask 1047558
  %v1101 = vsel %vm1100, %v1099, %v1096
  %1102 = vrot.lane.b32.xlu0 %v1101, 120
  %v1103 = vpop.permute.xlu0 %1102
  %vm1104 = vcmask 31744
  %s1105 = scalar_lea.vmem %s1, 632
  %1106 = vst.msk [vmem:[%s1105] ss:$225 sm:$0x3] %vm1104, %v1103
  %s1107 = scalar_lea.vmem %s1, 920
  %1108 = vst.msk [vmem:[%s1107] ss:$-63 sm:$0x3c] %vm1104, %v1103
  %s1109 = scalar_lea.vmem %s1, 1208
  %1110 = vst.msk [vmem:[%s1109] ss:$-63 sm:$0xc0] %vm1104, %v1103
  %s1111 = scalar_lea.vmem %s0, 102
  %s1112 = smov 3
  %v1113 = vld [vmem:[%s1111] ss:$25 sm:%s1112]
  %s1114 = scalar_lea.vmem %s0, 134
  %v1115 = vld [vmem:[%s1114] ss:$-7 sm:$0x3c]
  %vm1116 = vcmask 1045506
  %v1117 = vsel %vm1116, %v1115, %v1113
  %s1118 = scalar_lea.vmem %s0, 166
  %s1119 = smov 192
  %v1120 = vld [vmem:[%s1118] ss:$-7 sm:%s1119]
  %vm1121 = vcmask 1047558
  %v1122 = vsel %vm1121, %v1120, %v1117
  %1123 = vrot.lane.b32.xlu0 %v1122, 120
  %v1124 = vpop.permute.xlu0 %1123
  %vm1125 = vcmask 31744
  %s1126 = scalar_lea.vmem %s1, 920
  %1127 = vst.msk [vmem:[%s1126] ss:$225 sm:$0x3] %vm1125, %v1124
  %s1128 = scalar_lea.vmem %s1, 1208
  %1129 = vst.msk [vmem:[%s1128] ss:$-63 sm:$0x3c] %vm1125, %v1124
  %s1130 = scalar_lea.vmem %s1, 1496
  %1131 = vst.msk [vmem:[%s1130] ss:$-63 sm:$0xc0] %vm1125, %v1124
  %s1132 = scalar_lea.vmem %s0, 134
  %s1133 = smov 3
  %v1134 = vld [vmem:[%s1132] ss:$25 sm:%s1133]
  %s1135 = scalar_lea.vmem %s0, 166
  %v1136 = vld [vmem:[%s1135] ss:$-7 sm:$0x3c]
  %vm1137 = vcmask 1045506
  %v1138 = vsel %vm1137, %v1136, %v1134
  %s1139 = scalar_lea.vmem %s0, 198
  %s1140 = smov 192
  %v1141 = vld [vmem:[%s1139] ss:$-7 sm:%s1140]
  %vm1142 = vcmask 1047558
  %v1143 = vsel %vm1142, %v1141, %v1138
  %1144 = vrot.lane.b32.xlu0 %v1143, 120
  %v1145 = vpop.permute.xlu0 %1144
  %vm1146 = vcmask 31744
  %s1147 = scalar_lea.vmem %s1, 1208
  %1148 = vst.msk [vmem:[%s1147] ss:$225 sm:$0x3] %vm1146, %v1145
  %s1149 = scalar_lea.vmem %s1, 1496
  %1150 = vst.msk [vmem:[%s1149] ss:$-63 sm:$0x3c] %vm1146, %v1145
  %s1151 = scalar_lea.vmem %s1, 1784
  %1152 = vst.msk [vmem:[%s1151] ss:$-63 sm:$0xc0] %vm1146, %v1145
  %s1153 = scalar_lea.vmem %s0, 166
  %s1154 = smov 3
  %v1155 = vld [vmem:[%s1153] ss:$25 sm:%s1154]
  %s1156 = scalar_lea.vmem %s0, 198
  %v1157 = vld [vmem:[%s1156] ss:$-7 sm:$0x3c]
  %vm1158 = vcmask 1045506
  %v1159 = vsel %vm1158, %v1157, %v1155
  %s1160 = scalar_lea.vmem %s0, 230
  %s1161 = smov 192
  %v1162 = vld [vmem:[%s1160] ss:$-7 sm:%s1161]
  %vm1163 = vcmask 1047558
  %v1164 = vsel %vm1163, %v1162, %v1159
  %1165 = vrot.lane.b32.xlu0 %v1164, 120
  %v1166 = vpop.permute.xlu0 %1165
  %vm1167 = vcmask 31744
  %s1168 = scalar_lea.vmem %s1, 1496
  %1169 = vst.msk [vmem:[%s1168] ss:$225 sm:$0x3] %vm1167, %v1166
  %s1170 = scalar_lea.vmem %s1, 1784
  %1171 = vst.msk [vmem:[%s1170] ss:$-63 sm:$0x3c] %vm1167, %v1166
  %s1172 = scalar_lea.vmem %s1, 2072
  %1173 = vst.msk [vmem:[%s1172] ss:$-63 sm:$0xc0] %vm1167, %v1166
  %s1174 = scalar_lea.vmem %s0, 198
  %s1175 = smov 3
  %v1176 = vld [vmem:[%s1174] ss:$25 sm:%s1175]
  %s1177 = scalar_lea.vmem %s0, 230
  %v1178 = vld [vmem:[%s1177] ss:$-7 sm:$0x3c]
  %vm1179 = vcmask 1045506
  %v1180 = vsel %vm1179, %v1178, %v1176
  %s1181 = scalar_lea.vmem %s0, 262
  %s1182 = smov 192
  %v1183 = vld [vmem:[%s1181] ss:$-7 sm:%s1182]
  %vm1184 = vcmask 1047558
  %v1185 = vsel %vm1184, %v1183, %v1180
  %1186 = vrot.lane.b32.xlu0 %v1185, 120
  %v1187 = vpop.permute.xlu0 %1186
  %vm1188 = vcmask 31744
  %s1189 = scalar_lea.vmem %s1, 1784
  %1190 = vst.msk [vmem:[%s1189] ss:$225 sm:$0x3] %vm1188, %v1187
  %s1191 = scalar_lea.vmem %s1, 2072
  %1192 = vst.msk [vmem:[%s1191] ss:$-63 sm:$0x3c] %vm1188, %v1187
  %s1193 = scalar_lea.vmem %s1, 2360
  %1194 = vst.msk [vmem:[%s1193] ss:$-63 sm:$0xc0] %vm1188, %v1187
  %s1195 = scalar_lea.vmem %s0, 230
  %s1196 = smov 3
  %v1197 = vld [vmem:[%s1195] ss:$25 sm:%s1196]
  %s1198 = scalar_lea.vmem %s0, 262
  %v1199 = vld [vmem:[%s1198] ss:$-7 sm:$0x3c]
  %vm1200 = vcmask 1045506
  %v1201 = vsel %vm1200, %v1199, %v1197
  %s1202 = scalar_lea.vmem %s0, 294
  %s1203 = smov 192
  %v1204 = vld [vmem:[%s1202] ss:$-7 sm:%s1203]
  %vm1205 = vcmask 1047558
  %v1206 = vsel %vm1205, %v1204, %v1201
  %1207 = vrot.lane.b32.xlu0 %v1206, 120
  %v1208 = vpop.permute.xlu0 %1207
  %vm1209 = vcmask 31744
  %s1210 = scalar_lea.vmem %s1, 2072
  %1211 = vst.msk [vmem:[%s1210] ss:$225 sm:$0x3] %vm1209, %v1208
  %s1212 = scalar_lea.vmem %s1, 2360
  %1213 = vst.msk [vmem:[%s1212] ss:$-63 sm:$0x3c] %vm1209, %v1208
  %s1214 = scalar_lea.vmem %s1, 2648
  %1215 = vst.msk [vmem:[%s1214] ss:$-63 sm:$0xc0] %vm1209, %v1208
  %s1216 = scalar_lea.vmem %s0, 21
  %v1217 = vld [vmem:[%s1216] ss:$-7 sm:$0xf]
  %s1218 = scalar_lea.vmem %s0, 53
  %v1219 = vld [vmem:[%s1218] ss:$-7 sm:$0xf0]
  %vm1220 = vcmask 1047556
  %v1221 = vsel %vm1220, %v1219, %v1217
  %1222 = vrot.lane.b32.xlu0 %v1221, 116
  %v1223 = vpop.permute.xlu0 %1222
  %vm1224 = vcmask 31744
  %s1225 = scalar_lea.vmem %s1, 192
  %1226 = vst.msk [vmem:[%s1225] ss:$-63 sm:$0xf] %vm1224, %v1223
  %s1227 = scalar_lea.vmem %s1, 480
  %1228 = vst.msk [vmem:[%s1227] ss:$-63 sm:$0xf0] %vm1224, %v1223
  %s1229 = scalar_lea.vmem %s0, 53
  %v1230 = vld [vmem:[%s1229] ss:$-7 sm:$0xf]
  %s1231 = scalar_lea.vmem %s0, 85
  %v1232 = vld [vmem:[%s1231] ss:$-7 sm:$0xf0]
  %vm1233 = vcmask 1047556
  %v1234 = vsel %vm1233, %v1232, %v1230
  %1235 = vrot.lane.b32.xlu0 %v1234, 116
  %v1236 = vpop.permute.xlu0 %1235
  %vm1237 = vcmask 31744
  %s1238 = scalar_lea.vmem %s1, 480
  %1239 = vst.msk [vmem:[%s1238] ss:$-63 sm:$0xf] %vm1237, %v1236
  %s1240 = scalar_lea.vmem %s1, 768
  %1241 = vst.msk [vmem:[%s1240] ss:$-63 sm:$0xf0] %vm1237, %v1236
  %s1242 = scalar_lea.vmem %s0, 85
  %v1243 = vld [vmem:[%s1242] ss:$-7 sm:$0xf]
  %s1244 = scalar_lea.vmem %s0, 117
  %v1245 = vld [vmem:[%s1244] ss:$-7 sm:$0xf0]
  %vm1246 = vcmask 1047556
  %v1247 = vsel %vm1246, %v1245, %v1243
  %1248 = vrot.lane.b32.xlu0 %v1247, 116
  %v1249 = vpop.permute.xlu0 %1248
  %vm1250 = vcmask 31744
  %s1251 = scalar_lea.vmem %s1, 768
  %1252 = vst.msk [vmem:[%s1251] ss:$-63 sm:$0xf] %vm1250, %v1249
  %s1253 = scalar_lea.vmem %s1, 1056
  %1254 = vst.msk [vmem:[%s1253] ss:$-63 sm:$0xf0] %vm1250, %v1249
  %s1255 = scalar_lea.vmem %s0, 117
  %v1256 = vld [vmem:[%s1255] ss:$-7 sm:$0xf]
  %s1257 = scalar_lea.vmem %s0, 149
  %v1258 = vld [vmem:[%s1257] ss:$-7 sm:$0xf0]
  %vm1259 = vcmask 1047556
  %v1260 = vsel %vm1259, %v1258, %v1256
  %1261 = vrot.lane.b32.xlu0 %v1260, 116
  %v1262 = vpop.permute.xlu0 %1261
  %vm1263 = vcmask 31744
  %s1264 = scalar_lea.vmem %s1, 1056
  %1265 = vst.msk [vmem:[%s1264] ss:$-63 sm:$0xf] %vm1263, %v1262
  %s1266 = scalar_lea.vmem %s1, 1344
  %1267 = vst.msk [vmem:[%s1266] ss:$-63 sm:$0xf0] %vm1263, %v1262
  %s1268 = scalar_lea.vmem %s0, 149
  %v1269 = vld [vmem:[%s1268] ss:$-7 sm:$0xf]
  %s1270 = scalar_lea.vmem %s0, 181
  %v1271 = vld [vmem:[%s1270] ss:$-7 sm:$0xf0]
  %vm1272 = vcmask 1047556
  %v1273 = vsel %vm1272, %v1271, %v1269
  %1274 = vrot.lane.b32.xlu0 %v1273, 116
  %v1275 = vpop.permute.xlu0 %1274
  %vm1276 = vcmask 31744
  %s1277 = scalar_lea.vmem %s1, 1344
  %1278 = vst.msk [vmem:[%s1277] ss:$-63 sm:$0xf] %vm1276, %v1275
  %s1279 = scalar_lea.vmem %s1, 1632
  %1280 = vst.msk [vmem:[%s1279] ss:$-63 sm:$0xf0] %vm1276, %v1275
  %s1281 = scalar_lea.vmem %s0, 181
  %v1282 = vld [vmem:[%s1281] ss:$-7 sm:$0xf]
  %s1283 = scalar_lea.vmem %s0, 213
  %v1284 = vld [vmem:[%s1283] ss:$-7 sm:$0xf0]
  %vm1285 = vcmask 1047556
  %v1286 = vsel %vm1285, %v1284, %v1282
  %1287 = vrot.lane.b32.xlu0 %v1286, 116
  %v1288 = vpop.permute.xlu0 %1287
  %vm1289 = vcmask 31744
  %s1290 = scalar_lea.vmem %s1, 1632
  %1291 = vst.msk [vmem:[%s1290] ss:$-63 sm:$0xf] %vm1289, %v1288
  %s1292 = scalar_lea.vmem %s1, 1920
  %1293 = vst.msk [vmem:[%s1292] ss:$-63 sm:$0xf0] %vm1289, %v1288
  %s1294 = scalar_lea.vmem %s0, 213
  %v1295 = vld [vmem:[%s1294] ss:$-7 sm:$0xf]
  %s1296 = scalar_lea.vmem %s0, 245
  %v1297 = vld [vmem:[%s1296] ss:$-7 sm:$0xf0]
  %vm1298 = vcmask 1047556
  %v1299 = vsel %vm1298, %v1297, %v1295
  %1300 = vrot.lane.b32.xlu0 %v1299, 116
  %v1301 = vpop.permute.xlu0 %1300
  %vm1302 = vcmask 31744
  %s1303 = scalar_lea.vmem %s1, 1920
  %1304 = vst.msk [vmem:[%s1303] ss:$-63 sm:$0xf] %vm1302, %v1301
  %s1305 = scalar_lea.vmem %s1, 2208
  %1306 = vst.msk [vmem:[%s1305] ss:$-63 sm:$0xf0] %vm1302, %v1301
  %s1307 = scalar_lea.vmem %s0, 245
  %v1308 = vld [vmem:[%s1307] ss:$-7 sm:$0xf]
  %s1309 = scalar_lea.vmem %s0, 277
  %v1310 = vld [vmem:[%s1309] ss:$-7 sm:$0xf0]
  %vm1311 = vcmask 1047556
  %v1312 = vsel %vm1311, %v1310, %v1308
  %1313 = vrot.lane.b32.xlu0 %v1312, 116
  %v1314 = vpop.permute.xlu0 %1313
  %vm1315 = vcmask 31744
  %s1316 = scalar_lea.vmem %s1, 2208
  %1317 = vst.msk [vmem:[%s1316] ss:$-63 sm:$0xf] %vm1315, %v1314
  %s1318 = scalar_lea.vmem %s1, 2496
  %1319 = vst.msk [vmem:[%s1318] ss:$-63 sm:$0xf0] %vm1315, %v1314
  %s1320 = scalar_lea.vmem %s0, 29
  %v1321 = vld [vmem:[%s1320] ss:$-7 sm:$0x1f]
  %s1322 = scalar_lea.vmem %s0, 61
  %v1323 = vld [vmem:[%s1322] ss:$-7 sm:$0xe0]
  %vm1324 = vcmask 1047557
  %v1325 = vsel %vm1324, %v1323, %v1321
  %1326 = vrot.lane.b32.xlu0 %v1325, 116
  %v1327 = vpop.permute.xlu0 %1326
  %vm1328 = vcmask 31744
  %s1329 = scalar_lea.vmem %s1, 264
  %1330 = vst.msk [vmem:[%s1329] ss:$-63 sm:$0x1f] %vm1328, %v1327
  %s1331 = scalar_lea.vmem %s1, 552
  %1332 = vst.msk [vmem:[%s1331] ss:$-63 sm:$0xe0] %vm1328, %v1327
  %s1333 = scalar_lea.vmem %s0, 61
  %v1334 = vld [vmem:[%s1333] ss:$-7 sm:$0x1f]
  %s1335 = scalar_lea.vmem %s0, 93
  %v1336 = vld [vmem:[%s1335] ss:$-7 sm:$0xe0]
  %vm1337 = vcmask 1047557
  %v1338 = vsel %vm1337, %v1336, %v1334
  %1339 = vrot.lane.b32.xlu0 %v1338, 116
  %v1340 = vpop.permute.xlu0 %1339
  %vm1341 = vcmask 31744
  %s1342 = scalar_lea.vmem %s1, 552
  %1343 = vst.msk [vmem:[%s1342] ss:$-63 sm:$0x1f] %vm1341, %v1340
  %s1344 = scalar_lea.vmem %s1, 840
  %1345 = vst.msk [vmem:[%s1344] ss:$-63 sm:$0xe0] %vm1341, %v1340
  %s1346 = scalar_lea.vmem %s0, 93
  %v1347 = vld [vmem:[%s1346] ss:$-7 sm:$0x1f]
  %s1348 = scalar_lea.vmem %s0, 125
  %v1349 = vld [vmem:[%s1348] ss:$-7 sm:$0xe0]
  %vm1350 = vcmask 1047557
  %v1351 = vsel %vm1350, %v1349, %v1347
  %1352 = vrot.lane.b32.xlu0 %v1351, 116
  %v1353 = vpop.permute.xlu0 %1352
  %vm1354 = vcmask 31744
  %s1355 = scalar_lea.vmem %s1, 840
  %1356 = vst.msk [vmem:[%s1355] ss:$-63 sm:$0x1f] %vm1354, %v1353
  %s1357 = scalar_lea.vmem %s1, 1128
  %1358 = vst.msk [vmem:[%s1357] ss:$-63 sm:$0xe0] %vm1354, %v1353
  %s1359 = scalar_lea.vmem %s0, 125
  %v1360 = vld [vmem:[%s1359] ss:$-7 sm:$0x1f]
  %s1361 = scalar_lea.vmem %s0, 157
  %v1362 = vld [vmem:[%s1361] ss:$-7 sm:$0xe0]
  %vm1363 = vcmask 1047557
  %v1364 = vsel %vm1363, %v1362, %v1360
  %1365 = vrot.lane.b32.xlu0 %v1364, 116
  %v1366 = vpop.permute.xlu0 %1365
  %vm1367 = vcmask 31744
  %s1368 = scalar_lea.vmem %s1, 1128
  %1369 = vst.msk [vmem:[%s1368] ss:$-63 sm:$0x1f] %vm1367, %v1366
  %s1370 = scalar_lea.vmem %s1, 1416
  %1371 = vst.msk [vmem:[%s1370] ss:$-63 sm:$0xe0] %vm1367, %v1366
  %s1372 = scalar_lea.vmem %s0, 157
  %v1373 = vld [vmem:[%s1372] ss:$-7 sm:$0x1f]
  %s1374 = scalar_lea.vmem %s0, 189
  %v1375 = vld [vmem:[%s1374] ss:$-7 sm:$0xe0]
  %vm1376 = vcmask 1047557
  %v1377 = vsel %vm1376, %v1375, %v1373
  %1378 = vrot.lane.b32.xlu0 %v1377, 116
  %v1379 = vpop.permute.xlu0 %1378
  %vm1380 = vcmask 31744
  %s1381 = scalar_lea.vmem %s1, 1416
  %1382 = vst.msk [vmem:[%s1381] ss:$-63 sm:$0x1f] %vm1380, %v1379
  %s1383 = scalar_lea.vmem %s1, 1704
  %1384 = vst.msk [vmem:[%s1383] ss:$-63 sm:$0xe0] %vm1380, %v1379
  %s1385 = scalar_lea.vmem %s0, 189
  %v1386 = vld [vmem:[%s1385] ss:$-7 sm:$0x1f]
  %s1387 = scalar_lea.vmem %s0, 221
  %v1388 = vld [vmem:[%s1387] ss:$-7 sm:$0xe0]
  %vm1389 = vcmask 1047557
  %v1390 = vsel %vm1389, %v1388, %v1386
  %1391 = vrot.lane.b32.xlu0 %v1390, 116
  %v1392 = vpop.permute.xlu0 %1391
  %vm1393 = vcmask 31744
  %s1394 = scalar_lea.vmem %s1, 1704
  %1395 = vst.msk [vmem:[%s1394] ss:$-63 sm:$0x1f] %vm1393, %v1392
  %s1396 = scalar_lea.vmem %s1, 1992
  %1397 = vst.msk [vmem:[%s1396] ss:$-63 sm:$0xe0] %vm1393, %v1392
  %s1398 = scalar_lea.vmem %s0, 221
  %v1399 = vld [vmem:[%s1398] ss:$-7 sm:$0x1f]
  %s1400 = scalar_lea.vmem %s0, 253
  %v1401 = vld [vmem:[%s1400] ss:$-7 sm:$0xe0]
  %vm1402 = vcmask 1047557
  %v1403 = vsel %vm1402, %v1401, %v1399
  %1404 = vrot.lane.b32.xlu0 %v1403, 116
  %v1405 = vpop.permute.xlu0 %1404
  %vm1406 = vcmask 31744
  %s1407 = scalar_lea.vmem %s1, 1992
  %1408 = vst.msk [vmem:[%s1407] ss:$-63 sm:$0x1f] %vm1406, %v1405
  %s1409 = scalar_lea.vmem %s1, 2280
  %1410 = vst.msk [vmem:[%s1409] ss:$-63 sm:$0xe0] %vm1406, %v1405
  %s1411 = scalar_lea.vmem %s0, 253
  %v1412 = vld [vmem:[%s1411] ss:$-7 sm:$0x1f]
  %s1413 = scalar_lea.vmem %s0, 285
  %v1414 = vld [vmem:[%s1413] ss:$-7 sm:$0xe0]
  %vm1415 = vcmask 1047557
  %v1416 = vsel %vm1415, %v1414, %v1412
  %1417 = vrot.lane.b32.xlu0 %v1416, 116
  %v1418 = vpop.permute.xlu0 %1417
  %vm1419 = vcmask 31744
  %s1420 = scalar_lea.vmem %s1, 2280
  %1421 = vst.msk [vmem:[%s1420] ss:$-63 sm:$0x1f] %vm1419, %v1418
  %s1422 = scalar_lea.vmem %s1, 2568
  %1423 = vst.msk [vmem:[%s1422] ss:$-63 sm:$0xe0] %vm1419, %v1418
  %s1424 = scalar_lea.vmem %s0, 5
  %s1425 = smov 3
  %v1426 = vld [vmem:[%s1424] ss:$25 sm:%s1425]
  %s1427 = scalar_lea.vmem %s0, 37
  %v1428 = vld [vmem:[%s1427] ss:$-7 sm:$0x3c]
  %vm1429 = vcmask 1045506
  %v1430 = vsel %vm1429, %v1428, %v1426
  %s1431 = scalar_lea.vmem %s0, 69
  %s1432 = smov 192
  %v1433 = vld [vmem:[%s1431] ss:$-7 sm:%s1432]
  %vm1434 = vcmask 1047558
  %v1435 = vsel %vm1434, %v1433, %v1430
  %1436 = vrot.lane.b32.xlu0 %v1435, 116
  %v1437 = vpop.permute.xlu0 %1436
  %vm1438 = vcmask 31744
  %s1439 = scalar_lea.vmem %s1, 48
  %1440 = vst.msk [vmem:[%s1439] ss:$225 sm:$0x3] %vm1438, %v1437
  %s1441 = scalar_lea.vmem %s1, 336
  %1442 = vst.msk [vmem:[%s1441] ss:$-63 sm:$0x3c] %vm1438, %v1437
  %s1443 = scalar_lea.vmem %s1, 624
  %1444 = vst.msk [vmem:[%s1443] ss:$-63 sm:$0xc0] %vm1438, %v1437
  %s1445 = scalar_lea.vmem %s0, 37
  %s1446 = smov 3
  %v1447 = vld [vmem:[%s1445] ss:$25 sm:%s1446]
  %s1448 = scalar_lea.vmem %s0, 69
  %v1449 = vld [vmem:[%s1448] ss:$-7 sm:$0x3c]
  %vm1450 = vcmask 1045506
  %v1451 = vsel %vm1450, %v1449, %v1447
  %s1452 = scalar_lea.vmem %s0, 101
  %s1453 = smov 192
  %v1454 = vld [vmem:[%s1452] ss:$-7 sm:%s1453]
  %vm1455 = vcmask 1047558
  %v1456 = vsel %vm1455, %v1454, %v1451
  %1457 = vrot.lane.b32.xlu0 %v1456, 116
  %v1458 = vpop.permute.xlu0 %1457
  %vm1459 = vcmask 31744
  %s1460 = scalar_lea.vmem %s1, 336
  %1461 = vst.msk [vmem:[%s1460] ss:$225 sm:$0x3] %vm1459, %v1458
  %s1462 = scalar_lea.vmem %s1, 624
  %1463 = vst.msk [vmem:[%s1462] ss:$-63 sm:$0x3c] %vm1459, %v1458
  %s1464 = scalar_lea.vmem %s1, 912
  %1465 = vst.msk [vmem:[%s1464] ss:$-63 sm:$0xc0] %vm1459, %v1458
  %s1466 = scalar_lea.vmem %s0, 69
  %s1467 = smov 3
  %v1468 = vld [vmem:[%s1466] ss:$25 sm:%s1467]
  %s1469 = scalar_lea.vmem %s0, 101
  %v1470 = vld [vmem:[%s1469] ss:$-7 sm:$0x3c]
  %vm1471 = vcmask 1045506
  %v1472 = vsel %vm1471, %v1470, %v1468
  %s1473 = scalar_lea.vmem %s0, 133
  %s1474 = smov 192
  %v1475 = vld [vmem:[%s1473] ss:$-7 sm:%s1474]
  %vm1476 = vcmask 1047558
  %v1477 = vsel %vm1476, %v1475, %v1472
  %1478 = vrot.lane.b32.xlu0 %v1477, 116
  %v1479 = vpop.permute.xlu0 %1478
  %vm1480 = vcmask 31744
  %s1481 = scalar_lea.vmem %s1, 624
  %1482 = vst.msk [vmem:[%s1481] ss:$225 sm:$0x3] %vm1480, %v1479
  %s1483 = scalar_lea.vmem %s1, 912
  %1484 = vst.msk [vmem:[%s1483] ss:$-63 sm:$0x3c] %vm1480, %v1479
  %s1485 = scalar_lea.vmem %s1, 1200
  %1486 = vst.msk [vmem:[%s1485] ss:$-63 sm:$0xc0] %vm1480, %v1479
  %s1487 = scalar_lea.vmem %s0, 101
  %s1488 = smov 3
  %v1489 = vld [vmem:[%s1487] ss:$25 sm:%s1488]
  %s1490 = scalar_lea.vmem %s0, 133
  %v1491 = vld [vmem:[%s1490] ss:$-7 sm:$0x3c]
  %vm1492 = vcmask 1045506
  %v1493 = vsel %vm1492, %v1491, %v1489
  %s1494 = scalar_lea.vmem %s0, 165
  %s1495 = smov 192
  %v1496 = vld [vmem:[%s1494] ss:$-7 sm:%s1495]
  %vm1497 = vcmask 1047558
  %v1498 = vsel %vm1497, %v1496, %v1493
  %1499 = vrot.lane.b32.xlu0 %v1498, 116
  %v1500 = vpop.permute.xlu0 %1499
  %vm1501 = vcmask 31744
  %s1502 = scalar_lea.vmem %s1, 912
  %1503 = vst.msk [vmem:[%s1502] ss:$225 sm:$0x3] %vm1501, %v1500
  %s1504 = scalar_lea.vmem %s1, 1200
  %1505 = vst.msk [vmem:[%s1504] ss:$-63 sm:$0x3c] %vm1501, %v1500
  %s1506 = scalar_lea.vmem %s1, 1488
  %1507 = vst.msk [vmem:[%s1506] ss:$-63 sm:$0xc0] %vm1501, %v1500
  %s1508 = scalar_lea.vmem %s0, 133
  %s1509 = smov 3
  %v1510 = vld [vmem:[%s1508] ss:$25 sm:%s1509]
  %s1511 = scalar_lea.vmem %s0, 165
  %v1512 = vld [vmem:[%s1511] ss:$-7 sm:$0x3c]
  %vm1513 = vcmask 1045506
  %v1514 = vsel %vm1513, %v1512, %v1510
  %s1515 = scalar_lea.vmem %s0, 197
  %s1516 = smov 192
  %v1517 = vld [vmem:[%s1515] ss:$-7 sm:%s1516]
  %vm1518 = vcmask 1047558
  %v1519 = vsel %vm1518, %v1517, %v1514
  %1520 = vrot.lane.b32.xlu0 %v1519, 116
  %v1521 = vpop.permute.xlu0 %1520
  %vm1522 = vcmask 31744
  %s1523 = scalar_lea.vmem %s1, 1200
  %1524 = vst.msk [vmem:[%s1523] ss:$225 sm:$0x3] %vm1522, %v1521
  %s1525 = scalar_lea.vmem %s1, 1488
  %1526 = vst.msk [vmem:[%s1525] ss:$-63 sm:$0x3c] %vm1522, %v1521
  %s1527 = scalar_lea.vmem %s1, 1776
  %1528 = vst.msk [vmem:[%s1527] ss:$-63 sm:$0xc0] %vm1522, %v1521
  %s1529 = scalar_lea.vmem %s0, 165
  %s1530 = smov 3
  %v1531 = vld [vmem:[%s1529] ss:$25 sm:%s1530]
  %s1532 = scalar_lea.vmem %s0, 197
  %v1533 = vld [vmem:[%s1532] ss:$-7 sm:$0x3c]
  %vm1534 = vcmask 1045506
  %v1535 = vsel %vm1534, %v1533, %v1531
  %s1536 = scalar_lea.vmem %s0, 229
  %s1537 = smov 192
  %v1538 = vld [vmem:[%s1536] ss:$-7 sm:%s1537]
  %vm1539 = vcmask 1047558
  %v1540 = vsel %vm1539, %v1538, %v1535
  %1541 = vrot.lane.b32.xlu0 %v1540, 116
  %v1542 = vpop.permute.xlu0 %1541
  %vm1543 = vcmask 31744
  %s1544 = scalar_lea.vmem %s1, 1488
  %1545 = vst.msk [vmem:[%s1544] ss:$225 sm:$0x3] %vm1543, %v1542
  %s1546 = scalar_lea.vmem %s1, 1776
  %1547 = vst.msk [vmem:[%s1546] ss:$-63 sm:$0x3c] %vm1543, %v1542
  %s1548 = scalar_lea.vmem %s1, 2064
  %1549 = vst.msk [vmem:[%s1548] ss:$-63 sm:$0xc0] %vm1543, %v1542
  %s1550 = scalar_lea.vmem %s0, 197
  %s1551 = smov 3
  %v1552 = vld [vmem:[%s1550] ss:$25 sm:%s1551]
  %s1553 = scalar_lea.vmem %s0, 229
  %v1554 = vld [vmem:[%s1553] ss:$-7 sm:$0x3c]
  %vm1555 = vcmask 1045506
  %v1556 = vsel %vm1555, %v1554, %v1552
  %s1557 = scalar_lea.vmem %s0, 261
  %s1558 = smov 192
  %v1559 = vld [vmem:[%s1557] ss:$-7 sm:%s1558]
  %vm1560 = vcmask 1047558
  %v1561 = vsel %vm1560, %v1559, %v1556
  %1562 = vrot.lane.b32.xlu0 %v1561, 116
  %v1563 = vpop.permute.xlu0 %1562
  %vm1564 = vcmask 31744
  %s1565 = scalar_lea.vmem %s1, 1776
  %1566 = vst.msk [vmem:[%s1565] ss:$225 sm:$0x3] %vm1564, %v1563
  %s1567 = scalar_lea.vmem %s1, 2064
  %1568 = vst.msk [vmem:[%s1567] ss:$-63 sm:$0x3c] %vm1564, %v1563
  %s1569 = scalar_lea.vmem %s1, 2352
  %1570 = vst.msk [vmem:[%s1569] ss:$-63 sm:$0xc0] %vm1564, %v1563
  %s1571 = scalar_lea.vmem %s0, 229
  %s1572 = smov 3
  %v1573 = vld [vmem:[%s1571] ss:$25 sm:%s1572]
  %s1574 = scalar_lea.vmem %s0, 261
  %v1575 = vld [vmem:[%s1574] ss:$-7 sm:$0x3c]
  %vm1576 = vcmask 1045506
  %v1577 = vsel %vm1576, %v1575, %v1573
  %s1578 = scalar_lea.vmem %s0, 293
  %s1579 = smov 192
  %v1580 = vld [vmem:[%s1578] ss:$-7 sm:%s1579]
  %vm1581 = vcmask 1047558
  %v1582 = vsel %vm1581, %v1580, %v1577
  %1583 = vrot.lane.b32.xlu0 %v1582, 116
  %v1584 = vpop.permute.xlu0 %1583
  %vm1585 = vcmask 31744
  %s1586 = scalar_lea.vmem %s1, 2064
  %1587 = vst.msk [vmem:[%s1586] ss:$225 sm:$0x3] %vm1585, %v1584
  %s1588 = scalar_lea.vmem %s1, 2352
  %1589 = vst.msk [vmem:[%s1588] ss:$-63 sm:$0x3c] %vm1585, %v1584
  %s1590 = scalar_lea.vmem %s1, 2640
  %1591 = vst.msk [vmem:[%s1590] ss:$-63 sm:$0xc0] %vm1585, %v1584
  %s1592 = scalar_lea.vmem %s0, 13
  %s1593 = smov 3
  %v1594 = vld [vmem:[%s1592] ss:$-7 sm:%s1593]
  %s1595 = scalar_lea.vmem %s0, 45
  %v1596 = vld [vmem:[%s1595] ss:$-7 sm:$0x7c]
  %vm1597 = vcmask 1046530
  %v1598 = vsel %vm1597, %v1596, %v1594
  %s1599 = scalar_lea.vmem %s0, 21
  %v1600 = vld [vmem:[%s1599] sm:$0x80]
  %vm1601 = vcmask 1047559
  %v1602 = vsel %vm1601, %v1600, %v1598
  %1603 = vrot.lane.b32.xlu0 %v1602, 116
  %v1604 = vpop.permute.xlu0 %1603
  %vm1605 = vcmask 31744
  %s1606 = scalar_lea.vmem %s1, 120
  %1607 = vst.msk [vmem:[%s1606] ss:$-63 sm:$0x3] %vm1605, %v1604
  %s1608 = scalar_lea.vmem %s1, 408
  %1609 = vst.msk [vmem:[%s1608] ss:$-63 sm:$0x7c] %vm1605, %v1604
  %s1610 = scalar_lea.vmem %s1, 248
  %1611 = vst.msk [vmem:[%s1610] sm:$0x80] %vm1605, %v1604
  %s1612 = scalar_lea.vmem %s0, 45
  %s1613 = smov 3
  %v1614 = vld [vmem:[%s1612] ss:$-7 sm:%s1613]
  %s1615 = scalar_lea.vmem %s0, 77
  %v1616 = vld [vmem:[%s1615] ss:$-7 sm:$0x7c]
  %vm1617 = vcmask 1046530
  %v1618 = vsel %vm1617, %v1616, %v1614
  %s1619 = scalar_lea.vmem %s0, 53
  %v1620 = vld [vmem:[%s1619] sm:$0x80]
  %vm1621 = vcmask 1047559
  %v1622 = vsel %vm1621, %v1620, %v1618
  %1623 = vrot.lane.b32.xlu0 %v1622, 116
  %v1624 = vpop.permute.xlu0 %1623
  %vm1625 = vcmask 31744
  %s1626 = scalar_lea.vmem %s1, 408
  %1627 = vst.msk [vmem:[%s1626] ss:$-63 sm:$0x3] %vm1625, %v1624
  %s1628 = scalar_lea.vmem %s1, 696
  %1629 = vst.msk [vmem:[%s1628] ss:$-63 sm:$0x7c] %vm1625, %v1624
  %s1630 = scalar_lea.vmem %s1, 536
  %1631 = vst.msk [vmem:[%s1630] sm:$0x80] %vm1625, %v1624
  %s1632 = scalar_lea.vmem %s0, 77
  %s1633 = smov 3
  %v1634 = vld [vmem:[%s1632] ss:$-7 sm:%s1633]
  %s1635 = scalar_lea.vmem %s0, 109
  %v1636 = vld [vmem:[%s1635] ss:$-7 sm:$0x7c]
  %vm1637 = vcmask 1046530
  %v1638 = vsel %vm1637, %v1636, %v1634
  %s1639 = scalar_lea.vmem %s0, 85
  %v1640 = vld [vmem:[%s1639] sm:$0x80]
  %vm1641 = vcmask 1047559
  %v1642 = vsel %vm1641, %v1640, %v1638
  %1643 = vrot.lane.b32.xlu0 %v1642, 116
  %v1644 = vpop.permute.xlu0 %1643
  %vm1645 = vcmask 31744
  %s1646 = scalar_lea.vmem %s1, 696
  %1647 = vst.msk [vmem:[%s1646] ss:$-63 sm:$0x3] %vm1645, %v1644
  %s1648 = scalar_lea.vmem %s1, 984
  %1649 = vst.msk [vmem:[%s1648] ss:$-63 sm:$0x7c] %vm1645, %v1644
  %s1650 = scalar_lea.vmem %s1, 824
  %1651 = vst.msk [vmem:[%s1650] sm:$0x80] %vm1645, %v1644
  %s1652 = scalar_lea.vmem %s0, 109
  %s1653 = smov 3
  %v1654 = vld [vmem:[%s1652] ss:$-7 sm:%s1653]
  %s1655 = scalar_lea.vmem %s0, 141
  %v1656 = vld [vmem:[%s1655] ss:$-7 sm:$0x7c]
  %vm1657 = vcmask 1046530
  %v1658 = vsel %vm1657, %v1656, %v1654
  %s1659 = scalar_lea.vmem %s0, 117
  %v1660 = vld [vmem:[%s1659] sm:$0x80]
  %vm1661 = vcmask 1047559
  %v1662 = vsel %vm1661, %v1660, %v1658
  %1663 = vrot.lane.b32.xlu0 %v1662, 116
  %v1664 = vpop.permute.xlu0 %1663
  %vm1665 = vcmask 31744
  %s1666 = scalar_lea.vmem %s1, 984
  %1667 = vst.msk [vmem:[%s1666] ss:$-63 sm:$0x3] %vm1665, %v1664
  %s1668 = scalar_lea.vmem %s1, 1272
  %1669 = vst.msk [vmem:[%s1668] ss:$-63 sm:$0x7c] %vm1665, %v1664
  %s1670 = scalar_lea.vmem %s1, 1112
  %1671 = vst.msk [vmem:[%s1670] sm:$0x80] %vm1665, %v1664
  %s1672 = scalar_lea.vmem %s0, 141
  %s1673 = smov 3
  %v1674 = vld [vmem:[%s1672] ss:$-7 sm:%s1673]
  %s1675 = scalar_lea.vmem %s0, 173
  %v1676 = vld [vmem:[%s1675] ss:$-7 sm:$0x7c]
  %vm1677 = vcmask 1046530
  %v1678 = vsel %vm1677, %v1676, %v1674
  %s1679 = scalar_lea.vmem %s0, 149
  %v1680 = vld [vmem:[%s1679] sm:$0x80]
  %vm1681 = vcmask 1047559
  %v1682 = vsel %vm1681, %v1680, %v1678
  %1683 = vrot.lane.b32.xlu0 %v1682, 116
  %v1684 = vpop.permute.xlu0 %1683
  %vm1685 = vcmask 31744
  %s1686 = scalar_lea.vmem %s1, 1272
  %1687 = vst.msk [vmem:[%s1686] ss:$-63 sm:$0x3] %vm1685, %v1684
  %s1688 = scalar_lea.vmem %s1, 1560
  %1689 = vst.msk [vmem:[%s1688] ss:$-63 sm:$0x7c] %vm1685, %v1684
  %s1690 = scalar_lea.vmem %s1, 1400
  %1691 = vst.msk [vmem:[%s1690] sm:$0x80] %vm1685, %v1684
  %s1692 = scalar_lea.vmem %s0, 173
  %s1693 = smov 3
  %v1694 = vld [vmem:[%s1692] ss:$-7 sm:%s1693]
  %s1695 = scalar_lea.vmem %s0, 205
  %v1696 = vld [vmem:[%s1695] ss:$-7 sm:$0x7c]
  %vm1697 = vcmask 1046530
  %v1698 = vsel %vm1697, %v1696, %v1694
  %s1699 = scalar_lea.vmem %s0, 181
  %v1700 = vld [vmem:[%s1699] sm:$0x80]
  %vm1701 = vcmask 1047559
  %v1702 = vsel %vm1701, %v1700, %v1698
  %1703 = vrot.lane.b32.xlu0 %v1702, 116
  %v1704 = vpop.permute.xlu0 %1703
  %vm1705 = vcmask 31744
  %s1706 = scalar_lea.vmem %s1, 1560
  %1707 = vst.msk [vmem:[%s1706] ss:$-63 sm:$0x3] %vm1705, %v1704
  %s1708 = scalar_lea.vmem %s1, 1848
  %1709 = vst.msk [vmem:[%s1708] ss:$-63 sm:$0x7c] %vm1705, %v1704
  %s1710 = scalar_lea.vmem %s1, 1688
  %1711 = vst.msk [vmem:[%s1710] sm:$0x80] %vm1705, %v1704
  %s1712 = scalar_lea.vmem %s0, 205
  %s1713 = smov 3
  %v1714 = vld [vmem:[%s1712] ss:$-7 sm:%s1713]
  %s1715 = scalar_lea.vmem %s0, 237
  %v1716 = vld [vmem:[%s1715] ss:$-7 sm:$0x7c]
  %vm1717 = vcmask 1046530
  %v1718 = vsel %vm1717, %v1716, %v1714
  %s1719 = scalar_lea.vmem %s0, 213
  %v1720 = vld [vmem:[%s1719] sm:$0x80]
  %vm1721 = vcmask 1047559
  %v1722 = vsel %vm1721, %v1720, %v1718
  %1723 = vrot.lane.b32.xlu0 %v1722, 116
  %v1724 = vpop.permute.xlu0 %1723
  %vm1725 = vcmask 31744
  %s1726 = scalar_lea.vmem %s1, 1848
  %1727 = vst.msk [vmem:[%s1726] ss:$-63 sm:$0x3] %vm1725, %v1724
  %s1728 = scalar_lea.vmem %s1, 2136
  %1729 = vst.msk [vmem:[%s1728] ss:$-63 sm:$0x7c] %vm1725, %v1724
  %s1730 = scalar_lea.vmem %s1, 1976
  %1731 = vst.msk [vmem:[%s1730] sm:$0x80] %vm1725, %v1724
  %s1732 = scalar_lea.vmem %s0, 237
  %s1733 = smov 3
  %v1734 = vld [vmem:[%s1732] ss:$-7 sm:%s1733]
  %s1735 = scalar_lea.vmem %s0, 269
  %v1736 = vld [vmem:[%s1735] ss:$-7 sm:$0x7c]
  %vm1737 = vcmask 1046530
  %v1738 = vsel %vm1737, %v1736, %v1734
  %s1739 = scalar_lea.vmem %s0, 245
  %v1740 = vld [vmem:[%s1739] sm:$0x80]
  %vm1741 = vcmask 1047559
  %v1742 = vsel %vm1741, %v1740, %v1738
  %1743 = vrot.lane.b32.xlu0 %v1742, 116
  %v1744 = vpop.permute.xlu0 %1743
  %vm1745 = vcmask 31744
  %s1746 = scalar_lea.vmem %s1, 2136
  %1747 = vst.msk [vmem:[%s1746] ss:$-63 sm:$0x3] %vm1745, %v1744
  %s1748 = scalar_lea.vmem %s1, 2424
  %1749 = vst.msk [vmem:[%s1748] ss:$-63 sm:$0x7c] %vm1745, %v1744
  %s1750 = scalar_lea.vmem %s1, 2264
  %1751 = vst.msk [vmem:[%s1750] sm:$0x80] %vm1745, %v1744
  %s1752 = scalar_lea.vmem %s0, 28
  %v1753 = vld [vmem:[%s1752] ss:$-7 sm:$0x1f]
  %s1754 = scalar_lea.vmem %s0, 60
  %v1755 = vld [vmem:[%s1754] ss:$-7 sm:$0xe0]
  %vm1756 = vcmask 1047557
  %v1757 = vsel %vm1756, %v1755, %v1753
  %1758 = vrot.lane.b32.xlu0 %v1757, 112
  %v1759 = vpop.permute.xlu0 %1758
  %vm1760 = vcmask 31744
  %s1761 = scalar_lea.vmem %s1, 256
  %1762 = vst.msk [vmem:[%s1761] ss:$-63 sm:$0x1f] %vm1760, %v1759
  %s1763 = scalar_lea.vmem %s1, 544
  %1764 = vst.msk [vmem:[%s1763] ss:$-63 sm:$0xe0] %vm1760, %v1759
  %s1765 = scalar_lea.vmem %s0, 60
  %v1766 = vld [vmem:[%s1765] ss:$-7 sm:$0x1f]
  %s1767 = scalar_lea.vmem %s0, 92
  %v1768 = vld [vmem:[%s1767] ss:$-7 sm:$0xe0]
  %vm1769 = vcmask 1047557
  %v1770 = vsel %vm1769, %v1768, %v1766
  %1771 = vrot.lane.b32.xlu0 %v1770, 112
  %v1772 = vpop.permute.xlu0 %1771
  %vm1773 = vcmask 31744
  %s1774 = scalar_lea.vmem %s1, 544
  %1775 = vst.msk [vmem:[%s1774] ss:$-63 sm:$0x1f] %vm1773, %v1772
  %s1776 = scalar_lea.vmem %s1, 832
  %1777 = vst.msk [vmem:[%s1776] ss:$-63 sm:$0xe0] %vm1773, %v1772
  %s1778 = scalar_lea.vmem %s0, 92
  %v1779 = vld [vmem:[%s1778] ss:$-7 sm:$0x1f]
  %s1780 = scalar_lea.vmem %s0, 124
  %v1781 = vld [vmem:[%s1780] ss:$-7 sm:$0xe0]
  %vm1782 = vcmask 1047557
  %v1783 = vsel %vm1782, %v1781, %v1779
  %1784 = vrot.lane.b32.xlu0 %v1783, 112
  %v1785 = vpop.permute.xlu0 %1784
  %vm1786 = vcmask 31744
  %s1787 = scalar_lea.vmem %s1, 832
  %1788 = vst.msk [vmem:[%s1787] ss:$-63 sm:$0x1f] %vm1786, %v1785
  %s1789 = scalar_lea.vmem %s1, 1120
  %1790 = vst.msk [vmem:[%s1789] ss:$-63 sm:$0xe0] %vm1786, %v1785
  %s1791 = scalar_lea.vmem %s0, 124
  %v1792 = vld [vmem:[%s1791] ss:$-7 sm:$0x1f]
  %s1793 = scalar_lea.vmem %s0, 156
  %v1794 = vld [vmem:[%s1793] ss:$-7 sm:$0xe0]
  %vm1795 = vcmask 1047557
  %v1796 = vsel %vm1795, %v1794, %v1792
  %1797 = vrot.lane.b32.xlu0 %v1796, 112
  %v1798 = vpop.permute.xlu0 %1797
  %vm1799 = vcmask 31744
  %s1800 = scalar_lea.vmem %s1, 1120
  %1801 = vst.msk [vmem:[%s1800] ss:$-63 sm:$0x1f] %vm1799, %v1798
  %s1802 = scalar_lea.vmem %s1, 1408
  %1803 = vst.msk [vmem:[%s1802] ss:$-63 sm:$0xe0] %vm1799, %v1798
  %s1804 = scalar_lea.vmem %s0, 156
  %v1805 = vld [vmem:[%s1804] ss:$-7 sm:$0x1f]
  %s1806 = scalar_lea.vmem %s0, 188
  %v1807 = vld [vmem:[%s1806] ss:$-7 sm:$0xe0]
  %vm1808 = vcmask 1047557
  %v1809 = vsel %vm1808, %v1807, %v1805
  %1810 = vrot.lane.b32.xlu0 %v1809, 112
  %v1811 = vpop.permute.xlu0 %1810
  %vm1812 = vcmask 31744
  %s1813 = scalar_lea.vmem %s1, 1408
  %1814 = vst.msk [vmem:[%s1813] ss:$-63 sm:$0x1f] %vm1812, %v1811
  %s1815 = scalar_lea.vmem %s1, 1696
  %1816 = vst.msk [vmem:[%s1815] ss:$-63 sm:$0xe0] %vm1812, %v1811
  %s1817 = scalar_lea.vmem %s0, 188
  %v1818 = vld [vmem:[%s1817] ss:$-7 sm:$0x1f]
  %s1819 = scalar_lea.vmem %s0, 220
  %v1820 = vld [vmem:[%s1819] ss:$-7 sm:$0xe0]
  %vm1821 = vcmask 1047557
  %v1822 = vsel %vm1821, %v1820, %v1818
  %1823 = vrot.lane.b32.xlu0 %v1822, 112
  %v1824 = vpop.permute.xlu0 %1823
  %vm1825 = vcmask 31744
  %s1826 = scalar_lea.vmem %s1, 1696
  %1827 = vst.msk [vmem:[%s1826] ss:$-63 sm:$0x1f] %vm1825, %v1824
  %s1828 = scalar_lea.vmem %s1, 1984
  %1829 = vst.msk [vmem:[%s1828] ss:$-63 sm:$0xe0] %vm1825, %v1824
  %s1830 = scalar_lea.vmem %s0, 220
  %v1831 = vld [vmem:[%s1830] ss:$-7 sm:$0x1f]
  %s1832 = scalar_lea.vmem %s0, 252
  %v1833 = vld [vmem:[%s1832] ss:$-7 sm:$0xe0]
  %vm1834 = vcmask 1047557
  %v1835 = vsel %vm1834, %v1833, %v1831
  %1836 = vrot.lane.b32.xlu0 %v1835, 112
  %v1837 = vpop.permute.xlu0 %1836
  %vm1838 = vcmask 31744
  %s1839 = scalar_lea.vmem %s1, 1984
  %1840 = vst.msk [vmem:[%s1839] ss:$-63 sm:$0x1f] %vm1838, %v1837
  %s1841 = scalar_lea.vmem %s1, 2272
  %1842 = vst.msk [vmem:[%s1841] ss:$-63 sm:$0xe0] %vm1838, %v1837
  %s1843 = scalar_lea.vmem %s0, 252
  %v1844 = vld [vmem:[%s1843] ss:$-7 sm:$0x1f]
  %s1845 = scalar_lea.vmem %s0, 284
  %v1846 = vld [vmem:[%s1845] ss:$-7 sm:$0xe0]
  %vm1847 = vcmask 1047557
  %v1848 = vsel %vm1847, %v1846, %v1844
  %1849 = vrot.lane.b32.xlu0 %v1848, 112
  %v1850 = vpop.permute.xlu0 %1849
  %vm1851 = vcmask 31744
  %s1852 = scalar_lea.vmem %s1, 2272
  %1853 = vst.msk [vmem:[%s1852] ss:$-63 sm:$0x1f] %vm1851, %v1850
  %s1854 = scalar_lea.vmem %s1, 2560
  %1855 = vst.msk [vmem:[%s1854] ss:$-63 sm:$0xe0] %vm1851, %v1850
  %s1856 = scalar_lea.vmem %s0, 4
  %s1857 = smov 3
  %v1858 = vld [vmem:[%s1856] ss:$25 sm:%s1857]
  %s1859 = scalar_lea.vmem %s0, 36
  %v1860 = vld [vmem:[%s1859] ss:$-7 sm:$0x3c]
  %vm1861 = vcmask 1045506
  %v1862 = vsel %vm1861, %v1860, %v1858
  %s1863 = scalar_lea.vmem %s0, 68
  %s1864 = smov 192
  %v1865 = vld [vmem:[%s1863] ss:$-7 sm:%s1864]
  %vm1866 = vcmask 1047558
  %v1867 = vsel %vm1866, %v1865, %v1862
  %1868 = vrot.lane.b32.xlu0 %v1867, 112
  %v1869 = vpop.permute.xlu0 %1868
  %vm1870 = vcmask 31744
  %s1871 = scalar_lea.vmem %s1, 40
  %1872 = vst.msk [vmem:[%s1871] ss:$225 sm:$0x3] %vm1870, %v1869
  %s1873 = scalar_lea.vmem %s1, 328
  %1874 = vst.msk [vmem:[%s1873] ss:$-63 sm:$0x3c] %vm1870, %v1869
  %s1875 = scalar_lea.vmem %s1, 616
  %1876 = vst.msk [vmem:[%s1875] ss:$-63 sm:$0xc0] %vm1870, %v1869
  %s1877 = scalar_lea.vmem %s0, 36
  %s1878 = smov 3
  %v1879 = vld [vmem:[%s1877] ss:$25 sm:%s1878]
  %s1880 = scalar_lea.vmem %s0, 68
  %v1881 = vld [vmem:[%s1880] ss:$-7 sm:$0x3c]
  %vm1882 = vcmask 1045506
  %v1883 = vsel %vm1882, %v1881, %v1879
  %s1884 = scalar_lea.vmem %s0, 100
  %s1885 = smov 192
  %v1886 = vld [vmem:[%s1884] ss:$-7 sm:%s1885]
  %vm1887 = vcmask 1047558
  %v1888 = vsel %vm1887, %v1886, %v1883
  %1889 = vrot.lane.b32.xlu0 %v1888, 112
  %v1890 = vpop.permute.xlu0 %1889
  %vm1891 = vcmask 31744
  %s1892 = scalar_lea.vmem %s1, 328
  %1893 = vst.msk [vmem:[%s1892] ss:$225 sm:$0x3] %vm1891, %v1890
  %s1894 = scalar_lea.vmem %s1, 616
  %1895 = vst.msk [vmem:[%s1894] ss:$-63 sm:$0x3c] %vm1891, %v1890
  %s1896 = scalar_lea.vmem %s1, 904
  %1897 = vst.msk [vmem:[%s1896] ss:$-63 sm:$0xc0] %vm1891, %v1890
  %s1898 = scalar_lea.vmem %s0, 68
  %s1899 = smov 3
  %v1900 = vld [vmem:[%s1898] ss:$25 sm:%s1899]
  %s1901 = scalar_lea.vmem %s0, 100
  %v1902 = vld [vmem:[%s1901] ss:$-7 sm:$0x3c]
  %vm1903 = vcmask 1045506
  %v1904 = vsel %vm1903, %v1902, %v1900
  %s1905 = scalar_lea.vmem %s0, 132
  %s1906 = smov 192
  %v1907 = vld [vmem:[%s1905] ss:$-7 sm:%s1906]
  %vm1908 = vcmask 1047558
  %v1909 = vsel %vm1908, %v1907, %v1904
  %1910 = vrot.lane.b32.xlu0 %v1909, 112
  %v1911 = vpop.permute.xlu0 %1910
  %vm1912 = vcmask 31744
  %s1913 = scalar_lea.vmem %s1, 616
  %1914 = vst.msk [vmem:[%s1913] ss:$225 sm:$0x3] %vm1912, %v1911
  %s1915 = scalar_lea.vmem %s1, 904
  %1916 = vst.msk [vmem:[%s1915] ss:$-63 sm:$0x3c] %vm1912, %v1911
  %s1917 = scalar_lea.vmem %s1, 1192
  %1918 = vst.msk [vmem:[%s1917] ss:$-63 sm:$0xc0] %vm1912, %v1911
  %s1919 = scalar_lea.vmem %s0, 100
  %s1920 = smov 3
  %v1921 = vld [vmem:[%s1919] ss:$25 sm:%s1920]
  %s1922 = scalar_lea.vmem %s0, 132
  %v1923 = vld [vmem:[%s1922] ss:$-7 sm:$0x3c]
  %vm1924 = vcmask 1045506
  %v1925 = vsel %vm1924, %v1923, %v1921
  %s1926 = scalar_lea.vmem %s0, 164
  %s1927 = smov 192
  %v1928 = vld [vmem:[%s1926] ss:$-7 sm:%s1927]
  %vm1929 = vcmask 1047558
  %v1930 = vsel %vm1929, %v1928, %v1925
  %1931 = vrot.lane.b32.xlu0 %v1930, 112
  %v1932 = vpop.permute.xlu0 %1931
  %vm1933 = vcmask 31744
  %s1934 = scalar_lea.vmem %s1, 904
  %1935 = vst.msk [vmem:[%s1934] ss:$225 sm:$0x3] %vm1933, %v1932
  %s1936 = scalar_lea.vmem %s1, 1192
  %1937 = vst.msk [vmem:[%s1936] ss:$-63 sm:$0x3c] %vm1933, %v1932
  %s1938 = scalar_lea.vmem %s1, 1480
  %1939 = vst.msk [vmem:[%s1938] ss:$-63 sm:$0xc0] %vm1933, %v1932
  %s1940 = scalar_lea.vmem %s0, 132
  %s1941 = smov 3
  %v1942 = vld [vmem:[%s1940] ss:$25 sm:%s1941]
  %s1943 = scalar_lea.vmem %s0, 164
  %v1944 = vld [vmem:[%s1943] ss:$-7 sm:$0x3c]
  %vm1945 = vcmask 1045506
  %v1946 = vsel %vm1945, %v1944, %v1942
  %s1947 = scalar_lea.vmem %s0, 196
  %s1948 = smov 192
  %v1949 = vld [vmem:[%s1947] ss:$-7 sm:%s1948]
  %vm1950 = vcmask 1047558
  %v1951 = vsel %vm1950, %v1949, %v1946
  %1952 = vrot.lane.b32.xlu0 %v1951, 112
  %v1953 = vpop.permute.xlu0 %1952
  %vm1954 = vcmask 31744
  %s1955 = scalar_lea.vmem %s1, 1192
  %1956 = vst.msk [vmem:[%s1955] ss:$225 sm:$0x3] %vm1954, %v1953
  %s1957 = scalar_lea.vmem %s1, 1480
  %1958 = vst.msk [vmem:[%s1957] ss:$-63 sm:$0x3c] %vm1954, %v1953
  %s1959 = scalar_lea.vmem %s1, 1768
  %1960 = vst.msk [vmem:[%s1959] ss:$-63 sm:$0xc0] %vm1954, %v1953
  %s1961 = scalar_lea.vmem %s0, 164
  %s1962 = smov 3
  %v1963 = vld [vmem:[%s1961] ss:$25 sm:%s1962]
  %s1964 = scalar_lea.vmem %s0, 196
  %v1965 = vld [vmem:[%s1964] ss:$-7 sm:$0x3c]
  %vm1966 = vcmask 1045506
  %v1967 = vsel %vm1966, %v1965, %v1963
  %s1968 = scalar_lea.vmem %s0, 228
  %s1969 = smov 192
  %v1970 = vld [vmem:[%s1968] ss:$-7 sm:%s1969]
  %vm1971 = vcmask 1047558
  %v1972 = vsel %vm1971, %v1970, %v1967
  %1973 = vrot.lane.b32.xlu0 %v1972, 112
  %v1974 = vpop.permute.xlu0 %1973
  %vm1975 = vcmask 31744
  %s1976 = scalar_lea.vmem %s1, 1480
  %1977 = vst.msk [vmem:[%s1976] ss:$225 sm:$0x3] %vm1975, %v1974
  %s1978 = scalar_lea.vmem %s1, 1768
  %1979 = vst.msk [vmem:[%s1978] ss:$-63 sm:$0x3c] %vm1975, %v1974
  %s1980 = scalar_lea.vmem %s1, 2056
  %1981 = vst.msk [vmem:[%s1980] ss:$-63 sm:$0xc0] %vm1975, %v1974
  %s1982 = scalar_lea.vmem %s0, 196
  %s1983 = smov 3
  %v1984 = vld [vmem:[%s1982] ss:$25 sm:%s1983]
  %s1985 = scalar_lea.vmem %s0, 228
  %v1986 = vld [vmem:[%s1985] ss:$-7 sm:$0x3c]
  %vm1987 = vcmask 1045506
  %v1988 = vsel %vm1987, %v1986, %v1984
  %s1989 = scalar_lea.vmem %s0, 260
  %s1990 = smov 192
  %v1991 = vld [vmem:[%s1989] ss:$-7 sm:%s1990]
  %vm1992 = vcmask 1047558
  %v1993 = vsel %vm1992, %v1991, %v1988
  %1994 = vrot.lane.b32.xlu0 %v1993, 112
  %v1995 = vpop.permute.xlu0 %1994
  %vm1996 = vcmask 31744
  %s1997 = scalar_lea.vmem %s1, 1768
  %1998 = vst.msk [vmem:[%s1997] ss:$225 sm:$0x3] %vm1996, %v1995
  %s1999 = scalar_lea.vmem %s1, 2056
  %2000 = vst.msk [vmem:[%s1999] ss:$-63 sm:$0x3c] %vm1996, %v1995
  %s2001 = scalar_lea.vmem %s1, 2344
  %2002 = vst.msk [vmem:[%s2001] ss:$-63 sm:$0xc0] %vm1996, %v1995
  %s2003 = scalar_lea.vmem %s0, 228
  %s2004 = smov 3
  %v2005 = vld [vmem:[%s2003] ss:$25 sm:%s2004]
  %s2006 = scalar_lea.vmem %s0, 260
  %v2007 = vld [vmem:[%s2006] ss:$-7 sm:$0x3c]
  %vm2008 = vcmask 1045506
  %v2009 = vsel %vm2008, %v2007, %v2005
  %s2010 = scalar_lea.vmem %s0, 292
  %s2011 = smov 192
  %v2012 = vld [vmem:[%s2010] ss:$-7 sm:%s2011]
  %vm2013 = vcmask 1047558
  %v2014 = vsel %vm2013, %v2012, %v2009
  %2015 = vrot.lane.b32.xlu0 %v2014, 112
  %v2016 = vpop.permute.xlu0 %2015
  %vm2017 = vcmask 31744
  %s2018 = scalar_lea.vmem %s1, 2056
  %2019 = vst.msk [vmem:[%s2018] ss:$225 sm:$0x3] %vm2017, %v2016
  %s2020 = scalar_lea.vmem %s1, 2344
  %2021 = vst.msk [vmem:[%s2020] ss:$-63 sm:$0x3c] %vm2017, %v2016
  %s2022 = scalar_lea.vmem %s1, 2632
  %2023 = vst.msk [vmem:[%s2022] ss:$-63 sm:$0xc0] %vm2017, %v2016
  %s2024 = scalar_lea.vmem %s0, 12
  %s2025 = smov 3
  %v2026 = vld [vmem:[%s2024] ss:$-7 sm:%s2025]
  %s2027 = scalar_lea.vmem %s0, 44
  %v2028 = vld [vmem:[%s2027] ss:$-7 sm:$0x7c]
  %vm2029 = vcmask 1046530
  %v2030 = vsel %vm2029, %v2028, %v2026
  %s2031 = scalar_lea.vmem %s0, 20
  %v2032 = vld [vmem:[%s2031] sm:$0x80]
  %vm2033 = vcmask 1047559
  %v2034 = vsel %vm2033, %v2032, %v2030
  %2035 = vrot.lane.b32.xlu0 %v2034, 112
  %v2036 = vpop.permute.xlu0 %2035
  %vm2037 = vcmask 31744
  %s2038 = scalar_lea.vmem %s1, 112
  %2039 = vst.msk [vmem:[%s2038] ss:$-63 sm:$0x3] %vm2037, %v2036
  %s2040 = scalar_lea.vmem %s1, 400
  %2041 = vst.msk [vmem:[%s2040] ss:$-63 sm:$0x7c] %vm2037, %v2036
  %s2042 = scalar_lea.vmem %s1, 240
  %2043 = vst.msk [vmem:[%s2042] sm:$0x80] %vm2037, %v2036
  %s2044 = scalar_lea.vmem %s0, 44
  %s2045 = smov 3
  %v2046 = vld [vmem:[%s2044] ss:$-7 sm:%s2045]
  %s2047 = scalar_lea.vmem %s0, 76
  %v2048 = vld [vmem:[%s2047] ss:$-7 sm:$0x7c]
  %vm2049 = vcmask 1046530
  %v2050 = vsel %vm2049, %v2048, %v2046
  %s2051 = scalar_lea.vmem %s0, 52
  %v2052 = vld [vmem:[%s2051] sm:$0x80]
  %vm2053 = vcmask 1047559
  %v2054 = vsel %vm2053, %v2052, %v2050
  %2055 = vrot.lane.b32.xlu0 %v2054, 112
  %v2056 = vpop.permute.xlu0 %2055
  %vm2057 = vcmask 31744
  %s2058 = scalar_lea.vmem %s1, 400
  %2059 = vst.msk [vmem:[%s2058] ss:$-63 sm:$0x3] %vm2057, %v2056
  %s2060 = scalar_lea.vmem %s1, 688
  %2061 = vst.msk [vmem:[%s2060] ss:$-63 sm:$0x7c] %vm2057, %v2056
  %s2062 = scalar_lea.vmem %s1, 528
  %2063 = vst.msk [vmem:[%s2062] sm:$0x80] %vm2057, %v2056
  %s2064 = scalar_lea.vmem %s0, 76
  %s2065 = smov 3
  %v2066 = vld [vmem:[%s2064] ss:$-7 sm:%s2065]
  %s2067 = scalar_lea.vmem %s0, 108
  %v2068 = vld [vmem:[%s2067] ss:$-7 sm:$0x7c]
  %vm2069 = vcmask 1046530
  %v2070 = vsel %vm2069, %v2068, %v2066
  %s2071 = scalar_lea.vmem %s0, 84
  %v2072 = vld [vmem:[%s2071] sm:$0x80]
  %vm2073 = vcmask 1047559
  %v2074 = vsel %vm2073, %v2072, %v2070
  %2075 = vrot.lane.b32.xlu0 %v2074, 112
  %v2076 = vpop.permute.xlu0 %2075
  %vm2077 = vcmask 31744
  %s2078 = scalar_lea.vmem %s1, 688
  %2079 = vst.msk [vmem:[%s2078] ss:$-63 sm:$0x3] %vm2077, %v2076
  %s2080 = scalar_lea.vmem %s1, 976
  %2081 = vst.msk [vmem:[%s2080] ss:$-63 sm:$0x7c] %vm2077, %v2076
  %s2082 = scalar_lea.vmem %s1, 816
  %2083 = vst.msk [vmem:[%s2082] sm:$0x80] %vm2077, %v2076
  %s2084 = scalar_lea.vmem %s0, 108
  %s2085 = smov 3
  %v2086 = vld [vmem:[%s2084] ss:$-7 sm:%s2085]
  %s2087 = scalar_lea.vmem %s0, 140
  %v2088 = vld [vmem:[%s2087] ss:$-7 sm:$0x7c]
  %vm2089 = vcmask 1046530
  %v2090 = vsel %vm2089, %v2088, %v2086
  %s2091 = scalar_lea.vmem %s0, 116
  %v2092 = vld [vmem:[%s2091] sm:$0x80]
  %vm2093 = vcmask 1047559
  %v2094 = vsel %vm2093, %v2092, %v2090
  %2095 = vrot.lane.b32.xlu0 %v2094, 112
  %v2096 = vpop.permute.xlu0 %2095
  %vm2097 = vcmask 31744
  %s2098 = scalar_lea.vmem %s1, 976
  %2099 = vst.msk [vmem:[%s2098] ss:$-63 sm:$0x3] %vm2097, %v2096
  %s2100 = scalar_lea.vmem %s1, 1264
  %2101 = vst.msk [vmem:[%s2100] ss:$-63 sm:$0x7c] %vm2097, %v2096
  %s2102 = scalar_lea.vmem %s1, 1104
  %2103 = vst.msk [vmem:[%s2102] sm:$0x80] %vm2097, %v2096
  %s2104 = scalar_lea.vmem %s0, 140
  %s2105 = smov 3
  %v2106 = vld [vmem:[%s2104] ss:$-7 sm:%s2105]
  %s2107 = scalar_lea.vmem %s0, 172
  %v2108 = vld [vmem:[%s2107] ss:$-7 sm:$0x7c]
  %vm2109 = vcmask 1046530
  %v2110 = vsel %vm2109, %v2108, %v2106
  %s2111 = scalar_lea.vmem %s0, 148
  %v2112 = vld [vmem:[%s2111] sm:$0x80]
  %vm2113 = vcmask 1047559
  %v2114 = vsel %vm2113, %v2112, %v2110
  %2115 = vrot.lane.b32.xlu0 %v2114, 112
  %v2116 = vpop.permute.xlu0 %2115
  %vm2117 = vcmask 31744
  %s2118 = scalar_lea.vmem %s1, 1264
  %2119 = vst.msk [vmem:[%s2118] ss:$-63 sm:$0x3] %vm2117, %v2116
  %s2120 = scalar_lea.vmem %s1, 1552
  %2121 = vst.msk [vmem:[%s2120] ss:$-63 sm:$0x7c] %vm2117, %v2116
  %s2122 = scalar_lea.vmem %s1, 1392
  %2123 = vst.msk [vmem:[%s2122] sm:$0x80] %vm2117, %v2116
  %s2124 = scalar_lea.vmem %s0, 172
  %s2125 = smov 3
  %v2126 = vld [vmem:[%s2124] ss:$-7 sm:%s2125]
  %s2127 = scalar_lea.vmem %s0, 204
  %v2128 = vld [vmem:[%s2127] ss:$-7 sm:$0x7c]
  %vm2129 = vcmask 1046530
  %v2130 = vsel %vm2129, %v2128, %v2126
  %s2131 = scalar_lea.vmem %s0, 180
  %v2132 = vld [vmem:[%s2131] sm:$0x80]
  %vm2133 = vcmask 1047559
  %v2134 = vsel %vm2133, %v2132, %v2130
  %2135 = vrot.lane.b32.xlu0 %v2134, 112
  %v2136 = vpop.permute.xlu0 %2135
  %vm2137 = vcmask 31744
  %s2138 = scalar_lea.vmem %s1, 1552
  %2139 = vst.msk [vmem:[%s2138] ss:$-63 sm:$0x3] %vm2137, %v2136
  %s2140 = scalar_lea.vmem %s1, 1840
  %2141 = vst.msk [vmem:[%s2140] ss:$-63 sm:$0x7c] %vm2137, %v2136
  %s2142 = scalar_lea.vmem %s1, 1680
  %2143 = vst.msk [vmem:[%s2142] sm:$0x80] %vm2137, %v2136
  %s2144 = scalar_lea.vmem %s0, 204
  %s2145 = smov 3
  %v2146 = vld [vmem:[%s2144] ss:$-7 sm:%s2145]
  %s2147 = scalar_lea.vmem %s0, 236
  %v2148 = vld [vmem:[%s2147] ss:$-7 sm:$0x7c]
  %vm2149 = vcmask 1046530
  %v2150 = vsel %vm2149, %v2148, %v2146
  %s2151 = scalar_lea.vmem %s0, 212
  %v2152 = vld [vmem:[%s2151] sm:$0x80]
  %vm2153 = vcmask 1047559
  %v2154 = vsel %vm2153, %v2152, %v2150
  %2155 = vrot.lane.b32.xlu0 %v2154, 112
  %v2156 = vpop.permute.xlu0 %2155
  %vm2157 = vcmask 31744
  %s2158 = scalar_lea.vmem %s1, 1840
  %2159 = vst.msk [vmem:[%s2158] ss:$-63 sm:$0x3] %vm2157, %v2156
  %s2160 = scalar_lea.vmem %s1, 2128
  %2161 = vst.msk [vmem:[%s2160] ss:$-63 sm:$0x7c] %vm2157, %v2156
  %s2162 = scalar_lea.vmem %s1, 1968
  %2163 = vst.msk [vmem:[%s2162] sm:$0x80] %vm2157, %v2156
  %s2164 = scalar_lea.vmem %s0, 236
  %s2165 = smov 3
  %v2166 = vld [vmem:[%s2164] ss:$-7 sm:%s2165]
  %s2167 = scalar_lea.vmem %s0, 268
  %v2168 = vld [vmem:[%s2167] ss:$-7 sm:$0x7c]
  %vm2169 = vcmask 1046530
  %v2170 = vsel %vm2169, %v2168, %v2166
  %s2171 = scalar_lea.vmem %s0, 244
  %v2172 = vld [vmem:[%s2171] sm:$0x80]
  %vm2173 = vcmask 1047559
  %v2174 = vsel %vm2173, %v2172, %v2170
  %2175 = vrot.lane.b32.xlu0 %v2174, 112
  %v2176 = vpop.permute.xlu0 %2175
  %vm2177 = vcmask 31744
  %s2178 = scalar_lea.vmem %s1, 2128
  %2179 = vst.msk [vmem:[%s2178] ss:$-63 sm:$0x3] %vm2177, %v2176
  %s2180 = scalar_lea.vmem %s1, 2416
  %2181 = vst.msk [vmem:[%s2180] ss:$-63 sm:$0x7c] %vm2177, %v2176
  %s2182 = scalar_lea.vmem %s1, 2256
  %2183 = vst.msk [vmem:[%s2182] sm:$0x80] %vm2177, %v2176
  %s2184 = scalar_lea.vmem %s0, 20
  %v2185 = vld [vmem:[%s2184] ss:$-7 sm:$0x7]
  %s2186 = scalar_lea.vmem %s0, 52
  %v2187 = vld [vmem:[%s2186] ss:$-7 sm:$0xf8]
  %vm2188 = vcmask 1047555
  %v2189 = vsel %vm2188, %v2187, %v2185
  %2190 = vrot.lane.b32.xlu0 %v2189, 112
  %v2191 = vpop.permute.xlu0 %2190
  %vm2192 = vcmask 31744
  %s2193 = scalar_lea.vmem %s1, 184
  %2194 = vst.msk [vmem:[%s2193] ss:$-63 sm:$0x7] %vm2192, %v2191
  %s2195 = scalar_lea.vmem %s1, 472
  %2196 = vst.msk [vmem:[%s2195] ss:$-63 sm:$0xf8] %vm2192, %v2191
  %s2197 = scalar_lea.vmem %s0, 52
  %v2198 = vld [vmem:[%s2197] ss:$-7 sm:$0x7]
  %s2199 = scalar_lea.vmem %s0, 84
  %v2200 = vld [vmem:[%s2199] ss:$-7 sm:$0xf8]
  %vm2201 = vcmask 1047555
  %v2202 = vsel %vm2201, %v2200, %v2198
  %2203 = vrot.lane.b32.xlu0 %v2202, 112
  %v2204 = vpop.permute.xlu0 %2203
  %vm2205 = vcmask 31744
  %s2206 = scalar_lea.vmem %s1, 472
  %2207 = vst.msk [vmem:[%s2206] ss:$-63 sm:$0x7] %vm2205, %v2204
  %s2208 = scalar_lea.vmem %s1, 760
  %2209 = vst.msk [vmem:[%s2208] ss:$-63 sm:$0xf8] %vm2205, %v2204
  %s2210 = scalar_lea.vmem %s0, 84
  %v2211 = vld [vmem:[%s2210] ss:$-7 sm:$0x7]
  %s2212 = scalar_lea.vmem %s0, 116
  %v2213 = vld [vmem:[%s2212] ss:$-7 sm:$0xf8]
  %vm2214 = vcmask 1047555
  %v2215 = vsel %vm2214, %v2213, %v2211
  %2216 = vrot.lane.b32.xlu0 %v2215, 112
  %v2217 = vpop.permute.xlu0 %2216
  %vm2218 = vcmask 31744
  %s2219 = scalar_lea.vmem %s1, 760
  %2220 = vst.msk [vmem:[%s2219] ss:$-63 sm:$0x7] %vm2218, %v2217
  %s2221 = scalar_lea.vmem %s1, 1048
  %2222 = vst.msk [vmem:[%s2221] ss:$-63 sm:$0xf8] %vm2218, %v2217
  %s2223 = scalar_lea.vmem %s0, 116
  %v2224 = vld [vmem:[%s2223] ss:$-7 sm:$0x7]
  %s2225 = scalar_lea.vmem %s0, 148
  %v2226 = vld [vmem:[%s2225] ss:$-7 sm:$0xf8]
  %vm2227 = vcmask 1047555
  %v2228 = vsel %vm2227, %v2226, %v2224
  %2229 = vrot.lane.b32.xlu0 %v2228, 112
  %v2230 = vpop.permute.xlu0 %2229
  %vm2231 = vcmask 31744
  %s2232 = scalar_lea.vmem %s1, 1048
  %2233 = vst.msk [vmem:[%s2232] ss:$-63 sm:$0x7] %vm2231, %v2230
  %s2234 = scalar_lea.vmem %s1, 1336
  %2235 = vst.msk [vmem:[%s2234] ss:$-63 sm:$0xf8] %vm2231, %v2230
  %s2236 = scalar_lea.vmem %s0, 148
  %v2237 = vld [vmem:[%s2236] ss:$-7 sm:$0x7]
  %s2238 = scalar_lea.vmem %s0, 180
  %v2239 = vld [vmem:[%s2238] ss:$-7 sm:$0xf8]
  %vm2240 = vcmask 1047555
  %v2241 = vsel %vm2240, %v2239, %v2237
  %2242 = vrot.lane.b32.xlu0 %v2241, 112
  %v2243 = vpop.permute.xlu0 %2242
  %vm2244 = vcmask 31744
  %s2245 = scalar_lea.vmem %s1, 1336
  %2246 = vst.msk [vmem:[%s2245] ss:$-63 sm:$0x7] %vm2244, %v2243
  %s2247 = scalar_lea.vmem %s1, 1624
  %2248 = vst.msk [vmem:[%s2247] ss:$-63 sm:$0xf8] %vm2244, %v2243
  %s2249 = scalar_lea.vmem %s0, 180
  %v2250 = vld [vmem:[%s2249] ss:$-7 sm:$0x7]
  %s2251 = scalar_lea.vmem %s0, 212
  %v2252 = vld [vmem:[%s2251] ss:$-7 sm:$0xf8]
  %vm2253 = vcmask 1047555
  %v2254 = vsel %vm2253, %v2252, %v2250
  %2255 = vrot.lane.b32.xlu0 %v2254, 112
  %v2256 = vpop.permute.xlu0 %2255
  %vm2257 = vcmask 31744
  %s2258 = scalar_lea.vmem %s1, 1624
  %2259 = vst.msk [vmem:[%s2258] ss:$-63 sm:$0x7] %vm2257, %v2256
  %s2260 = scalar_lea.vmem %s1, 1912
  %2261 = vst.msk [vmem:[%s2260] ss:$-63 sm:$0xf8] %vm2257, %v2256
  %s2262 = scalar_lea.vmem %s0, 212
  %v2263 = vld [vmem:[%s2262] ss:$-7 sm:$0x7]
  %s2264 = scalar_lea.vmem %s0, 244
  %v2265 = vld [vmem:[%s2264] ss:$-7 sm:$0xf8]
  %vm2266 = vcmask 1047555
  %v2267 = vsel %vm2266, %v2265, %v2263
  %2268 = vrot.lane.b32.xlu0 %v2267, 112
  %v2269 = vpop.permute.xlu0 %2268
  %vm2270 = vcmask 31744
  %s2271 = scalar_lea.vmem %s1, 1912
  %2272 = vst.msk [vmem:[%s2271] ss:$-63 sm:$0x7] %vm2270, %v2269
  %s2273 = scalar_lea.vmem %s1, 2200
  %2274 = vst.msk [vmem:[%s2273] ss:$-63 sm:$0xf8] %vm2270, %v2269
  %s2275 = scalar_lea.vmem %s0, 244
  %v2276 = vld [vmem:[%s2275] ss:$-7 sm:$0x7]
  %s2277 = scalar_lea.vmem %s0, 276
  %v2278 = vld [vmem:[%s2277] ss:$-7 sm:$0xf8]
  %vm2279 = vcmask 1047555
  %v2280 = vsel %vm2279, %v2278, %v2276
  %2281 = vrot.lane.b32.xlu0 %v2280, 112
  %v2282 = vpop.permute.xlu0 %2281
  %vm2283 = vcmask 31744
  %s2284 = scalar_lea.vmem %s1, 2200
  %2285 = vst.msk [vmem:[%s2284] ss:$-63 sm:$0x7] %vm2283, %v2282
  %s2286 = scalar_lea.vmem %s1, 2488
  %2287 = vst.msk [vmem:[%s2286] ss:$-63 sm:$0xf8] %vm2283, %v2282
  %s2288 = scalar_lea.vmem %s0, 3
  %s2289 = smov 3
  %v2290 = vld [vmem:[%s2288] ss:$25 sm:%s2289]
  %s2291 = scalar_lea.vmem %s0, 35
  %v2292 = vld [vmem:[%s2291] ss:$-7 sm:$0x3c]
  %vm2293 = vcmask 1045506
  %v2294 = vsel %vm2293, %v2292, %v2290
  %s2295 = scalar_lea.vmem %s0, 67
  %s2296 = smov 192
  %v2297 = vld [vmem:[%s2295] ss:$-7 sm:%s2296]
  %vm2298 = vcmask 1047558
  %v2299 = vsel %vm2298, %v2297, %v2294
  %2300 = vrot.lane.b32.xlu0 %v2299, 108
  %v2301 = vpop.permute.xlu0 %2300
  %vm2302 = vcmask 31744
  %s2303 = scalar_lea.vmem %s1, 32
  %2304 = vst.msk [vmem:[%s2303] ss:$225 sm:$0x3] %vm2302, %v2301
  %s2305 = scalar_lea.vmem %s1, 320
  %2306 = vst.msk [vmem:[%s2305] ss:$-63 sm:$0x3c] %vm2302, %v2301
  %s2307 = scalar_lea.vmem %s1, 608
  %2308 = vst.msk [vmem:[%s2307] ss:$-63 sm:$0xc0] %vm2302, %v2301
  %s2309 = scalar_lea.vmem %s0, 35
  %s2310 = smov 3
  %v2311 = vld [vmem:[%s2309] ss:$25 sm:%s2310]
  %s2312 = scalar_lea.vmem %s0, 67
  %v2313 = vld [vmem:[%s2312] ss:$-7 sm:$0x3c]
  %vm2314 = vcmask 1045506
  %v2315 = vsel %vm2314, %v2313, %v2311
  %s2316 = scalar_lea.vmem %s0, 99
  %s2317 = smov 192
  %v2318 = vld [vmem:[%s2316] ss:$-7 sm:%s2317]
  %vm2319 = vcmask 1047558
  %v2320 = vsel %vm2319, %v2318, %v2315
  %2321 = vrot.lane.b32.xlu0 %v2320, 108
  %v2322 = vpop.permute.xlu0 %2321
  %vm2323 = vcmask 31744
  %s2324 = scalar_lea.vmem %s1, 320
  %2325 = vst.msk [vmem:[%s2324] ss:$225 sm:$0x3] %vm2323, %v2322
  %s2326 = scalar_lea.vmem %s1, 608
  %2327 = vst.msk [vmem:[%s2326] ss:$-63 sm:$0x3c] %vm2323, %v2322
  %s2328 = scalar_lea.vmem %s1, 896
  %2329 = vst.msk [vmem:[%s2328] ss:$-63 sm:$0xc0] %vm2323, %v2322
  %s2330 = scalar_lea.vmem %s0, 67
  %s2331 = smov 3
  %v2332 = vld [vmem:[%s2330] ss:$25 sm:%s2331]
  %s2333 = scalar_lea.vmem %s0, 99
  %v2334 = vld [vmem:[%s2333] ss:$-7 sm:$0x3c]
  %vm2335 = vcmask 1045506
  %v2336 = vsel %vm2335, %v2334, %v2332
  %s2337 = scalar_lea.vmem %s0, 131
  %s2338 = smov 192
  %v2339 = vld [vmem:[%s2337] ss:$-7 sm:%s2338]
  %vm2340 = vcmask 1047558
  %v2341 = vsel %vm2340, %v2339, %v2336
  %2342 = vrot.lane.b32.xlu0 %v2341, 108
  %v2343 = vpop.permute.xlu0 %2342
  %vm2344 = vcmask 31744
  %s2345 = scalar_lea.vmem %s1, 608
  %2346 = vst.msk [vmem:[%s2345] ss:$225 sm:$0x3] %vm2344, %v2343
  %s2347 = scalar_lea.vmem %s1, 896
  %2348 = vst.msk [vmem:[%s2347] ss:$-63 sm:$0x3c] %vm2344, %v2343
  %s2349 = scalar_lea.vmem %s1, 1184
  %2350 = vst.msk [vmem:[%s2349] ss:$-63 sm:$0xc0] %vm2344, %v2343
  %s2351 = scalar_lea.vmem %s0, 99
  %s2352 = smov 3
  %v2353 = vld [vmem:[%s2351] ss:$25 sm:%s2352]
  %s2354 = scalar_lea.vmem %s0, 131
  %v2355 = vld [vmem:[%s2354] ss:$-7 sm:$0x3c]
  %vm2356 = vcmask 1045506
  %v2357 = vsel %vm2356, %v2355, %v2353
  %s2358 = scalar_lea.vmem %s0, 163
  %s2359 = smov 192
  %v2360 = vld [vmem:[%s2358] ss:$-7 sm:%s2359]
  %vm2361 = vcmask 1047558
  %v2362 = vsel %vm2361, %v2360, %v2357
  %2363 = vrot.lane.b32.xlu0 %v2362, 108
  %v2364 = vpop.permute.xlu0 %2363
  %vm2365 = vcmask 31744
  %s2366 = scalar_lea.vmem %s1, 896
  %2367 = vst.msk [vmem:[%s2366] ss:$225 sm:$0x3] %vm2365, %v2364
  %s2368 = scalar_lea.vmem %s1, 1184
  %2369 = vst.msk [vmem:[%s2368] ss:$-63 sm:$0x3c] %vm2365, %v2364
  %s2370 = scalar_lea.vmem %s1, 1472
  %2371 = vst.msk [vmem:[%s2370] ss:$-63 sm:$0xc0] %vm2365, %v2364
  %s2372 = scalar_lea.vmem %s0, 131
  %s2373 = smov 3
  %v2374 = vld [vmem:[%s2372] ss:$25 sm:%s2373]
  %s2375 = scalar_lea.vmem %s0, 163
  %v2376 = vld [vmem:[%s2375] ss:$-7 sm:$0x3c]
  %vm2377 = vcmask 1045506
  %v2378 = vsel %vm2377, %v2376, %v2374
  %s2379 = scalar_lea.vmem %s0, 195
  %s2380 = smov 192
  %v2381 = vld [vmem:[%s2379] ss:$-7 sm:%s2380]
  %vm2382 = vcmask 1047558
  %v2383 = vsel %vm2382, %v2381, %v2378
  %2384 = vrot.lane.b32.xlu0 %v2383, 108
  %v2385 = vpop.permute.xlu0 %2384
  %vm2386 = vcmask 31744
  %s2387 = scalar_lea.vmem %s1, 1184
  %2388 = vst.msk [vmem:[%s2387] ss:$225 sm:$0x3] %vm2386, %v2385
  %s2389 = scalar_lea.vmem %s1, 1472
  %2390 = vst.msk [vmem:[%s2389] ss:$-63 sm:$0x3c] %vm2386, %v2385
  %s2391 = scalar_lea.vmem %s1, 1760
  %2392 = vst.msk [vmem:[%s2391] ss:$-63 sm:$0xc0] %vm2386, %v2385
  %s2393 = scalar_lea.vmem %s0, 163
  %s2394 = smov 3
  %v2395 = vld [vmem:[%s2393] ss:$25 sm:%s2394]
  %s2396 = scalar_lea.vmem %s0, 195
  %v2397 = vld [vmem:[%s2396] ss:$-7 sm:$0x3c]
  %vm2398 = vcmask 1045506
  %v2399 = vsel %vm2398, %v2397, %v2395
  %s2400 = scalar_lea.vmem %s0, 227
  %s2401 = smov 192
  %v2402 = vld [vmem:[%s2400] ss:$-7 sm:%s2401]
  %vm2403 = vcmask 1047558
  %v2404 = vsel %vm2403, %v2402, %v2399
  %2405 = vrot.lane.b32.xlu0 %v2404, 108
  %v2406 = vpop.permute.xlu0 %2405
  %vm2407 = vcmask 31744
  %s2408 = scalar_lea.vmem %s1, 1472
  %2409 = vst.msk [vmem:[%s2408] ss:$225 sm:$0x3] %vm2407, %v2406
  %s2410 = scalar_lea.vmem %s1, 1760
  %2411 = vst.msk [vmem:[%s2410] ss:$-63 sm:$0x3c] %vm2407, %v2406
  %s2412 = scalar_lea.vmem %s1, 2048
  %2413 = vst.msk [vmem:[%s2412] ss:$-63 sm:$0xc0] %vm2407, %v2406
  %s2414 = scalar_lea.vmem %s0, 195
  %s2415 = smov 3
  %v2416 = vld [vmem:[%s2414] ss:$25 sm:%s2415]
  %s2417 = scalar_lea.vmem %s0, 227
  %v2418 = vld [vmem:[%s2417] ss:$-7 sm:$0x3c]
  %vm2419 = vcmask 1045506
  %v2420 = vsel %vm2419, %v2418, %v2416
  %s2421 = scalar_lea.vmem %s0, 259
  %s2422 = smov 192
  %v2423 = vld [vmem:[%s2421] ss:$-7 sm:%s2422]
  %vm2424 = vcmask 1047558
  %v2425 = vsel %vm2424, %v2423, %v2420
  %2426 = vrot.lane.b32.xlu0 %v2425, 108
  %v2427 = vpop.permute.xlu0 %2426
  %vm2428 = vcmask 31744
  %s2429 = scalar_lea.vmem %s1, 1760
  %2430 = vst.msk [vmem:[%s2429] ss:$225 sm:$0x3] %vm2428, %v2427
  %s2431 = scalar_lea.vmem %s1, 2048
  %2432 = vst.msk [vmem:[%s2431] ss:$-63 sm:$0x3c] %vm2428, %v2427
  %s2433 = scalar_lea.vmem %s1, 2336
  %2434 = vst.msk [vmem:[%s2433] ss:$-63 sm:$0xc0] %vm2428, %v2427
  %s2435 = scalar_lea.vmem %s0, 227
  %s2436 = smov 3
  %v2437 = vld [vmem:[%s2435] ss:$25 sm:%s2436]
  %s2438 = scalar_lea.vmem %s0, 259
  %v2439 = vld [vmem:[%s2438] ss:$-7 sm:$0x3c]
  %vm2440 = vcmask 1045506
  %v2441 = vsel %vm2440, %v2439, %v2437
  %s2442 = scalar_lea.vmem %s0, 291
  %s2443 = smov 192
  %v2444 = vld [vmem:[%s2442] ss:$-7 sm:%s2443]
  %vm2445 = vcmask 1047558
  %v2446 = vsel %vm2445, %v2444, %v2441
  %2447 = vrot.lane.b32.xlu0 %v2446, 108
  %v2448 = vpop.permute.xlu0 %2447
  %vm2449 = vcmask 31744
  %s2450 = scalar_lea.vmem %s1, 2048
  %2451 = vst.msk [vmem:[%s2450] ss:$225 sm:$0x3] %vm2449, %v2448
  %s2452 = scalar_lea.vmem %s1, 2336
  %2453 = vst.msk [vmem:[%s2452] ss:$-63 sm:$0x3c] %vm2449, %v2448
  %s2454 = scalar_lea.vmem %s1, 2624
  %2455 = vst.msk [vmem:[%s2454] ss:$-63 sm:$0xc0] %vm2449, %v2448
  %s2456 = scalar_lea.vmem %s0, 11
  %s2457 = smov 3
  %v2458 = vld [vmem:[%s2456] ss:$-7 sm:%s2457]
  %s2459 = scalar_lea.vmem %s0, 43
  %v2460 = vld [vmem:[%s2459] ss:$-7 sm:$0x7c]
  %vm2461 = vcmask 1046530
  %v2462 = vsel %vm2461, %v2460, %v2458
  %s2463 = scalar_lea.vmem %s0, 19
  %v2464 = vld [vmem:[%s2463] sm:$0x80]
  %vm2465 = vcmask 1047559
  %v2466 = vsel %vm2465, %v2464, %v2462
  %2467 = vrot.lane.b32.xlu0 %v2466, 108
  %v2468 = vpop.permute.xlu0 %2467
  %vm2469 = vcmask 31744
  %s2470 = scalar_lea.vmem %s1, 104
  %2471 = vst.msk [vmem:[%s2470] ss:$-63 sm:$0x3] %vm2469, %v2468
  %s2472 = scalar_lea.vmem %s1, 392
  %2473 = vst.msk [vmem:[%s2472] ss:$-63 sm:$0x7c] %vm2469, %v2468
  %s2474 = scalar_lea.vmem %s1, 232
  %2475 = vst.msk [vmem:[%s2474] sm:$0x80] %vm2469, %v2468
  %s2476 = scalar_lea.vmem %s0, 43
  %s2477 = smov 3
  %v2478 = vld [vmem:[%s2476] ss:$-7 sm:%s2477]
  %s2479 = scalar_lea.vmem %s0, 75
  %v2480 = vld [vmem:[%s2479] ss:$-7 sm:$0x7c]
  %vm2481 = vcmask 1046530
  %v2482 = vsel %vm2481, %v2480, %v2478
  %s2483 = scalar_lea.vmem %s0, 51
  %v2484 = vld [vmem:[%s2483] sm:$0x80]
  %vm2485 = vcmask 1047559
  %v2486 = vsel %vm2485, %v2484, %v2482
  %2487 = vrot.lane.b32.xlu0 %v2486, 108
  %v2488 = vpop.permute.xlu0 %2487
  %vm2489 = vcmask 31744
  %s2490 = scalar_lea.vmem %s1, 392
  %2491 = vst.msk [vmem:[%s2490] ss:$-63 sm:$0x3] %vm2489, %v2488
  %s2492 = scalar_lea.vmem %s1, 680
  %2493 = vst.msk [vmem:[%s2492] ss:$-63 sm:$0x7c] %vm2489, %v2488
  %s2494 = scalar_lea.vmem %s1, 520
  %2495 = vst.msk [vmem:[%s2494] sm:$0x80] %vm2489, %v2488
  %s2496 = scalar_lea.vmem %s0, 75
  %s2497 = smov 3
  %v2498 = vld [vmem:[%s2496] ss:$-7 sm:%s2497]
  %s2499 = scalar_lea.vmem %s0, 107
  %v2500 = vld [vmem:[%s2499] ss:$-7 sm:$0x7c]
  %vm2501 = vcmask 1046530
  %v2502 = vsel %vm2501, %v2500, %v2498
  %s2503 = scalar_lea.vmem %s0, 83
  %v2504 = vld [vmem:[%s2503] sm:$0x80]
  %vm2505 = vcmask 1047559
  %v2506 = vsel %vm2505, %v2504, %v2502
  %2507 = vrot.lane.b32.xlu0 %v2506, 108
  %v2508 = vpop.permute.xlu0 %2507
  %vm2509 = vcmask 31744
  %s2510 = scalar_lea.vmem %s1, 680
  %2511 = vst.msk [vmem:[%s2510] ss:$-63 sm:$0x3] %vm2509, %v2508
  %s2512 = scalar_lea.vmem %s1, 968
  %2513 = vst.msk [vmem:[%s2512] ss:$-63 sm:$0x7c] %vm2509, %v2508
  %s2514 = scalar_lea.vmem %s1, 808
  %2515 = vst.msk [vmem:[%s2514] sm:$0x80] %vm2509, %v2508
  %s2516 = scalar_lea.vmem %s0, 107
  %s2517 = smov 3
  %v2518 = vld [vmem:[%s2516] ss:$-7 sm:%s2517]
  %s2519 = scalar_lea.vmem %s0, 139
  %v2520 = vld [vmem:[%s2519] ss:$-7 sm:$0x7c]
  %vm2521 = vcmask 1046530
  %v2522 = vsel %vm2521, %v2520, %v2518
  %s2523 = scalar_lea.vmem %s0, 115
  %v2524 = vld [vmem:[%s2523] sm:$0x80]
  %vm2525 = vcmask 1047559
  %v2526 = vsel %vm2525, %v2524, %v2522
  %2527 = vrot.lane.b32.xlu0 %v2526, 108
  %v2528 = vpop.permute.xlu0 %2527
  %vm2529 = vcmask 31744
  %s2530 = scalar_lea.vmem %s1, 968
  %2531 = vst.msk [vmem:[%s2530] ss:$-63 sm:$0x3] %vm2529, %v2528
  %s2532 = scalar_lea.vmem %s1, 1256
  %2533 = vst.msk [vmem:[%s2532] ss:$-63 sm:$0x7c] %vm2529, %v2528
  %s2534 = scalar_lea.vmem %s1, 1096
  %2535 = vst.msk [vmem:[%s2534] sm:$0x80] %vm2529, %v2528
  %s2536 = scalar_lea.vmem %s0, 139
  %s2537 = smov 3
  %v2538 = vld [vmem:[%s2536] ss:$-7 sm:%s2537]
  %s2539 = scalar_lea.vmem %s0, 171
  %v2540 = vld [vmem:[%s2539] ss:$-7 sm:$0x7c]
  %vm2541 = vcmask 1046530
  %v2542 = vsel %vm2541, %v2540, %v2538
  %s2543 = scalar_lea.vmem %s0, 147
  %v2544 = vld [vmem:[%s2543] sm:$0x80]
  %vm2545 = vcmask 1047559
  %v2546 = vsel %vm2545, %v2544, %v2542
  %2547 = vrot.lane.b32.xlu0 %v2546, 108
  %v2548 = vpop.permute.xlu0 %2547
  %vm2549 = vcmask 31744
  %s2550 = scalar_lea.vmem %s1, 1256
  %2551 = vst.msk [vmem:[%s2550] ss:$-63 sm:$0x3] %vm2549, %v2548
  %s2552 = scalar_lea.vmem %s1, 1544
  %2553 = vst.msk [vmem:[%s2552] ss:$-63 sm:$0x7c] %vm2549, %v2548
  %s2554 = scalar_lea.vmem %s1, 1384
  %2555 = vst.msk [vmem:[%s2554] sm:$0x80] %vm2549, %v2548
  %s2556 = scalar_lea.vmem %s0, 171
  %s2557 = smov 3
  %v2558 = vld [vmem:[%s2556] ss:$-7 sm:%s2557]
  %s2559 = scalar_lea.vmem %s0, 203
  %v2560 = vld [vmem:[%s2559] ss:$-7 sm:$0x7c]
  %vm2561 = vcmask 1046530
  %v2562 = vsel %vm2561, %v2560, %v2558
  %s2563 = scalar_lea.vmem %s0, 179
  %v2564 = vld [vmem:[%s2563] sm:$0x80]
  %vm2565 = vcmask 1047559
  %v2566 = vsel %vm2565, %v2564, %v2562
  %2567 = vrot.lane.b32.xlu0 %v2566, 108
  %v2568 = vpop.permute.xlu0 %2567
  %vm2569 = vcmask 31744
  %s2570 = scalar_lea.vmem %s1, 1544
  %2571 = vst.msk [vmem:[%s2570] ss:$-63 sm:$0x3] %vm2569, %v2568
  %s2572 = scalar_lea.vmem %s1, 1832
  %2573 = vst.msk [vmem:[%s2572] ss:$-63 sm:$0x7c] %vm2569, %v2568
  %s2574 = scalar_lea.vmem %s1, 1672
  %2575 = vst.msk [vmem:[%s2574] sm:$0x80] %vm2569, %v2568
  %s2576 = scalar_lea.vmem %s0, 203
  %s2577 = smov 3
  %v2578 = vld [vmem:[%s2576] ss:$-7 sm:%s2577]
  %s2579 = scalar_lea.vmem %s0, 235
  %v2580 = vld [vmem:[%s2579] ss:$-7 sm:$0x7c]
  %vm2581 = vcmask 1046530
  %v2582 = vsel %vm2581, %v2580, %v2578
  %s2583 = scalar_lea.vmem %s0, 211
  %v2584 = vld [vmem:[%s2583] sm:$0x80]
  %vm2585 = vcmask 1047559
  %v2586 = vsel %vm2585, %v2584, %v2582
  %2587 = vrot.lane.b32.xlu0 %v2586, 108
  %v2588 = vpop.permute.xlu0 %2587
  %vm2589 = vcmask 31744
  %s2590 = scalar_lea.vmem %s1, 1832
  %2591 = vst.msk [vmem:[%s2590] ss:$-63 sm:$0x3] %vm2589, %v2588
  %s2592 = scalar_lea.vmem %s1, 2120
  %2593 = vst.msk [vmem:[%s2592] ss:$-63 sm:$0x7c] %vm2589, %v2588
  %s2594 = scalar_lea.vmem %s1, 1960
  %2595 = vst.msk [vmem:[%s2594] sm:$0x80] %vm2589, %v2588
  %s2596 = scalar_lea.vmem %s0, 235
  %s2597 = smov 3
  %v2598 = vld [vmem:[%s2596] ss:$-7 sm:%s2597]
  %s2599 = scalar_lea.vmem %s0, 267
  %v2600 = vld [vmem:[%s2599] ss:$-7 sm:$0x7c]
  %vm2601 = vcmask 1046530
  %v2602 = vsel %vm2601, %v2600, %v2598
  %s2603 = scalar_lea.vmem %s0, 243
  %v2604 = vld [vmem:[%s2603] sm:$0x80]
  %vm2605 = vcmask 1047559
  %v2606 = vsel %vm2605, %v2604, %v2602
  %2607 = vrot.lane.b32.xlu0 %v2606, 108
  %v2608 = vpop.permute.xlu0 %2607
  %vm2609 = vcmask 31744
  %s2610 = scalar_lea.vmem %s1, 2120
  %2611 = vst.msk [vmem:[%s2610] ss:$-63 sm:$0x3] %vm2609, %v2608
  %s2612 = scalar_lea.vmem %s1, 2408
  %2613 = vst.msk [vmem:[%s2612] ss:$-63 sm:$0x7c] %vm2609, %v2608
  %s2614 = scalar_lea.vmem %s1, 2248
  %2615 = vst.msk [vmem:[%s2614] sm:$0x80] %vm2609, %v2608
  %s2616 = scalar_lea.vmem %s0, 19
  %v2617 = vld [vmem:[%s2616] ss:$-7 sm:$0x7]
  %s2618 = scalar_lea.vmem %s0, 51
  %v2619 = vld [vmem:[%s2618] ss:$-7 sm:$0xf8]
  %vm2620 = vcmask 1047555
  %v2621 = vsel %vm2620, %v2619, %v2617
  %2622 = vrot.lane.b32.xlu0 %v2621, 108
  %v2623 = vpop.permute.xlu0 %2622
  %vm2624 = vcmask 31744
  %s2625 = scalar_lea.vmem %s1, 176
  %2626 = vst.msk [vmem:[%s2625] ss:$-63 sm:$0x7] %vm2624, %v2623
  %s2627 = scalar_lea.vmem %s1, 464
  %2628 = vst.msk [vmem:[%s2627] ss:$-63 sm:$0xf8] %vm2624, %v2623
  %s2629 = scalar_lea.vmem %s0, 51
  %v2630 = vld [vmem:[%s2629] ss:$-7 sm:$0x7]
  %s2631 = scalar_lea.vmem %s0, 83
  %v2632 = vld [vmem:[%s2631] ss:$-7 sm:$0xf8]
  %vm2633 = vcmask 1047555
  %v2634 = vsel %vm2633, %v2632, %v2630
  %2635 = vrot.lane.b32.xlu0 %v2634, 108
  %v2636 = vpop.permute.xlu0 %2635
  %vm2637 = vcmask 31744
  %s2638 = scalar_lea.vmem %s1, 464
  %2639 = vst.msk [vmem:[%s2638] ss:$-63 sm:$0x7] %vm2637, %v2636
  %s2640 = scalar_lea.vmem %s1, 752
  %2641 = vst.msk [vmem:[%s2640] ss:$-63 sm:$0xf8] %vm2637, %v2636
  %s2642 = scalar_lea.vmem %s0, 83
  %v2643 = vld [vmem:[%s2642] ss:$-7 sm:$0x7]
  %s2644 = scalar_lea.vmem %s0, 115
  %v2645 = vld [vmem:[%s2644] ss:$-7 sm:$0xf8]
  %vm2646 = vcmask 1047555
  %v2647 = vsel %vm2646, %v2645, %v2643
  %2648 = vrot.lane.b32.xlu0 %v2647, 108
  %v2649 = vpop.permute.xlu0 %2648
  %vm2650 = vcmask 31744
  %s2651 = scalar_lea.vmem %s1, 752
  %2652 = vst.msk [vmem:[%s2651] ss:$-63 sm:$0x7] %vm2650, %v2649
  %s2653 = scalar_lea.vmem %s1, 1040
  %2654 = vst.msk [vmem:[%s2653] ss:$-63 sm:$0xf8] %vm2650, %v2649
  %s2655 = scalar_lea.vmem %s0, 115
  %v2656 = vld [vmem:[%s2655] ss:$-7 sm:$0x7]
  %s2657 = scalar_lea.vmem %s0, 147
  %v2658 = vld [vmem:[%s2657] ss:$-7 sm:$0xf8]
  %vm2659 = vcmask 1047555
  %v2660 = vsel %vm2659, %v2658, %v2656
  %2661 = vrot.lane.b32.xlu0 %v2660, 108
  %v2662 = vpop.permute.xlu0 %2661
  %vm2663 = vcmask 31744
  %s2664 = scalar_lea.vmem %s1, 1040
  %2665 = vst.msk [vmem:[%s2664] ss:$-63 sm:$0x7] %vm2663, %v2662
  %s2666 = scalar_lea.vmem %s1, 1328
  %2667 = vst.msk [vmem:[%s2666] ss:$-63 sm:$0xf8] %vm2663, %v2662
  %s2668 = scalar_lea.vmem %s0, 147
  %v2669 = vld [vmem:[%s2668] ss:$-7 sm:$0x7]
  %s2670 = scalar_lea.vmem %s0, 179
  %v2671 = vld [vmem:[%s2670] ss:$-7 sm:$0xf8]
  %vm2672 = vcmask 1047555
  %v2673 = vsel %vm2672, %v2671, %v2669
  %2674 = vrot.lane.b32.xlu0 %v2673, 108
  %v2675 = vpop.permute.xlu0 %2674
  %vm2676 = vcmask 31744
  %s2677 = scalar_lea.vmem %s1, 1328
  %2678 = vst.msk [vmem:[%s2677] ss:$-63 sm:$0x7] %vm2676, %v2675
  %s2679 = scalar_lea.vmem %s1, 1616
  %2680 = vst.msk [vmem:[%s2679] ss:$-63 sm:$0xf8] %vm2676, %v2675
  %s2681 = scalar_lea.vmem %s0, 179
  %v2682 = vld [vmem:[%s2681] ss:$-7 sm:$0x7]
  %s2683 = scalar_lea.vmem %s0, 211
  %v2684 = vld [vmem:[%s2683] ss:$-7 sm:$0xf8]
  %vm2685 = vcmask 1047555
  %v2686 = vsel %vm2685, %v2684, %v2682
  %2687 = vrot.lane.b32.xlu0 %v2686, 108
  %v2688 = vpop.permute.xlu0 %2687
  %vm2689 = vcmask 31744
  %s2690 = scalar_lea.vmem %s1, 1616
  %2691 = vst.msk [vmem:[%s2690] ss:$-63 sm:$0x7] %vm2689, %v2688
  %s2692 = scalar_lea.vmem %s1, 1904
  %2693 = vst.msk [vmem:[%s2692] ss:$-63 sm:$0xf8] %vm2689, %v2688
  %s2694 = scalar_lea.vmem %s0, 211
  %v2695 = vld [vmem:[%s2694] ss:$-7 sm:$0x7]
  %s2696 = scalar_lea.vmem %s0, 243
  %v2697 = vld [vmem:[%s2696] ss:$-7 sm:$0xf8]
  %vm2698 = vcmask 1047555
  %v2699 = vsel %vm2698, %v2697, %v2695
  %2700 = vrot.lane.b32.xlu0 %v2699, 108
  %v2701 = vpop.permute.xlu0 %2700
  %vm2702 = vcmask 31744
  %s2703 = scalar_lea.vmem %s1, 1904
  %2704 = vst.msk [vmem:[%s2703] ss:$-63 sm:$0x7] %vm2702, %v2701
  %s2705 = scalar_lea.vmem %s1, 2192
  %2706 = vst.msk [vmem:[%s2705] ss:$-63 sm:$0xf8] %vm2702, %v2701
  %s2707 = scalar_lea.vmem %s0, 243
  %v2708 = vld [vmem:[%s2707] ss:$-7 sm:$0x7]
  %s2709 = scalar_lea.vmem %s0, 275
  %v2710 = vld [vmem:[%s2709] ss:$-7 sm:$0xf8]
  %vm2711 = vcmask 1047555
  %v2712 = vsel %vm2711, %v2710, %v2708
  %2713 = vrot.lane.b32.xlu0 %v2712, 108
  %v2714 = vpop.permute.xlu0 %2713
  %vm2715 = vcmask 31744
  %s2716 = scalar_lea.vmem %s1, 2192
  %2717 = vst.msk [vmem:[%s2716] ss:$-63 sm:$0x7] %vm2715, %v2714
  %s2718 = scalar_lea.vmem %s1, 2480
  %2719 = vst.msk [vmem:[%s2718] ss:$-63 sm:$0xf8] %vm2715, %v2714
  %s2720 = scalar_lea.vmem %s0, 27
  %v2721 = vld [vmem:[%s2720] ss:$-7 sm:$0xf]
  %s2722 = scalar_lea.vmem %s0, 59
  %v2723 = vld [vmem:[%s2722] ss:$-7 sm:$0xf0]
  %vm2724 = vcmask 1047556
  %v2725 = vsel %vm2724, %v2723, %v2721
  %2726 = vrot.lane.b32.xlu0 %v2725, 108
  %v2727 = vpop.permute.xlu0 %2726
  %vm2728 = vcmask 31744
  %s2729 = scalar_lea.vmem %s1, 248
  %2730 = vst.msk [vmem:[%s2729] ss:$-63 sm:$0xf] %vm2728, %v2727
  %s2731 = scalar_lea.vmem %s1, 536
  %2732 = vst.msk [vmem:[%s2731] ss:$-63 sm:$0xf0] %vm2728, %v2727
  %s2733 = scalar_lea.vmem %s0, 59
  %v2734 = vld [vmem:[%s2733] ss:$-7 sm:$0xf]
  %s2735 = scalar_lea.vmem %s0, 91
  %v2736 = vld [vmem:[%s2735] ss:$-7 sm:$0xf0]
  %vm2737 = vcmask 1047556
  %v2738 = vsel %vm2737, %v2736, %v2734
  %2739 = vrot.lane.b32.xlu0 %v2738, 108
  %v2740 = vpop.permute.xlu0 %2739
  %vm2741 = vcmask 31744
  %s2742 = scalar_lea.vmem %s1, 536
  %2743 = vst.msk [vmem:[%s2742] ss:$-63 sm:$0xf] %vm2741, %v2740
  %s2744 = scalar_lea.vmem %s1, 824
  %2745 = vst.msk [vmem:[%s2744] ss:$-63 sm:$0xf0] %vm2741, %v2740
  %s2746 = scalar_lea.vmem %s0, 91
  %v2747 = vld [vmem:[%s2746] ss:$-7 sm:$0xf]
  %s2748 = scalar_lea.vmem %s0, 123
  %v2749 = vld [vmem:[%s2748] ss:$-7 sm:$0xf0]
  %vm2750 = vcmask 1047556
  %v2751 = vsel %vm2750, %v2749, %v2747
  %2752 = vrot.lane.b32.xlu0 %v2751, 108
  %v2753 = vpop.permute.xlu0 %2752
  %vm2754 = vcmask 31744
  %s2755 = scalar_lea.vmem %s1, 824
  %2756 = vst.msk [vmem:[%s2755] ss:$-63 sm:$0xf] %vm2754, %v2753
  %s2757 = scalar_lea.vmem %s1, 1112
  %2758 = vst.msk [vmem:[%s2757] ss:$-63 sm:$0xf0] %vm2754, %v2753
  %s2759 = scalar_lea.vmem %s0, 123
  %v2760 = vld [vmem:[%s2759] ss:$-7 sm:$0xf]
  %s2761 = scalar_lea.vmem %s0, 155
  %v2762 = vld [vmem:[%s2761] ss:$-7 sm:$0xf0]
  %vm2763 = vcmask 1047556
  %v2764 = vsel %vm2763, %v2762, %v2760
  %2765 = vrot.lane.b32.xlu0 %v2764, 108
  %v2766 = vpop.permute.xlu0 %2765
  %vm2767 = vcmask 31744
  %s2768 = scalar_lea.vmem %s1, 1112
  %2769 = vst.msk [vmem:[%s2768] ss:$-63 sm:$0xf] %vm2767, %v2766
  %s2770 = scalar_lea.vmem %s1, 1400
  %2771 = vst.msk [vmem:[%s2770] ss:$-63 sm:$0xf0] %vm2767, %v2766
  %s2772 = scalar_lea.vmem %s0, 155
  %v2773 = vld [vmem:[%s2772] ss:$-7 sm:$0xf]
  %s2774 = scalar_lea.vmem %s0, 187
  %v2775 = vld [vmem:[%s2774] ss:$-7 sm:$0xf0]
  %vm2776 = vcmask 1047556
  %v2777 = vsel %vm2776, %v2775, %v2773
  %2778 = vrot.lane.b32.xlu0 %v2777, 108
  %v2779 = vpop.permute.xlu0 %2778
  %vm2780 = vcmask 31744
  %s2781 = scalar_lea.vmem %s1, 1400
  %2782 = vst.msk [vmem:[%s2781] ss:$-63 sm:$0xf] %vm2780, %v2779
  %s2783 = scalar_lea.vmem %s1, 1688
  %2784 = vst.msk [vmem:[%s2783] ss:$-63 sm:$0xf0] %vm2780, %v2779
  %s2785 = scalar_lea.vmem %s0, 187
  %v2786 = vld [vmem:[%s2785] ss:$-7 sm:$0xf]
  %s2787 = scalar_lea.vmem %s0, 219
  %v2788 = vld [vmem:[%s2787] ss:$-7 sm:$0xf0]
  %vm2789 = vcmask 1047556
  %v2790 = vsel %vm2789, %v2788, %v2786
  %2791 = vrot.lane.b32.xlu0 %v2790, 108
  %v2792 = vpop.permute.xlu0 %2791
  %vm2793 = vcmask 31744
  %s2794 = scalar_lea.vmem %s1, 1688
  %2795 = vst.msk [vmem:[%s2794] ss:$-63 sm:$0xf] %vm2793, %v2792
  %s2796 = scalar_lea.vmem %s1, 1976
  %2797 = vst.msk [vmem:[%s2796] ss:$-63 sm:$0xf0] %vm2793, %v2792
  %s2798 = scalar_lea.vmem %s0, 219
  %v2799 = vld [vmem:[%s2798] ss:$-7 sm:$0xf]
  %s2800 = scalar_lea.vmem %s0, 251
  %v2801 = vld [vmem:[%s2800] ss:$-7 sm:$0xf0]
  %vm2802 = vcmask 1047556
  %v2803 = vsel %vm2802, %v2801, %v2799
  %2804 = vrot.lane.b32.xlu0 %v2803, 108
  %v2805 = vpop.permute.xlu0 %2804
  %vm2806 = vcmask 31744
  %s2807 = scalar_lea.vmem %s1, 1976
  %2808 = vst.msk [vmem:[%s2807] ss:$-63 sm:$0xf] %vm2806, %v2805
  %s2809 = scalar_lea.vmem %s1, 2264
  %2810 = vst.msk [vmem:[%s2809] ss:$-63 sm:$0xf0] %vm2806, %v2805
  %s2811 = scalar_lea.vmem %s0, 251
  %v2812 = vld [vmem:[%s2811] ss:$-7 sm:$0xf]
  %s2813 = scalar_lea.vmem %s0, 283
  %v2814 = vld [vmem:[%s2813] ss:$-7 sm:$0xf0]
  %vm2815 = vcmask 1047556
  %v2816 = vsel %vm2815, %v2814, %v2812
  %2817 = vrot.lane.b32.xlu0 %v2816, 108
  %v2818 = vpop.permute.xlu0 %2817
  %vm2819 = vcmask 31744
  %s2820 = scalar_lea.vmem %s1, 2264
  %2821 = vst.msk [vmem:[%s2820] ss:$-63 sm:$0xf] %vm2819, %v2818
  %s2822 = scalar_lea.vmem %s1, 2552
  %2823 = vst.msk [vmem:[%s2822] ss:$-63 sm:$0xf0] %vm2819, %v2818
  %s2824 = scalar_lea.vmem %s0, 10
  %s2825 = smov 3
  %v2826 = vld [vmem:[%s2824] ss:$-7 sm:%s2825]
  %s2827 = scalar_lea.vmem %s0, 42
  %v2828 = vld [vmem:[%s2827] ss:$-7 sm:$0x7c]
  %vm2829 = vcmask 1046530
  %v2830 = vsel %vm2829, %v2828, %v2826
  %s2831 = scalar_lea.vmem %s0, 18
  %v2832 = vld [vmem:[%s2831] sm:$0x80]
  %vm2833 = vcmask 1047559
  %v2834 = vsel %vm2833, %v2832, %v2830
  %2835 = vrot.lane.b32.xlu0 %v2834, 104
  %v2836 = vpop.permute.xlu0 %2835
  %vm2837 = vcmask 31744
  %s2838 = scalar_lea.vmem %s1, 96
  %2839 = vst.msk [vmem:[%s2838] ss:$-63 sm:$0x3] %vm2837, %v2836
  %s2840 = scalar_lea.vmem %s1, 384
  %2841 = vst.msk [vmem:[%s2840] ss:$-63 sm:$0x7c] %vm2837, %v2836
  %s2842 = scalar_lea.vmem %s1, 224
  %2843 = vst.msk [vmem:[%s2842] sm:$0x80] %vm2837, %v2836
  %s2844 = scalar_lea.vmem %s0, 42
  %s2845 = smov 3
  %v2846 = vld [vmem:[%s2844] ss:$-7 sm:%s2845]
  %s2847 = scalar_lea.vmem %s0, 74
  %v2848 = vld [vmem:[%s2847] ss:$-7 sm:$0x7c]
  %vm2849 = vcmask 1046530
  %v2850 = vsel %vm2849, %v2848, %v2846
  %s2851 = scalar_lea.vmem %s0, 50
  %v2852 = vld [vmem:[%s2851] sm:$0x80]
  %vm2853 = vcmask 1047559
  %v2854 = vsel %vm2853, %v2852, %v2850
  %2855 = vrot.lane.b32.xlu0 %v2854, 104
  %v2856 = vpop.permute.xlu0 %2855
  %vm2857 = vcmask 31744
  %s2858 = scalar_lea.vmem %s1, 384
  %2859 = vst.msk [vmem:[%s2858] ss:$-63 sm:$0x3] %vm2857, %v2856
  %s2860 = scalar_lea.vmem %s1, 672
  %2861 = vst.msk [vmem:[%s2860] ss:$-63 sm:$0x7c] %vm2857, %v2856
  %s2862 = scalar_lea.vmem %s1, 512
  %2863 = vst.msk [vmem:[%s2862] sm:$0x80] %vm2857, %v2856
  %s2864 = scalar_lea.vmem %s0, 74
  %s2865 = smov 3
  %v2866 = vld [vmem:[%s2864] ss:$-7 sm:%s2865]
  %s2867 = scalar_lea.vmem %s0, 106
  %v2868 = vld [vmem:[%s2867] ss:$-7 sm:$0x7c]
  %vm2869 = vcmask 1046530
  %v2870 = vsel %vm2869, %v2868, %v2866
  %s2871 = scalar_lea.vmem %s0, 82
  %v2872 = vld [vmem:[%s2871] sm:$0x80]
  %vm2873 = vcmask 1047559
  %v2874 = vsel %vm2873, %v2872, %v2870
  %2875 = vrot.lane.b32.xlu0 %v2874, 104
  %v2876 = vpop.permute.xlu0 %2875
  %vm2877 = vcmask 31744
  %s2878 = scalar_lea.vmem %s1, 672
  %2879 = vst.msk [vmem:[%s2878] ss:$-63 sm:$0x3] %vm2877, %v2876
  %s2880 = scalar_lea.vmem %s1, 960
  %2881 = vst.msk [vmem:[%s2880] ss:$-63 sm:$0x7c] %vm2877, %v2876
  %s2882 = scalar_lea.vmem %s1, 800
  %2883 = vst.msk [vmem:[%s2882] sm:$0x80] %vm2877, %v2876
  %s2884 = scalar_lea.vmem %s0, 106
  %s2885 = smov 3
  %v2886 = vld [vmem:[%s2884] ss:$-7 sm:%s2885]
  %s2887 = scalar_lea.vmem %s0, 138
  %v2888 = vld [vmem:[%s2887] ss:$-7 sm:$0x7c]
  %vm2889 = vcmask 1046530
  %v2890 = vsel %vm2889, %v2888, %v2886
  %s2891 = scalar_lea.vmem %s0, 114
  %v2892 = vld [vmem:[%s2891] sm:$0x80]
  %vm2893 = vcmask 1047559
  %v2894 = vsel %vm2893, %v2892, %v2890
  %2895 = vrot.lane.b32.xlu0 %v2894, 104
  %v2896 = vpop.permute.xlu0 %2895
  %vm2897 = vcmask 31744
  %s2898 = scalar_lea.vmem %s1, 960
  %2899 = vst.msk [vmem:[%s2898] ss:$-63 sm:$0x3] %vm2897, %v2896
  %s2900 = scalar_lea.vmem %s1, 1248
  %2901 = vst.msk [vmem:[%s2900] ss:$-63 sm:$0x7c] %vm2897, %v2896
  %s2902 = scalar_lea.vmem %s1, 1088
  %2903 = vst.msk [vmem:[%s2902] sm:$0x80] %vm2897, %v2896
  %s2904 = scalar_lea.vmem %s0, 138
  %s2905 = smov 3
  %v2906 = vld [vmem:[%s2904] ss:$-7 sm:%s2905]
  %s2907 = scalar_lea.vmem %s0, 170
  %v2908 = vld [vmem:[%s2907] ss:$-7 sm:$0x7c]
  %vm2909 = vcmask 1046530
  %v2910 = vsel %vm2909, %v2908, %v2906
  %s2911 = scalar_lea.vmem %s0, 146
  %v2912 = vld [vmem:[%s2911] sm:$0x80]
  %vm2913 = vcmask 1047559
  %v2914 = vsel %vm2913, %v2912, %v2910
  %2915 = vrot.lane.b32.xlu0 %v2914, 104
  %v2916 = vpop.permute.xlu0 %2915
  %vm2917 = vcmask 31744
  %s2918 = scalar_lea.vmem %s1, 1248
  %2919 = vst.msk [vmem:[%s2918] ss:$-63 sm:$0x3] %vm2917, %v2916
  %s2920 = scalar_lea.vmem %s1, 1536
  %2921 = vst.msk [vmem:[%s2920] ss:$-63 sm:$0x7c] %vm2917, %v2916
  %s2922 = scalar_lea.vmem %s1, 1376
  %2923 = vst.msk [vmem:[%s2922] sm:$0x80] %vm2917, %v2916
  %s2924 = scalar_lea.vmem %s0, 170
  %s2925 = smov 3
  %v2926 = vld [vmem:[%s2924] ss:$-7 sm:%s2925]
  %s2927 = scalar_lea.vmem %s0, 202
  %v2928 = vld [vmem:[%s2927] ss:$-7 sm:$0x7c]
  %vm2929 = vcmask 1046530
  %v2930 = vsel %vm2929, %v2928, %v2926
  %s2931 = scalar_lea.vmem %s0, 178
  %v2932 = vld [vmem:[%s2931] sm:$0x80]
  %vm2933 = vcmask 1047559
  %v2934 = vsel %vm2933, %v2932, %v2930
  %2935 = vrot.lane.b32.xlu0 %v2934, 104
  %v2936 = vpop.permute.xlu0 %2935
  %vm2937 = vcmask 31744
  %s2938 = scalar_lea.vmem %s1, 1536
  %2939 = vst.msk [vmem:[%s2938] ss:$-63 sm:$0x3] %vm2937, %v2936
  %s2940 = scalar_lea.vmem %s1, 1824
  %2941 = vst.msk [vmem:[%s2940] ss:$-63 sm:$0x7c] %vm2937, %v2936
  %s2942 = scalar_lea.vmem %s1, 1664
  %2943 = vst.msk [vmem:[%s2942] sm:$0x80] %vm2937, %v2936
  %s2944 = scalar_lea.vmem %s0, 202
  %s2945 = smov 3
  %v2946 = vld [vmem:[%s2944] ss:$-7 sm:%s2945]
  %s2947 = scalar_lea.vmem %s0, 234
  %v2948 = vld [vmem:[%s2947] ss:$-7 sm:$0x7c]
  %vm2949 = vcmask 1046530
  %v2950 = vsel %vm2949, %v2948, %v2946
  %s2951 = scalar_lea.vmem %s0, 210
  %v2952 = vld [vmem:[%s2951] sm:$0x80]
  %vm2953 = vcmask 1047559
  %v2954 = vsel %vm2953, %v2952, %v2950
  %2955 = vrot.lane.b32.xlu0 %v2954, 104
  %v2956 = vpop.permute.xlu0 %2955
  %vm2957 = vcmask 31744
  %s2958 = scalar_lea.vmem %s1, 1824
  %2959 = vst.msk [vmem:[%s2958] ss:$-63 sm:$0x3] %vm2957, %v2956
  %s2960 = scalar_lea.vmem %s1, 2112
  %2961 = vst.msk [vmem:[%s2960] ss:$-63 sm:$0x7c] %vm2957, %v2956
  %s2962 = scalar_lea.vmem %s1, 1952
  %2963 = vst.msk [vmem:[%s2962] sm:$0x80] %vm2957, %v2956
  %s2964 = scalar_lea.vmem %s0, 234
  %s2965 = smov 3
  %v2966 = vld [vmem:[%s2964] ss:$-7 sm:%s2965]
  %s2967 = scalar_lea.vmem %s0, 266
  %v2968 = vld [vmem:[%s2967] ss:$-7 sm:$0x7c]
  %vm2969 = vcmask 1046530
  %v2970 = vsel %vm2969, %v2968, %v2966
  %s2971 = scalar_lea.vmem %s0, 242
  %v2972 = vld [vmem:[%s2971] sm:$0x80]
  %vm2973 = vcmask 1047559
  %v2974 = vsel %vm2973, %v2972, %v2970
  %2975 = vrot.lane.b32.xlu0 %v2974, 104
  %v2976 = vpop.permute.xlu0 %2975
  %vm2977 = vcmask 31744
  %s2978 = scalar_lea.vmem %s1, 2112
  %2979 = vst.msk [vmem:[%s2978] ss:$-63 sm:$0x3] %vm2977, %v2976
  %s2980 = scalar_lea.vmem %s1, 2400
  %2981 = vst.msk [vmem:[%s2980] ss:$-63 sm:$0x7c] %vm2977, %v2976
  %s2982 = scalar_lea.vmem %s1, 2240
  %2983 = vst.msk [vmem:[%s2982] sm:$0x80] %vm2977, %v2976
  %s2984 = scalar_lea.vmem %s0, 18
  %v2985 = vld [vmem:[%s2984] ss:$-7 sm:$0x7]
  %s2986 = scalar_lea.vmem %s0, 50
  %v2987 = vld [vmem:[%s2986] ss:$-7 sm:$0xf8]
  %vm2988 = vcmask 1047555
  %v2989 = vsel %vm2988, %v2987, %v2985
  %2990 = vrot.lane.b32.xlu0 %v2989, 104
  %v2991 = vpop.permute.xlu0 %2990
  %vm2992 = vcmask 31744
  %s2993 = scalar_lea.vmem %s1, 168
  %2994 = vst.msk [vmem:[%s2993] ss:$-63 sm:$0x7] %vm2992, %v2991
  %s2995 = scalar_lea.vmem %s1, 456
  %2996 = vst.msk [vmem:[%s2995] ss:$-63 sm:$0xf8] %vm2992, %v2991
  %s2997 = scalar_lea.vmem %s0, 50
  %v2998 = vld [vmem:[%s2997] ss:$-7 sm:$0x7]
  %s2999 = scalar_lea.vmem %s0, 82
  %v3000 = vld [vmem:[%s2999] ss:$-7 sm:$0xf8]
  %vm3001 = vcmask 1047555
  %v3002 = vsel %vm3001, %v3000, %v2998
  %3003 = vrot.lane.b32.xlu0 %v3002, 104
  %v3004 = vpop.permute.xlu0 %3003
  %vm3005 = vcmask 31744
  %s3006 = scalar_lea.vmem %s1, 456
  %3007 = vst.msk [vmem:[%s3006] ss:$-63 sm:$0x7] %vm3005, %v3004
  %s3008 = scalar_lea.vmem %s1, 744
  %3009 = vst.msk [vmem:[%s3008] ss:$-63 sm:$0xf8] %vm3005, %v3004
  %s3010 = scalar_lea.vmem %s0, 82
  %v3011 = vld [vmem:[%s3010] ss:$-7 sm:$0x7]
  %s3012 = scalar_lea.vmem %s0, 114
  %v3013 = vld [vmem:[%s3012] ss:$-7 sm:$0xf8]
  %vm3014 = vcmask 1047555
  %v3015 = vsel %vm3014, %v3013, %v3011
  %3016 = vrot.lane.b32.xlu0 %v3015, 104
  %v3017 = vpop.permute.xlu0 %3016
  %vm3018 = vcmask 31744
  %s3019 = scalar_lea.vmem %s1, 744
  %3020 = vst.msk [vmem:[%s3019] ss:$-63 sm:$0x7] %vm3018, %v3017
  %s3021 = scalar_lea.vmem %s1, 1032
  %3022 = vst.msk [vmem:[%s3021] ss:$-63 sm:$0xf8] %vm3018, %v3017
  %s3023 = scalar_lea.vmem %s0, 114
  %v3024 = vld [vmem:[%s3023] ss:$-7 sm:$0x7]
  %s3025 = scalar_lea.vmem %s0, 146
  %v3026 = vld [vmem:[%s3025] ss:$-7 sm:$0xf8]
  %vm3027 = vcmask 1047555
  %v3028 = vsel %vm3027, %v3026, %v3024
  %3029 = vrot.lane.b32.xlu0 %v3028, 104
  %v3030 = vpop.permute.xlu0 %3029
  %vm3031 = vcmask 31744
  %s3032 = scalar_lea.vmem %s1, 1032
  %3033 = vst.msk [vmem:[%s3032] ss:$-63 sm:$0x7] %vm3031, %v3030
  %s3034 = scalar_lea.vmem %s1, 1320
  %3035 = vst.msk [vmem:[%s3034] ss:$-63 sm:$0xf8] %vm3031, %v3030
  %s3036 = scalar_lea.vmem %s0, 146
  %v3037 = vld [vmem:[%s3036] ss:$-7 sm:$0x7]
  %s3038 = scalar_lea.vmem %s0, 178
  %v3039 = vld [vmem:[%s3038] ss:$-7 sm:$0xf8]
  %vm3040 = vcmask 1047555
  %v3041 = vsel %vm3040, %v3039, %v3037
  %3042 = vrot.lane.b32.xlu0 %v3041, 104
  %v3043 = vpop.permute.xlu0 %3042
  %vm3044 = vcmask 31744
  %s3045 = scalar_lea.vmem %s1, 1320
  %3046 = vst.msk [vmem:[%s3045] ss:$-63 sm:$0x7] %vm3044, %v3043
  %s3047 = scalar_lea.vmem %s1, 1608
  %3048 = vst.msk [vmem:[%s3047] ss:$-63 sm:$0xf8] %vm3044, %v3043
  %s3049 = scalar_lea.vmem %s0, 178
  %v3050 = vld [vmem:[%s3049] ss:$-7 sm:$0x7]
  %s3051 = scalar_lea.vmem %s0, 210
  %v3052 = vld [vmem:[%s3051] ss:$-7 sm:$0xf8]
  %vm3053 = vcmask 1047555
  %v3054 = vsel %vm3053, %v3052, %v3050
  %3055 = vrot.lane.b32.xlu0 %v3054, 104
  %v3056 = vpop.permute.xlu0 %3055
  %vm3057 = vcmask 31744
  %s3058 = scalar_lea.vmem %s1, 1608
  %3059 = vst.msk [vmem:[%s3058] ss:$-63 sm:$0x7] %vm3057, %v3056
  %s3060 = scalar_lea.vmem %s1, 1896
  %3061 = vst.msk [vmem:[%s3060] ss:$-63 sm:$0xf8] %vm3057, %v3056
  %s3062 = scalar_lea.vmem %s0, 210
  %v3063 = vld [vmem:[%s3062] ss:$-7 sm:$0x7]
  %s3064 = scalar_lea.vmem %s0, 242
  %v3065 = vld [vmem:[%s3064] ss:$-7 sm:$0xf8]
  %vm3066 = vcmask 1047555
  %v3067 = vsel %vm3066, %v3065, %v3063
  %3068 = vrot.lane.b32.xlu0 %v3067, 104
  %v3069 = vpop.permute.xlu0 %3068
  %vm3070 = vcmask 31744
  %s3071 = scalar_lea.vmem %s1, 1896
  %3072 = vst.msk [vmem:[%s3071] ss:$-63 sm:$0x7] %vm3070, %v3069
  %s3073 = scalar_lea.vmem %s1, 2184
  %3074 = vst.msk [vmem:[%s3073] ss:$-63 sm:$0xf8] %vm3070, %v3069
  %s3075 = scalar_lea.vmem %s0, 242
  %v3076 = vld [vmem:[%s3075] ss:$-7 sm:$0x7]
  %s3077 = scalar_lea.vmem %s0, 274
  %v3078 = vld [vmem:[%s3077] ss:$-7 sm:$0xf8]
  %vm3079 = vcmask 1047555
  %v3080 = vsel %vm3079, %v3078, %v3076
  %3081 = vrot.lane.b32.xlu0 %v3080, 104
  %v3082 = vpop.permute.xlu0 %3081
  %vm3083 = vcmask 31744
  %s3084 = scalar_lea.vmem %s1, 2184
  %3085 = vst.msk [vmem:[%s3084] ss:$-63 sm:$0x7] %vm3083, %v3082
  %s3086 = scalar_lea.vmem %s1, 2472
  %3087 = vst.msk [vmem:[%s3086] ss:$-63 sm:$0xf8] %vm3083, %v3082
  %s3088 = scalar_lea.vmem %s0, 26
  %v3089 = vld [vmem:[%s3088] ss:$-7 sm:$0xf]
  %s3090 = scalar_lea.vmem %s0, 58
  %v3091 = vld [vmem:[%s3090] ss:$-7 sm:$0xf0]
  %vm3092 = vcmask 1047556
  %v3093 = vsel %vm3092, %v3091, %v3089
  %3094 = vrot.lane.b32.xlu0 %v3093, 104
  %v3095 = vpop.permute.xlu0 %3094
  %vm3096 = vcmask 31744
  %s3097 = scalar_lea.vmem %s1, 240
  %3098 = vst.msk [vmem:[%s3097] ss:$-63 sm:$0xf] %vm3096, %v3095
  %s3099 = scalar_lea.vmem %s1, 528
  %3100 = vst.msk [vmem:[%s3099] ss:$-63 sm:$0xf0] %vm3096, %v3095
  %s3101 = scalar_lea.vmem %s0, 58
  %v3102 = vld [vmem:[%s3101] ss:$-7 sm:$0xf]
  %s3103 = scalar_lea.vmem %s0, 90
  %v3104 = vld [vmem:[%s3103] ss:$-7 sm:$0xf0]
  %vm3105 = vcmask 1047556
  %v3106 = vsel %vm3105, %v3104, %v3102
  %3107 = vrot.lane.b32.xlu0 %v3106, 104
  %v3108 = vpop.permute.xlu0 %3107
  %vm3109 = vcmask 31744
  %s3110 = scalar_lea.vmem %s1, 528
  %3111 = vst.msk [vmem:[%s3110] ss:$-63 sm:$0xf] %vm3109, %v3108
  %s3112 = scalar_lea.vmem %s1, 816
  %3113 = vst.msk [vmem:[%s3112] ss:$-63 sm:$0xf0] %vm3109, %v3108
  %s3114 = scalar_lea.vmem %s0, 90
  %v3115 = vld [vmem:[%s3114] ss:$-7 sm:$0xf]
  %s3116 = scalar_lea.vmem %s0, 122
  %v3117 = vld [vmem:[%s3116] ss:$-7 sm:$0xf0]
  %vm3118 = vcmask 1047556
  %v3119 = vsel %vm3118, %v3117, %v3115
  %3120 = vrot.lane.b32.xlu0 %v3119, 104
  %v3121 = vpop.permute.xlu0 %3120
  %vm3122 = vcmask 31744
  %s3123 = scalar_lea.vmem %s1, 816
  %3124 = vst.msk [vmem:[%s3123] ss:$-63 sm:$0xf] %vm3122, %v3121
  %s3125 = scalar_lea.vmem %s1, 1104
  %3126 = vst.msk [vmem:[%s3125] ss:$-63 sm:$0xf0] %vm3122, %v3121
  %s3127 = scalar_lea.vmem %s0, 122
  %v3128 = vld [vmem:[%s3127] ss:$-7 sm:$0xf]
  %s3129 = scalar_lea.vmem %s0, 154
  %v3130 = vld [vmem:[%s3129] ss:$-7 sm:$0xf0]
  %vm3131 = vcmask 1047556
  %v3132 = vsel %vm3131, %v3130, %v3128
  %3133 = vrot.lane.b32.xlu0 %v3132, 104
  %v3134 = vpop.permute.xlu0 %3133
  %vm3135 = vcmask 31744
  %s3136 = scalar_lea.vmem %s1, 1104
  %3137 = vst.msk [vmem:[%s3136] ss:$-63 sm:$0xf] %vm3135, %v3134
  %s3138 = scalar_lea.vmem %s1, 1392
  %3139 = vst.msk [vmem:[%s3138] ss:$-63 sm:$0xf0] %vm3135, %v3134
  %s3140 = scalar_lea.vmem %s0, 154
  %v3141 = vld [vmem:[%s3140] ss:$-7 sm:$0xf]
  %s3142 = scalar_lea.vmem %s0, 186
  %v3143 = vld [vmem:[%s3142] ss:$-7 sm:$0xf0]
  %vm3144 = vcmask 1047556
  %v3145 = vsel %vm3144, %v3143, %v3141
  %3146 = vrot.lane.b32.xlu0 %v3145, 104
  %v3147 = vpop.permute.xlu0 %3146
  %vm3148 = vcmask 31744
  %s3149 = scalar_lea.vmem %s1, 1392
  %3150 = vst.msk [vmem:[%s3149] ss:$-63 sm:$0xf] %vm3148, %v3147
  %s3151 = scalar_lea.vmem %s1, 1680
  %3152 = vst.msk [vmem:[%s3151] ss:$-63 sm:$0xf0] %vm3148, %v3147
  %s3153 = scalar_lea.vmem %s0, 186
  %v3154 = vld [vmem:[%s3153] ss:$-7 sm:$0xf]
  %s3155 = scalar_lea.vmem %s0, 218
  %v3156 = vld [vmem:[%s3155] ss:$-7 sm:$0xf0]
  %vm3157 = vcmask 1047556
  %v3158 = vsel %vm3157, %v3156, %v3154
  %3159 = vrot.lane.b32.xlu0 %v3158, 104
  %v3160 = vpop.permute.xlu0 %3159
  %vm3161 = vcmask 31744
  %s3162 = scalar_lea.vmem %s1, 1680
  %3163 = vst.msk [vmem:[%s3162] ss:$-63 sm:$0xf] %vm3161, %v3160
  %s3164 = scalar_lea.vmem %s1, 1968
  %3165 = vst.msk [vmem:[%s3164] ss:$-63 sm:$0xf0] %vm3161, %v3160
  %s3166 = scalar_lea.vmem %s0, 218
  %v3167 = vld [vmem:[%s3166] ss:$-7 sm:$0xf]
  %s3168 = scalar_lea.vmem %s0, 250
  %v3169 = vld [vmem:[%s3168] ss:$-7 sm:$0xf0]
  %vm3170 = vcmask 1047556
  %v3171 = vsel %vm3170, %v3169, %v3167
  %3172 = vrot.lane.b32.xlu0 %v3171, 104
  %v3173 = vpop.permute.xlu0 %3172
  %vm3174 = vcmask 31744
  %s3175 = scalar_lea.vmem %s1, 1968
  %3176 = vst.msk [vmem:[%s3175] ss:$-63 sm:$0xf] %vm3174, %v3173
  %s3177 = scalar_lea.vmem %s1, 2256
  %3178 = vst.msk [vmem:[%s3177] ss:$-63 sm:$0xf0] %vm3174, %v3173
  %s3179 = scalar_lea.vmem %s0, 250
  %v3180 = vld [vmem:[%s3179] ss:$-7 sm:$0xf]
  %s3181 = scalar_lea.vmem %s0, 282
  %v3182 = vld [vmem:[%s3181] ss:$-7 sm:$0xf0]
  %vm3183 = vcmask 1047556
  %v3184 = vsel %vm3183, %v3182, %v3180
  %3185 = vrot.lane.b32.xlu0 %v3184, 104
  %v3186 = vpop.permute.xlu0 %3185
  %vm3187 = vcmask 31744
  %s3188 = scalar_lea.vmem %s1, 2256
  %3189 = vst.msk [vmem:[%s3188] ss:$-63 sm:$0xf] %vm3187, %v3186
  %s3190 = scalar_lea.vmem %s1, 2544
  %3191 = vst.msk [vmem:[%s3190] ss:$-63 sm:$0xf0] %vm3187, %v3186
  %s3192 = scalar_lea.vmem %s0, 2
  %s3193 = smov 3
  %v3194 = vld [vmem:[%s3192] ss:$25 sm:%s3193]
  %s3195 = scalar_lea.vmem %s0, 34
  %v3196 = vld [vmem:[%s3195] ss:$-7 sm:$0x1c]
  %vm3197 = vcmask 1044482
  %v3198 = vsel %vm3197, %v3196, %v3194
  %s3199 = scalar_lea.vmem %s0, 66
  %v3200 = vld [vmem:[%s3199] ss:$-7 sm:$0xe0]
  %vm3201 = vcmask 1047557
  %v3202 = vsel %vm3201, %v3200, %v3198
  %3203 = vrot.lane.b32.xlu0 %v3202, 104
  %v3204 = vpop.permute.xlu0 %3203
  %vm3205 = vcmask 31744
  %s3206 = scalar_lea.vmem %s1, 24
  %3207 = vst.msk [vmem:[%s3206] ss:$225 sm:$0x3] %vm3205, %v3204
  %s3208 = scalar_lea.vmem %s1, 312
  %3209 = vst.msk [vmem:[%s3208] ss:$-63 sm:$0x1c] %vm3205, %v3204
  %s3210 = scalar_lea.vmem %s1, 600
  %3211 = vst.msk [vmem:[%s3210] ss:$-63 sm:$0xe0] %vm3205, %v3204
  %s3212 = scalar_lea.vmem %s0, 34
  %s3213 = smov 3
  %v3214 = vld [vmem:[%s3212] ss:$25 sm:%s3213]
  %s3215 = scalar_lea.vmem %s0, 66
  %v3216 = vld [vmem:[%s3215] ss:$-7 sm:$0x1c]
  %vm3217 = vcmask 1044482
  %v3218 = vsel %vm3217, %v3216, %v3214
  %s3219 = scalar_lea.vmem %s0, 98
  %v3220 = vld [vmem:[%s3219] ss:$-7 sm:$0xe0]
  %vm3221 = vcmask 1047557
  %v3222 = vsel %vm3221, %v3220, %v3218
  %3223 = vrot.lane.b32.xlu0 %v3222, 104
  %v3224 = vpop.permute.xlu0 %3223
  %vm3225 = vcmask 31744
  %s3226 = scalar_lea.vmem %s1, 312
  %3227 = vst.msk [vmem:[%s3226] ss:$225 sm:$0x3] %vm3225, %v3224
  %s3228 = scalar_lea.vmem %s1, 600
  %3229 = vst.msk [vmem:[%s3228] ss:$-63 sm:$0x1c] %vm3225, %v3224
  %s3230 = scalar_lea.vmem %s1, 888
  %3231 = vst.msk [vmem:[%s3230] ss:$-63 sm:$0xe0] %vm3225, %v3224
  %s3232 = scalar_lea.vmem %s0, 66
  %s3233 = smov 3
  %v3234 = vld [vmem:[%s3232] ss:$25 sm:%s3233]
  %s3235 = scalar_lea.vmem %s0, 98
  %v3236 = vld [vmem:[%s3235] ss:$-7 sm:$0x1c]
  %vm3237 = vcmask 1044482
  %v3238 = vsel %vm3237, %v3236, %v3234
  %s3239 = scalar_lea.vmem %s0, 130
  %v3240 = vld [vmem:[%s3239] ss:$-7 sm:$0xe0]
  %vm3241 = vcmask 1047557
  %v3242 = vsel %vm3241, %v3240, %v3238
  %3243 = vrot.lane.b32.xlu0 %v3242, 104
  %v3244 = vpop.permute.xlu0 %3243
  %vm3245 = vcmask 31744
  %s3246 = scalar_lea.vmem %s1, 600
  %3247 = vst.msk [vmem:[%s3246] ss:$225 sm:$0x3] %vm3245, %v3244
  %s3248 = scalar_lea.vmem %s1, 888
  %3249 = vst.msk [vmem:[%s3248] ss:$-63 sm:$0x1c] %vm3245, %v3244
  %s3250 = scalar_lea.vmem %s1, 1176
  %3251 = vst.msk [vmem:[%s3250] ss:$-63 sm:$0xe0] %vm3245, %v3244
  %s3252 = scalar_lea.vmem %s0, 98
  %s3253 = smov 3
  %v3254 = vld [vmem:[%s3252] ss:$25 sm:%s3253]
  %s3255 = scalar_lea.vmem %s0, 130
  %v3256 = vld [vmem:[%s3255] ss:$-7 sm:$0x1c]
  %vm3257 = vcmask 1044482
  %v3258 = vsel %vm3257, %v3256, %v3254
  %s3259 = scalar_lea.vmem %s0, 162
  %v3260 = vld [vmem:[%s3259] ss:$-7 sm:$0xe0]
  %vm3261 = vcmask 1047557
  %v3262 = vsel %vm3261, %v3260, %v3258
  %3263 = vrot.lane.b32.xlu0 %v3262, 104
  %v3264 = vpop.permute.xlu0 %3263
  %vm3265 = vcmask 31744
  %s3266 = scalar_lea.vmem %s1, 888
  %3267 = vst.msk [vmem:[%s3266] ss:$225 sm:$0x3] %vm3265, %v3264
  %s3268 = scalar_lea.vmem %s1, 1176
  %3269 = vst.msk [vmem:[%s3268] ss:$-63 sm:$0x1c] %vm3265, %v3264
  %s3270 = scalar_lea.vmem %s1, 1464
  %3271 = vst.msk [vmem:[%s3270] ss:$-63 sm:$0xe0] %vm3265, %v3264
  %s3272 = scalar_lea.vmem %s0, 130
  %s3273 = smov 3
  %v3274 = vld [vmem:[%s3272] ss:$25 sm:%s3273]
  %s3275 = scalar_lea.vmem %s0, 162
  %v3276 = vld [vmem:[%s3275] ss:$-7 sm:$0x1c]
  %vm3277 = vcmask 1044482
  %v3278 = vsel %vm3277, %v3276, %v3274
  %s3279 = scalar_lea.vmem %s0, 194
  %v3280 = vld [vmem:[%s3279] ss:$-7 sm:$0xe0]
  %vm3281 = vcmask 1047557
  %v3282 = vsel %vm3281, %v3280, %v3278
  %3283 = vrot.lane.b32.xlu0 %v3282, 104
  %v3284 = vpop.permute.xlu0 %3283
  %vm3285 = vcmask 31744
  %s3286 = scalar_lea.vmem %s1, 1176
  %3287 = vst.msk [vmem:[%s3286] ss:$225 sm:$0x3] %vm3285, %v3284
  %s3288 = scalar_lea.vmem %s1, 1464
  %3289 = vst.msk [vmem:[%s3288] ss:$-63 sm:$0x1c] %vm3285, %v3284
  %s3290 = scalar_lea.vmem %s1, 1752
  %3291 = vst.msk [vmem:[%s3290] ss:$-63 sm:$0xe0] %vm3285, %v3284
  %s3292 = scalar_lea.vmem %s0, 162
  %s3293 = smov 3
  %v3294 = vld [vmem:[%s3292] ss:$25 sm:%s3293]
  %s3295 = scalar_lea.vmem %s0, 194
  %v3296 = vld [vmem:[%s3295] ss:$-7 sm:$0x1c]
  %vm3297 = vcmask 1044482
  %v3298 = vsel %vm3297, %v3296, %v3294
  %s3299 = scalar_lea.vmem %s0, 226
  %v3300 = vld [vmem:[%s3299] ss:$-7 sm:$0xe0]
  %vm3301 = vcmask 1047557
  %v3302 = vsel %vm3301, %v3300, %v3298
  %3303 = vrot.lane.b32.xlu0 %v3302, 104
  %v3304 = vpop.permute.xlu0 %3303
  %vm3305 = vcmask 31744
  %s3306 = scalar_lea.vmem %s1, 1464
  %3307 = vst.msk [vmem:[%s3306] ss:$225 sm:$0x3] %vm3305, %v3304
  %s3308 = scalar_lea.vmem %s1, 1752
  %3309 = vst.msk [vmem:[%s3308] ss:$-63 sm:$0x1c] %vm3305, %v3304
  %s3310 = scalar_lea.vmem %s1, 2040
  %3311 = vst.msk [vmem:[%s3310] ss:$-63 sm:$0xe0] %vm3305, %v3304
  %s3312 = scalar_lea.vmem %s0, 194
  %s3313 = smov 3
  %v3314 = vld [vmem:[%s3312] ss:$25 sm:%s3313]
  %s3315 = scalar_lea.vmem %s0, 226
  %v3316 = vld [vmem:[%s3315] ss:$-7 sm:$0x1c]
  %vm3317 = vcmask 1044482
  %v3318 = vsel %vm3317, %v3316, %v3314
  %s3319 = scalar_lea.vmem %s0, 258
  %v3320 = vld [vmem:[%s3319] ss:$-7 sm:$0xe0]
  %vm3321 = vcmask 1047557
  %v3322 = vsel %vm3321, %v3320, %v3318
  %3323 = vrot.lane.b32.xlu0 %v3322, 104
  %v3324 = vpop.permute.xlu0 %3323
  %vm3325 = vcmask 31744
  %s3326 = scalar_lea.vmem %s1, 1752
  %3327 = vst.msk [vmem:[%s3326] ss:$225 sm:$0x3] %vm3325, %v3324
  %s3328 = scalar_lea.vmem %s1, 2040
  %3329 = vst.msk [vmem:[%s3328] ss:$-63 sm:$0x1c] %vm3325, %v3324
  %s3330 = scalar_lea.vmem %s1, 2328
  %3331 = vst.msk [vmem:[%s3330] ss:$-63 sm:$0xe0] %vm3325, %v3324
  %s3332 = scalar_lea.vmem %s0, 226
  %s3333 = smov 3
  %v3334 = vld [vmem:[%s3332] ss:$25 sm:%s3333]
  %s3335 = scalar_lea.vmem %s0, 258
  %v3336 = vld [vmem:[%s3335] ss:$-7 sm:$0x1c]
  %vm3337 = vcmask 1044482
  %v3338 = vsel %vm3337, %v3336, %v3334
  %s3339 = scalar_lea.vmem %s0, 290
  %v3340 = vld [vmem:[%s3339] ss:$-7 sm:$0xe0]
  %vm3341 = vcmask 1047557
  %v3342 = vsel %vm3341, %v3340, %v3338
  %3343 = vrot.lane.b32.xlu0 %v3342, 104
  %v3344 = vpop.permute.xlu0 %3343
  %vm3345 = vcmask 31744
  %s3346 = scalar_lea.vmem %s1, 2040
  %3347 = vst.msk [vmem:[%s3346] ss:$225 sm:$0x3] %vm3345, %v3344
  %s3348 = scalar_lea.vmem %s1, 2328
  %3349 = vst.msk [vmem:[%s3348] ss:$-63 sm:$0x1c] %vm3345, %v3344
  %s3350 = scalar_lea.vmem %s1, 2616
  %3351 = vst.msk [vmem:[%s3350] ss:$-63 sm:$0xe0] %vm3345, %v3344
  %s3352 = scalar_lea.vmem %s0, 17
  %v3353 = vld [vmem:[%s3352] ss:$-7 sm:$0x7]
  %s3354 = scalar_lea.vmem %s0, 49
  %v3355 = vld [vmem:[%s3354] ss:$-7 sm:$0xf8]
  %vm3356 = vcmask 1047555
  %v3357 = vsel %vm3356, %v3355, %v3353
  %3358 = vrot.lane.b32.xlu0 %v3357, 100
  %v3359 = vpop.permute.xlu0 %3358
  %vm3360 = vcmask 31744
  %s3361 = scalar_lea.vmem %s1, 160
  %3362 = vst.msk [vmem:[%s3361] ss:$-63 sm:$0x7] %vm3360, %v3359
  %s3363 = scalar_lea.vmem %s1, 448
  %3364 = vst.msk [vmem:[%s3363] ss:$-63 sm:$0xf8] %vm3360, %v3359
  %s3365 = scalar_lea.vmem %s0, 49
  %v3366 = vld [vmem:[%s3365] ss:$-7 sm:$0x7]
  %s3367 = scalar_lea.vmem %s0, 81
  %v3368 = vld [vmem:[%s3367] ss:$-7 sm:$0xf8]
  %vm3369 = vcmask 1047555
  %v3370 = vsel %vm3369, %v3368, %v3366
  %3371 = vrot.lane.b32.xlu0 %v3370, 100
  %v3372 = vpop.permute.xlu0 %3371
  %vm3373 = vcmask 31744
  %s3374 = scalar_lea.vmem %s1, 448
  %3375 = vst.msk [vmem:[%s3374] ss:$-63 sm:$0x7] %vm3373, %v3372
  %s3376 = scalar_lea.vmem %s1, 736
  %3377 = vst.msk [vmem:[%s3376] ss:$-63 sm:$0xf8] %vm3373, %v3372
  %s3378 = scalar_lea.vmem %s0, 81
  %v3379 = vld [vmem:[%s3378] ss:$-7 sm:$0x7]
  %s3380 = scalar_lea.vmem %s0, 113
  %v3381 = vld [vmem:[%s3380] ss:$-7 sm:$0xf8]
  %vm3382 = vcmask 1047555
  %v3383 = vsel %vm3382, %v3381, %v3379
  %3384 = vrot.lane.b32.xlu0 %v3383, 100
  %v3385 = vpop.permute.xlu0 %3384
  %vm3386 = vcmask 31744
  %s3387 = scalar_lea.vmem %s1, 736
  %3388 = vst.msk [vmem:[%s3387] ss:$-63 sm:$0x7] %vm3386, %v3385
  %s3389 = scalar_lea.vmem %s1, 1024
  %3390 = vst.msk [vmem:[%s3389] ss:$-63 sm:$0xf8] %vm3386, %v3385
  %s3391 = scalar_lea.vmem %s0, 113
  %v3392 = vld [vmem:[%s3391] ss:$-7 sm:$0x7]
  %s3393 = scalar_lea.vmem %s0, 145
  %v3394 = vld [vmem:[%s3393] ss:$-7 sm:$0xf8]
  %vm3395 = vcmask 1047555
  %v3396 = vsel %vm3395, %v3394, %v3392
  %3397 = vrot.lane.b32.xlu0 %v3396, 100
  %v3398 = vpop.permute.xlu0 %3397
  %vm3399 = vcmask 31744
  %s3400 = scalar_lea.vmem %s1, 1024
  %3401 = vst.msk [vmem:[%s3400] ss:$-63 sm:$0x7] %vm3399, %v3398
  %s3402 = scalar_lea.vmem %s1, 1312
  %3403 = vst.msk [vmem:[%s3402] ss:$-63 sm:$0xf8] %vm3399, %v3398
  %s3404 = scalar_lea.vmem %s0, 145
  %v3405 = vld [vmem:[%s3404] ss:$-7 sm:$0x7]
  %s3406 = scalar_lea.vmem %s0, 177
  %v3407 = vld [vmem:[%s3406] ss:$-7 sm:$0xf8]
  %vm3408 = vcmask 1047555
  %v3409 = vsel %vm3408, %v3407, %v3405
  %3410 = vrot.lane.b32.xlu0 %v3409, 100
  %v3411 = vpop.permute.xlu0 %3410
  %vm3412 = vcmask 31744
  %s3413 = scalar_lea.vmem %s1, 1312
  %3414 = vst.msk [vmem:[%s3413] ss:$-63 sm:$0x7] %vm3412, %v3411
  %s3415 = scalar_lea.vmem %s1, 1600
  %3416 = vst.msk [vmem:[%s3415] ss:$-63 sm:$0xf8] %vm3412, %v3411
  %s3417 = scalar_lea.vmem %s0, 177
  %v3418 = vld [vmem:[%s3417] ss:$-7 sm:$0x7]
  %s3419 = scalar_lea.vmem %s0, 209
  %v3420 = vld [vmem:[%s3419] ss:$-7 sm:$0xf8]
  %vm3421 = vcmask 1047555
  %v3422 = vsel %vm3421, %v3420, %v3418
  %3423 = vrot.lane.b32.xlu0 %v3422, 100
  %v3424 = vpop.permute.xlu0 %3423
  %vm3425 = vcmask 31744
  %s3426 = scalar_lea.vmem %s1, 1600
  %3427 = vst.msk [vmem:[%s3426] ss:$-63 sm:$0x7] %vm3425, %v3424
  %s3428 = scalar_lea.vmem %s1, 1888
  %3429 = vst.msk [vmem:[%s3428] ss:$-63 sm:$0xf8] %vm3425, %v3424
  %s3430 = scalar_lea.vmem %s0, 209
  %v3431 = vld [vmem:[%s3430] ss:$-7 sm:$0x7]
  %s3432 = scalar_lea.vmem %s0, 241
  %v3433 = vld [vmem:[%s3432] ss:$-7 sm:$0xf8]
  %vm3434 = vcmask 1047555
  %v3435 = vsel %vm3434, %v3433, %v3431
  %3436 = vrot.lane.b32.xlu0 %v3435, 100
  %v3437 = vpop.permute.xlu0 %3436
  %vm3438 = vcmask 31744
  %s3439 = scalar_lea.vmem %s1, 1888
  %3440 = vst.msk [vmem:[%s3439] ss:$-63 sm:$0x7] %vm3438, %v3437
  %s3441 = scalar_lea.vmem %s1, 2176
  %3442 = vst.msk [vmem:[%s3441] ss:$-63 sm:$0xf8] %vm3438, %v3437
  %s3443 = scalar_lea.vmem %s0, 241
  %v3444 = vld [vmem:[%s3443] ss:$-7 sm:$0x7]
  %s3445 = scalar_lea.vmem %s0, 273
  %v3446 = vld [vmem:[%s3445] ss:$-7 sm:$0xf8]
  %vm3447 = vcmask 1047555
  %v3448 = vsel %vm3447, %v3446, %v3444
  %3449 = vrot.lane.b32.xlu0 %v3448, 100
  %v3450 = vpop.permute.xlu0 %3449
  %vm3451 = vcmask 31744
  %s3452 = scalar_lea.vmem %s1, 2176
  %3453 = vst.msk [vmem:[%s3452] ss:$-63 sm:$0x7] %vm3451, %v3450
  %s3454 = scalar_lea.vmem %s1, 2464
  %3455 = vst.msk [vmem:[%s3454] ss:$-63 sm:$0xf8] %vm3451, %v3450
  %s3456 = scalar_lea.vmem %s0, 25
  %v3457 = vld [vmem:[%s3456] ss:$-7 sm:$0xf]
  %s3458 = scalar_lea.vmem %s0, 57
  %v3459 = vld [vmem:[%s3458] ss:$-7 sm:$0xf0]
  %vm3460 = vcmask 1047556
  %v3461 = vsel %vm3460, %v3459, %v3457
  %3462 = vrot.lane.b32.xlu0 %v3461, 100
  %v3463 = vpop.permute.xlu0 %3462
  %vm3464 = vcmask 31744
  %s3465 = scalar_lea.vmem %s1, 232
  %3466 = vst.msk [vmem:[%s3465] ss:$-63 sm:$0xf] %vm3464, %v3463
  %s3467 = scalar_lea.vmem %s1, 520
  %3468 = vst.msk [vmem:[%s3467] ss:$-63 sm:$0xf0] %vm3464, %v3463
  %s3469 = scalar_lea.vmem %s0, 57
  %v3470 = vld [vmem:[%s3469] ss:$-7 sm:$0xf]
  %s3471 = scalar_lea.vmem %s0, 89
  %v3472 = vld [vmem:[%s3471] ss:$-7 sm:$0xf0]
  %vm3473 = vcmask 1047556
  %v3474 = vsel %vm3473, %v3472, %v3470
  %3475 = vrot.lane.b32.xlu0 %v3474, 100
  %v3476 = vpop.permute.xlu0 %3475
  %vm3477 = vcmask 31744
  %s3478 = scalar_lea.vmem %s1, 520
  %3479 = vst.msk [vmem:[%s3478] ss:$-63 sm:$0xf] %vm3477, %v3476
  %s3480 = scalar_lea.vmem %s1, 808
  %3481 = vst.msk [vmem:[%s3480] ss:$-63 sm:$0xf0] %vm3477, %v3476
  %s3482 = scalar_lea.vmem %s0, 89
  %v3483 = vld [vmem:[%s3482] ss:$-7 sm:$0xf]
  %s3484 = scalar_lea.vmem %s0, 121
  %v3485 = vld [vmem:[%s3484] ss:$-7 sm:$0xf0]
  %vm3486 = vcmask 1047556
  %v3487 = vsel %vm3486, %v3485, %v3483
  %3488 = vrot.lane.b32.xlu0 %v3487, 100
  %v3489 = vpop.permute.xlu0 %3488
  %vm3490 = vcmask 31744
  %s3491 = scalar_lea.vmem %s1, 808
  %3492 = vst.msk [vmem:[%s3491] ss:$-63 sm:$0xf] %vm3490, %v3489
  %s3493 = scalar_lea.vmem %s1, 1096
  %3494 = vst.msk [vmem:[%s3493] ss:$-63 sm:$0xf0] %vm3490, %v3489
  %s3495 = scalar_lea.vmem %s0, 121
  %v3496 = vld [vmem:[%s3495] ss:$-7 sm:$0xf]
  %s3497 = scalar_lea.vmem %s0, 153
  %v3498 = vld [vmem:[%s3497] ss:$-7 sm:$0xf0]
  %vm3499 = vcmask 1047556
  %v3500 = vsel %vm3499, %v3498, %v3496
  %3501 = vrot.lane.b32.xlu0 %v3500, 100
  %v3502 = vpop.permute.xlu0 %3501
  %vm3503 = vcmask 31744
  %s3504 = scalar_lea.vmem %s1, 1096
  %3505 = vst.msk [vmem:[%s3504] ss:$-63 sm:$0xf] %vm3503, %v3502
  %s3506 = scalar_lea.vmem %s1, 1384
  %3507 = vst.msk [vmem:[%s3506] ss:$-63 sm:$0xf0] %vm3503, %v3502
  %s3508 = scalar_lea.vmem %s0, 153
  %v3509 = vld [vmem:[%s3508] ss:$-7 sm:$0xf]
  %s3510 = scalar_lea.vmem %s0, 185
  %v3511 = vld [vmem:[%s3510] ss:$-7 sm:$0xf0]
  %vm3512 = vcmask 1047556
  %v3513 = vsel %vm3512, %v3511, %v3509
  %3514 = vrot.lane.b32.xlu0 %v3513, 100
  %v3515 = vpop.permute.xlu0 %3514
  %vm3516 = vcmask 31744
  %s3517 = scalar_lea.vmem %s1, 1384
  %3518 = vst.msk [vmem:[%s3517] ss:$-63 sm:$0xf] %vm3516, %v3515
  %s3519 = scalar_lea.vmem %s1, 1672
  %3520 = vst.msk [vmem:[%s3519] ss:$-63 sm:$0xf0] %vm3516, %v3515
  %s3521 = scalar_lea.vmem %s0, 185
  %v3522 = vld [vmem:[%s3521] ss:$-7 sm:$0xf]
  %s3523 = scalar_lea.vmem %s0, 217
  %v3524 = vld [vmem:[%s3523] ss:$-7 sm:$0xf0]
  %vm3525 = vcmask 1047556
  %v3526 = vsel %vm3525, %v3524, %v3522
  %3527 = vrot.lane.b32.xlu0 %v3526, 100
  %v3528 = vpop.permute.xlu0 %3527
  %vm3529 = vcmask 31744
  %s3530 = scalar_lea.vmem %s1, 1672
  %3531 = vst.msk [vmem:[%s3530] ss:$-63 sm:$0xf] %vm3529, %v3528
  %s3532 = scalar_lea.vmem %s1, 1960
  %3533 = vst.msk [vmem:[%s3532] ss:$-63 sm:$0xf0] %vm3529, %v3528
  %s3534 = scalar_lea.vmem %s0, 217
  %v3535 = vld [vmem:[%s3534] ss:$-7 sm:$0xf]
  %s3536 = scalar_lea.vmem %s0, 249
  %v3537 = vld [vmem:[%s3536] ss:$-7 sm:$0xf0]
  %vm3538 = vcmask 1047556
  %v3539 = vsel %vm3538, %v3537, %v3535
  %3540 = vrot.lane.b32.xlu0 %v3539, 100
  %v3541 = vpop.permute.xlu0 %3540
  %vm3542 = vcmask 31744
  %s3543 = scalar_lea.vmem %s1, 1960
  %3544 = vst.msk [vmem:[%s3543] ss:$-63 sm:$0xf] %vm3542, %v3541
  %s3545 = scalar_lea.vmem %s1, 2248
  %3546 = vst.msk [vmem:[%s3545] ss:$-63 sm:$0xf0] %vm3542, %v3541
  %s3547 = scalar_lea.vmem %s0, 249
  %v3548 = vld [vmem:[%s3547] ss:$-7 sm:$0xf]
  %s3549 = scalar_lea.vmem %s0, 281
  %v3550 = vld [vmem:[%s3549] ss:$-7 sm:$0xf0]
  %vm3551 = vcmask 1047556
  %v3552 = vsel %vm3551, %v3550, %v3548
  %3553 = vrot.lane.b32.xlu0 %v3552, 100
  %v3554 = vpop.permute.xlu0 %3553
  %vm3555 = vcmask 31744
  %s3556 = scalar_lea.vmem %s1, 2248
  %3557 = vst.msk [vmem:[%s3556] ss:$-63 sm:$0xf] %vm3555, %v3554
  %s3558 = scalar_lea.vmem %s1, 2536
  %3559 = vst.msk [vmem:[%s3558] ss:$-63 sm:$0xf0] %vm3555, %v3554
  %s3560 = scalar_lea.vmem %s0, 1
  %s3561 = smov 3
  %v3562 = vld [vmem:[%s3560] ss:$25 sm:%s3561]
  %s3563 = scalar_lea.vmem %s0, 33
  %v3564 = vld [vmem:[%s3563] ss:$-7 sm:$0x1c]
  %vm3565 = vcmask 1044482
  %v3566 = vsel %vm3565, %v3564, %v3562
  %s3567 = scalar_lea.vmem %s0, 65
  %v3568 = vld [vmem:[%s3567] ss:$-7 sm:$0xe0]
  %vm3569 = vcmask 1047557
  %v3570 = vsel %vm3569, %v3568, %v3566
  %3571 = vrot.lane.b32.xlu0 %v3570, 100
  %v3572 = vpop.permute.xlu0 %3571
  %vm3573 = vcmask 31744
  %s3574 = scalar_lea.vmem %s1, 16
  %3575 = vst.msk [vmem:[%s3574] ss:$225 sm:$0x3] %vm3573, %v3572
  %s3576 = scalar_lea.vmem %s1, 304
  %3577 = vst.msk [vmem:[%s3576] ss:$-63 sm:$0x1c] %vm3573, %v3572
  %s3578 = scalar_lea.vmem %s1, 592
  %3579 = vst.msk [vmem:[%s3578] ss:$-63 sm:$0xe0] %vm3573, %v3572
  %s3580 = scalar_lea.vmem %s0, 33
  %s3581 = smov 3
  %v3582 = vld [vmem:[%s3580] ss:$25 sm:%s3581]
  %s3583 = scalar_lea.vmem %s0, 65
  %v3584 = vld [vmem:[%s3583] ss:$-7 sm:$0x1c]
  %vm3585 = vcmask 1044482
  %v3586 = vsel %vm3585, %v3584, %v3582
  %s3587 = scalar_lea.vmem %s0, 97
  %v3588 = vld [vmem:[%s3587] ss:$-7 sm:$0xe0]
  %vm3589 = vcmask 1047557
  %v3590 = vsel %vm3589, %v3588, %v3586
  %3591 = vrot.lane.b32.xlu0 %v3590, 100
  %v3592 = vpop.permute.xlu0 %3591
  %vm3593 = vcmask 31744
  %s3594 = scalar_lea.vmem %s1, 304
  %3595 = vst.msk [vmem:[%s3594] ss:$225 sm:$0x3] %vm3593, %v3592
  %s3596 = scalar_lea.vmem %s1, 592
  %3597 = vst.msk [vmem:[%s3596] ss:$-63 sm:$0x1c] %vm3593, %v3592
  %s3598 = scalar_lea.vmem %s1, 880
  %3599 = vst.msk [vmem:[%s3598] ss:$-63 sm:$0xe0] %vm3593, %v3592
  %s3600 = scalar_lea.vmem %s0, 65
  %s3601 = smov 3
  %v3602 = vld [vmem:[%s3600] ss:$25 sm:%s3601]
  %s3603 = scalar_lea.vmem %s0, 97
  %v3604 = vld [vmem:[%s3603] ss:$-7 sm:$0x1c]
  %vm3605 = vcmask 1044482
  %v3606 = vsel %vm3605, %v3604, %v3602
  %s3607 = scalar_lea.vmem %s0, 129
  %v3608 = vld [vmem:[%s3607] ss:$-7 sm:$0xe0]
  %vm3609 = vcmask 1047557
  %v3610 = vsel %vm3609, %v3608, %v3606
  %3611 = vrot.lane.b32.xlu0 %v3610, 100
  %v3612 = vpop.permute.xlu0 %3611
  %vm3613 = vcmask 31744
  %s3614 = scalar_lea.vmem %s1, 592
  %3615 = vst.msk [vmem:[%s3614] ss:$225 sm:$0x3] %vm3613, %v3612
  %s3616 = scalar_lea.vmem %s1, 880
  %3617 = vst.msk [vmem:[%s3616] ss:$-63 sm:$0x1c] %vm3613, %v3612
  %s3618 = scalar_lea.vmem %s1, 1168
  %3619 = vst.msk [vmem:[%s3618] ss:$-63 sm:$0xe0] %vm3613, %v3612
  %s3620 = scalar_lea.vmem %s0, 97
  %s3621 = smov 3
  %v3622 = vld [vmem:[%s3620] ss:$25 sm:%s3621]
  %s3623 = scalar_lea.vmem %s0, 129
  %v3624 = vld [vmem:[%s3623] ss:$-7 sm:$0x1c]
  %vm3625 = vcmask 1044482
  %v3626 = vsel %vm3625, %v3624, %v3622
  %s3627 = scalar_lea.vmem %s0, 161
  %v3628 = vld [vmem:[%s3627] ss:$-7 sm:$0xe0]
  %vm3629 = vcmask 1047557
  %v3630 = vsel %vm3629, %v3628, %v3626
  %3631 = vrot.lane.b32.xlu0 %v3630, 100
  %v3632 = vpop.permute.xlu0 %3631
  %vm3633 = vcmask 31744
  %s3634 = scalar_lea.vmem %s1, 880
  %3635 = vst.msk [vmem:[%s3634] ss:$225 sm:$0x3] %vm3633, %v3632
  %s3636 = scalar_lea.vmem %s1, 1168
  %3637 = vst.msk [vmem:[%s3636] ss:$-63 sm:$0x1c] %vm3633, %v3632
  %s3638 = scalar_lea.vmem %s1, 1456
  %3639 = vst.msk [vmem:[%s3638] ss:$-63 sm:$0xe0] %vm3633, %v3632
  %s3640 = scalar_lea.vmem %s0, 129
  %s3641 = smov 3
  %v3642 = vld [vmem:[%s3640] ss:$25 sm:%s3641]
  %s3643 = scalar_lea.vmem %s0, 161
  %v3644 = vld [vmem:[%s3643] ss:$-7 sm:$0x1c]
  %vm3645 = vcmask 1044482
  %v3646 = vsel %vm3645, %v3644, %v3642
  %s3647 = scalar_lea.vmem %s0, 193
  %v3648 = vld [vmem:[%s3647] ss:$-7 sm:$0xe0]
  %vm3649 = vcmask 1047557
  %v3650 = vsel %vm3649, %v3648, %v3646
  %3651 = vrot.lane.b32.xlu0 %v3650, 100
  %v3652 = vpop.permute.xlu0 %3651
  %vm3653 = vcmask 31744
  %s3654 = scalar_lea.vmem %s1, 1168
  %3655 = vst.msk [vmem:[%s3654] ss:$225 sm:$0x3] %vm3653, %v3652
  %s3656 = scalar_lea.vmem %s1, 1456
  %3657 = vst.msk [vmem:[%s3656] ss:$-63 sm:$0x1c] %vm3653, %v3652
  %s3658 = scalar_lea.vmem %s1, 1744
  %3659 = vst.msk [vmem:[%s3658] ss:$-63 sm:$0xe0] %vm3653, %v3652
  %s3660 = scalar_lea.vmem %s0, 161
  %s3661 = smov 3
  %v3662 = vld [vmem:[%s3660] ss:$25 sm:%s3661]
  %s3663 = scalar_lea.vmem %s0, 193
  %v3664 = vld [vmem:[%s3663] ss:$-7 sm:$0x1c]
  %vm3665 = vcmask 1044482
  %v3666 = vsel %vm3665, %v3664, %v3662
  %s3667 = scalar_lea.vmem %s0, 225
  %v3668 = vld [vmem:[%s3667] ss:$-7 sm:$0xe0]
  %vm3669 = vcmask 1047557
  %v3670 = vsel %vm3669, %v3668, %v3666
  %3671 = vrot.lane.b32.xlu0 %v3670, 100
  %v3672 = vpop.permute.xlu0 %3671
  %vm3673 = vcmask 31744
  %s3674 = scalar_lea.vmem %s1, 1456
  %3675 = vst.msk [vmem:[%s3674] ss:$225 sm:$0x3] %vm3673, %v3672
  %s3676 = scalar_lea.vmem %s1, 1744
  %3677 = vst.msk [vmem:[%s3676] ss:$-63 sm:$0x1c] %vm3673, %v3672
  %s3678 = scalar_lea.vmem %s1, 2032
  %3679 = vst.msk [vmem:[%s3678] ss:$-63 sm:$0xe0] %vm3673, %v3672
  %s3680 = scalar_lea.vmem %s0, 193
  %s3681 = smov 3
  %v3682 = vld [vmem:[%s3680] ss:$25 sm:%s3681]
  %s3683 = scalar_lea.vmem %s0, 225
  %v3684 = vld [vmem:[%s3683] ss:$-7 sm:$0x1c]
  %vm3685 = vcmask 1044482
  %v3686 = vsel %vm3685, %v3684, %v3682
  %s3687 = scalar_lea.vmem %s0, 257
  %v3688 = vld [vmem:[%s3687] ss:$-7 sm:$0xe0]
  %vm3689 = vcmask 1047557
  %v3690 = vsel %vm3689, %v3688, %v3686
  %3691 = vrot.lane.b32.xlu0 %v3690, 100
  %v3692 = vpop.permute.xlu0 %3691
  %vm3693 = vcmask 31744
  %s3694 = scalar_lea.vmem %s1, 1744
  %3695 = vst.msk [vmem:[%s3694] ss:$225 sm:$0x3] %vm3693, %v3692
  %s3696 = scalar_lea.vmem %s1, 2032
  %3697 = vst.msk [vmem:[%s3696] ss:$-63 sm:$0x1c] %vm3693, %v3692
  %s3698 = scalar_lea.vmem %s1, 2320
  %3699 = vst.msk [vmem:[%s3698] ss:$-63 sm:$0xe0] %vm3693, %v3692
  %s3700 = scalar_lea.vmem %s0, 225
  %s3701 = smov 3
  %v3702 = vld [vmem:[%s3700] ss:$25 sm:%s3701]
  %s3703 = scalar_lea.vmem %s0, 257
  %v3704 = vld [vmem:[%s3703] ss:$-7 sm:$0x1c]
  %vm3705 = vcmask 1044482
  %v3706 = vsel %vm3705, %v3704, %v3702
  %s3707 = scalar_lea.vmem %s0, 289
  %v3708 = vld [vmem:[%s3707] ss:$-7 sm:$0xe0]
  %vm3709 = vcmask 1047557
  %v3710 = vsel %vm3709, %v3708, %v3706
  %3711 = vrot.lane.b32.xlu0 %v3710, 100
  %v3712 = vpop.permute.xlu0 %3711
  %vm3713 = vcmask 31744
  %s3714 = scalar_lea.vmem %s1, 2032
  %3715 = vst.msk [vmem:[%s3714] ss:$225 sm:$0x3] %vm3713, %v3712
  %s3716 = scalar_lea.vmem %s1, 2320
  %3717 = vst.msk [vmem:[%s3716] ss:$-63 sm:$0x1c] %vm3713, %v3712
  %s3718 = scalar_lea.vmem %s1, 2608
  %3719 = vst.msk [vmem:[%s3718] ss:$-63 sm:$0xe0] %vm3713, %v3712
  %s3720 = scalar_lea.vmem %s0, 9
  %s3721 = smov 3
  %v3722 = vld [vmem:[%s3720] ss:$-7 sm:%s3721]
  %s3723 = scalar_lea.vmem %s0, 41
  %v3724 = vld [vmem:[%s3723] ss:$-7 sm:$0x3c]
  %vm3725 = vcmask 1045506
  %v3726 = vsel %vm3725, %v3724, %v3722
  %s3727 = scalar_lea.vmem %s0, 73
  %s3728 = smov 192
  %v3729 = vld [vmem:[%s3727] ss:$-7 sm:%s3728]
  %vm3730 = vcmask 1047558
  %v3731 = vsel %vm3730, %v3729, %v3726
  %3732 = vrot.lane.b32.xlu0 %v3731, 100
  %v3733 = vpop.permute.xlu0 %3732
  %vm3734 = vcmask 31744
  %s3735 = scalar_lea.vmem %s1, 88
  %3736 = vst.msk [vmem:[%s3735] ss:$-63 sm:$0x3] %vm3734, %v3733
  %s3737 = scalar_lea.vmem %s1, 376
  %3738 = vst.msk [vmem:[%s3737] ss:$-63 sm:$0x3c] %vm3734, %v3733
  %s3739 = scalar_lea.vmem %s1, 664
  %3740 = vst.msk [vmem:[%s3739] ss:$-63 sm:$0xc0] %vm3734, %v3733
  %s3741 = scalar_lea.vmem %s0, 41
  %s3742 = smov 3
  %v3743 = vld [vmem:[%s3741] ss:$-7 sm:%s3742]
  %s3744 = scalar_lea.vmem %s0, 73
  %v3745 = vld [vmem:[%s3744] ss:$-7 sm:$0x3c]
  %vm3746 = vcmask 1045506
  %v3747 = vsel %vm3746, %v3745, %v3743
  %s3748 = scalar_lea.vmem %s0, 105
  %s3749 = smov 192
  %v3750 = vld [vmem:[%s3748] ss:$-7 sm:%s3749]
  %vm3751 = vcmask 1047558
  %v3752 = vsel %vm3751, %v3750, %v3747
  %3753 = vrot.lane.b32.xlu0 %v3752, 100
  %v3754 = vpop.permute.xlu0 %3753
  %vm3755 = vcmask 31744
  %s3756 = scalar_lea.vmem %s1, 376
  %3757 = vst.msk [vmem:[%s3756] ss:$-63 sm:$0x3] %vm3755, %v3754
  %s3758 = scalar_lea.vmem %s1, 664
  %3759 = vst.msk [vmem:[%s3758] ss:$-63 sm:$0x3c] %vm3755, %v3754
  %s3760 = scalar_lea.vmem %s1, 952
  %3761 = vst.msk [vmem:[%s3760] ss:$-63 sm:$0xc0] %vm3755, %v3754
  %s3762 = scalar_lea.vmem %s0, 73
  %s3763 = smov 3
  %v3764 = vld [vmem:[%s3762] ss:$-7 sm:%s3763]
  %s3765 = scalar_lea.vmem %s0, 105
  %v3766 = vld [vmem:[%s3765] ss:$-7 sm:$0x3c]
  %vm3767 = vcmask 1045506
  %v3768 = vsel %vm3767, %v3766, %v3764
  %s3769 = scalar_lea.vmem %s0, 137
  %s3770 = smov 192
  %v3771 = vld [vmem:[%s3769] ss:$-7 sm:%s3770]
  %vm3772 = vcmask 1047558
  %v3773 = vsel %vm3772, %v3771, %v3768
  %3774 = vrot.lane.b32.xlu0 %v3773, 100
  %v3775 = vpop.permute.xlu0 %3774
  %vm3776 = vcmask 31744
  %s3777 = scalar_lea.vmem %s1, 664
  %3778 = vst.msk [vmem:[%s3777] ss:$-63 sm:$0x3] %vm3776, %v3775
  %s3779 = scalar_lea.vmem %s1, 952
  %3780 = vst.msk [vmem:[%s3779] ss:$-63 sm:$0x3c] %vm3776, %v3775
  %s3781 = scalar_lea.vmem %s1, 1240
  %3782 = vst.msk [vmem:[%s3781] ss:$-63 sm:$0xc0] %vm3776, %v3775
  %s3783 = scalar_lea.vmem %s0, 105
  %s3784 = smov 3
  %v3785 = vld [vmem:[%s3783] ss:$-7 sm:%s3784]
  %s3786 = scalar_lea.vmem %s0, 137
  %v3787 = vld [vmem:[%s3786] ss:$-7 sm:$0x3c]
  %vm3788 = vcmask 1045506
  %v3789 = vsel %vm3788, %v3787, %v3785
  %s3790 = scalar_lea.vmem %s0, 169
  %s3791 = smov 192
  %v3792 = vld [vmem:[%s3790] ss:$-7 sm:%s3791]
  %vm3793 = vcmask 1047558
  %v3794 = vsel %vm3793, %v3792, %v3789
  %3795 = vrot.lane.b32.xlu0 %v3794, 100
  %v3796 = vpop.permute.xlu0 %3795
  %vm3797 = vcmask 31744
  %s3798 = scalar_lea.vmem %s1, 952
  %3799 = vst.msk [vmem:[%s3798] ss:$-63 sm:$0x3] %vm3797, %v3796
  %s3800 = scalar_lea.vmem %s1, 1240
  %3801 = vst.msk [vmem:[%s3800] ss:$-63 sm:$0x3c] %vm3797, %v3796
  %s3802 = scalar_lea.vmem %s1, 1528
  %3803 = vst.msk [vmem:[%s3802] ss:$-63 sm:$0xc0] %vm3797, %v3796
  %s3804 = scalar_lea.vmem %s0, 137
  %s3805 = smov 3
  %v3806 = vld [vmem:[%s3804] ss:$-7 sm:%s3805]
  %s3807 = scalar_lea.vmem %s0, 169
  %v3808 = vld [vmem:[%s3807] ss:$-7 sm:$0x3c]
  %vm3809 = vcmask 1045506
  %v3810 = vsel %vm3809, %v3808, %v3806
  %s3811 = scalar_lea.vmem %s0, 201
  %s3812 = smov 192
  %v3813 = vld [vmem:[%s3811] ss:$-7 sm:%s3812]
  %vm3814 = vcmask 1047558
  %v3815 = vsel %vm3814, %v3813, %v3810
  %3816 = vrot.lane.b32.xlu0 %v3815, 100
  %v3817 = vpop.permute.xlu0 %3816
  %vm3818 = vcmask 31744
  %s3819 = scalar_lea.vmem %s1, 1240
  %3820 = vst.msk [vmem:[%s3819] ss:$-63 sm:$0x3] %vm3818, %v3817
  %s3821 = scalar_lea.vmem %s1, 1528
  %3822 = vst.msk [vmem:[%s3821] ss:$-63 sm:$0x3c] %vm3818, %v3817
  %s3823 = scalar_lea.vmem %s1, 1816
  %3824 = vst.msk [vmem:[%s3823] ss:$-63 sm:$0xc0] %vm3818, %v3817
  %s3825 = scalar_lea.vmem %s0, 169
  %s3826 = smov 3
  %v3827 = vld [vmem:[%s3825] ss:$-7 sm:%s3826]
  %s3828 = scalar_lea.vmem %s0, 201
  %v3829 = vld [vmem:[%s3828] ss:$-7 sm:$0x3c]
  %vm3830 = vcmask 1045506
  %v3831 = vsel %vm3830, %v3829, %v3827
  %s3832 = scalar_lea.vmem %s0, 233
  %s3833 = smov 192
  %v3834 = vld [vmem:[%s3832] ss:$-7 sm:%s3833]
  %vm3835 = vcmask 1047558
  %v3836 = vsel %vm3835, %v3834, %v3831
  %3837 = vrot.lane.b32.xlu0 %v3836, 100
  %v3838 = vpop.permute.xlu0 %3837
  %vm3839 = vcmask 31744
  %s3840 = scalar_lea.vmem %s1, 1528
  %3841 = vst.msk [vmem:[%s3840] ss:$-63 sm:$0x3] %vm3839, %v3838
  %s3842 = scalar_lea.vmem %s1, 1816
  %3843 = vst.msk [vmem:[%s3842] ss:$-63 sm:$0x3c] %vm3839, %v3838
  %s3844 = scalar_lea.vmem %s1, 2104
  %3845 = vst.msk [vmem:[%s3844] ss:$-63 sm:$0xc0] %vm3839, %v3838
  %s3846 = scalar_lea.vmem %s0, 201
  %s3847 = smov 3
  %v3848 = vld [vmem:[%s3846] ss:$-7 sm:%s3847]
  %s3849 = scalar_lea.vmem %s0, 233
  %v3850 = vld [vmem:[%s3849] ss:$-7 sm:$0x3c]
  %vm3851 = vcmask 1045506
  %v3852 = vsel %vm3851, %v3850, %v3848
  %s3853 = scalar_lea.vmem %s0, 265
  %s3854 = smov 192
  %v3855 = vld [vmem:[%s3853] ss:$-7 sm:%s3854]
  %vm3856 = vcmask 1047558
  %v3857 = vsel %vm3856, %v3855, %v3852
  %3858 = vrot.lane.b32.xlu0 %v3857, 100
  %v3859 = vpop.permute.xlu0 %3858
  %vm3860 = vcmask 31744
  %s3861 = scalar_lea.vmem %s1, 1816
  %3862 = vst.msk [vmem:[%s3861] ss:$-63 sm:$0x3] %vm3860, %v3859
  %s3863 = scalar_lea.vmem %s1, 2104
  %3864 = vst.msk [vmem:[%s3863] ss:$-63 sm:$0x3c] %vm3860, %v3859
  %s3865 = scalar_lea.vmem %s1, 2392
  %3866 = vst.msk [vmem:[%s3865] ss:$-63 sm:$0xc0] %vm3860, %v3859
  %s3867 = scalar_lea.vmem %s0, 233
  %s3868 = smov 3
  %v3869 = vld [vmem:[%s3867] ss:$-7 sm:%s3868]
  %s3870 = scalar_lea.vmem %s0, 265
  %v3871 = vld [vmem:[%s3870] ss:$-7 sm:$0x3c]
  %vm3872 = vcmask 1045506
  %v3873 = vsel %vm3872, %v3871, %v3869
  %s3874 = scalar_lea.vmem %s0, 297
  %s3875 = smov 192
  %v3876 = vld [vmem:[%s3874] ss:$-7 sm:%s3875]
  %vm3877 = vcmask 1047558
  %v3878 = vsel %vm3877, %v3876, %v3873
  %3879 = vrot.lane.b32.xlu0 %v3878, 100
  %v3880 = vpop.permute.xlu0 %3879
  %vm3881 = vcmask 31744
  %s3882 = scalar_lea.vmem %s1, 2104
  %3883 = vst.msk [vmem:[%s3882] ss:$-63 sm:$0x3] %vm3881, %v3880
  %s3884 = scalar_lea.vmem %s1, 2392
  %3885 = vst.msk [vmem:[%s3884] ss:$-63 sm:$0x3c] %vm3881, %v3880
  %s3886 = scalar_lea.vmem %s1, 2680
  %3887 = vst.msk [vmem:[%s3886] ss:$-63 sm:$0xc0] %vm3881, %v3880
  %s3888 = scalar_lea.vmem %s0, 24
  %v3889 = vld [vmem:[%s3888] ss:$-7 sm:$0xf]
  %s3890 = scalar_lea.vmem %s0, 56
  %v3891 = vld [vmem:[%s3890] ss:$-7 sm:$0xf0]
  %vm3892 = vcmask 1047556
  %v3893 = vsel %vm3892, %v3891, %v3889
  %3894 = vrot.lane.b32.xlu0 %v3893, 96
  %v3895 = vpop.permute.xlu0 %3894
  %vm3896 = vcmask 31744
  %s3897 = scalar_lea.vmem %s1, 224
  %3898 = vst.msk [vmem:[%s3897] ss:$-63 sm:$0xf] %vm3896, %v3895
  %s3899 = scalar_lea.vmem %s1, 512
  %3900 = vst.msk [vmem:[%s3899] ss:$-63 sm:$0xf0] %vm3896, %v3895
  %s3901 = scalar_lea.vmem %s0, 56
  %v3902 = vld [vmem:[%s3901] ss:$-7 sm:$0xf]
  %s3903 = scalar_lea.vmem %s0, 88
  %v3904 = vld [vmem:[%s3903] ss:$-7 sm:$0xf0]
  %vm3905 = vcmask 1047556
  %v3906 = vsel %vm3905, %v3904, %v3902
  %3907 = vrot.lane.b32.xlu0 %v3906, 96
  %v3908 = vpop.permute.xlu0 %3907
  %vm3909 = vcmask 31744
  %s3910 = scalar_lea.vmem %s1, 512
  %3911 = vst.msk [vmem:[%s3910] ss:$-63 sm:$0xf] %vm3909, %v3908
  %s3912 = scalar_lea.vmem %s1, 800
  %3913 = vst.msk [vmem:[%s3912] ss:$-63 sm:$0xf0] %vm3909, %v3908
  %s3914 = scalar_lea.vmem %s0, 88
  %v3915 = vld [vmem:[%s3914] ss:$-7 sm:$0xf]
  %s3916 = scalar_lea.vmem %s0, 120
  %v3917 = vld [vmem:[%s3916] ss:$-7 sm:$0xf0]
  %vm3918 = vcmask 1047556
  %v3919 = vsel %vm3918, %v3917, %v3915
  %3920 = vrot.lane.b32.xlu0 %v3919, 96
  %v3921 = vpop.permute.xlu0 %3920
  %vm3922 = vcmask 31744
  %s3923 = scalar_lea.vmem %s1, 800
  %3924 = vst.msk [vmem:[%s3923] ss:$-63 sm:$0xf] %vm3922, %v3921
  %s3925 = scalar_lea.vmem %s1, 1088
  %3926 = vst.msk [vmem:[%s3925] ss:$-63 sm:$0xf0] %vm3922, %v3921
  %s3927 = scalar_lea.vmem %s0, 120
  %v3928 = vld [vmem:[%s3927] ss:$-7 sm:$0xf]
  %s3929 = scalar_lea.vmem %s0, 152
  %v3930 = vld [vmem:[%s3929] ss:$-7 sm:$0xf0]
  %vm3931 = vcmask 1047556
  %v3932 = vsel %vm3931, %v3930, %v3928
  %3933 = vrot.lane.b32.xlu0 %v3932, 96
  %v3934 = vpop.permute.xlu0 %3933
  %vm3935 = vcmask 31744
  %s3936 = scalar_lea.vmem %s1, 1088
  %3937 = vst.msk [vmem:[%s3936] ss:$-63 sm:$0xf] %vm3935, %v3934
  %s3938 = scalar_lea.vmem %s1, 1376
  %3939 = vst.msk [vmem:[%s3938] ss:$-63 sm:$0xf0] %vm3935, %v3934
  %s3940 = scalar_lea.vmem %s0, 152
  %v3941 = vld [vmem:[%s3940] ss:$-7 sm:$0xf]
  %s3942 = scalar_lea.vmem %s0, 184
  %v3943 = vld [vmem:[%s3942] ss:$-7 sm:$0xf0]
  %vm3944 = vcmask 1047556
  %v3945 = vsel %vm3944, %v3943, %v3941
  %3946 = vrot.lane.b32.xlu0 %v3945, 96
  %v3947 = vpop.permute.xlu0 %3946
  %vm3948 = vcmask 31744
  %s3949 = scalar_lea.vmem %s1, 1376
  %3950 = vst.msk [vmem:[%s3949] ss:$-63 sm:$0xf] %vm3948, %v3947
  %s3951 = scalar_lea.vmem %s1, 1664
  %3952 = vst.msk [vmem:[%s3951] ss:$-63 sm:$0xf0] %vm3948, %v3947
  %s3953 = scalar_lea.vmem %s0, 184
  %v3954 = vld [vmem:[%s3953] ss:$-7 sm:$0xf]
  %s3955 = scalar_lea.vmem %s0, 216
  %v3956 = vld [vmem:[%s3955] ss:$-7 sm:$0xf0]
  %vm3957 = vcmask 1047556
  %v3958 = vsel %vm3957, %v3956, %v3954
  %3959 = vrot.lane.b32.xlu0 %v3958, 96
  %v3960 = vpop.permute.xlu0 %3959
  %vm3961 = vcmask 31744
  %s3962 = scalar_lea.vmem %s1, 1664
  %3963 = vst.msk [vmem:[%s3962] ss:$-63 sm:$0xf] %vm3961, %v3960
  %s3964 = scalar_lea.vmem %s1, 1952
  %3965 = vst.msk [vmem:[%s3964] ss:$-63 sm:$0xf0] %vm3961, %v3960
  %s3966 = scalar_lea.vmem %s0, 216
  %v3967 = vld [vmem:[%s3966] ss:$-7 sm:$0xf]
  %s3968 = scalar_lea.vmem %s0, 248
  %v3969 = vld [vmem:[%s3968] ss:$-7 sm:$0xf0]
  %vm3970 = vcmask 1047556
  %v3971 = vsel %vm3970, %v3969, %v3967
  %3972 = vrot.lane.b32.xlu0 %v3971, 96
  %v3973 = vpop.permute.xlu0 %3972
  %vm3974 = vcmask 31744
  %s3975 = scalar_lea.vmem %s1, 1952
  %3976 = vst.msk [vmem:[%s3975] ss:$-63 sm:$0xf] %vm3974, %v3973
  %s3977 = scalar_lea.vmem %s1, 2240
  %3978 = vst.msk [vmem:[%s3977] ss:$-63 sm:$0xf0] %vm3974, %v3973
  %s3979 = scalar_lea.vmem %s0, 248
  %v3980 = vld [vmem:[%s3979] ss:$-7 sm:$0xf]
  %s3981 = scalar_lea.vmem %s0, 280
  %v3982 = vld [vmem:[%s3981] ss:$-7 sm:$0xf0]
  %vm3983 = vcmask 1047556
  %v3984 = vsel %vm3983, %v3982, %v3980
  %3985 = vrot.lane.b32.xlu0 %v3984, 96
  %v3986 = vpop.permute.xlu0 %3985
  %vm3987 = vcmask 31744
  %s3988 = scalar_lea.vmem %s1, 2240
  %3989 = vst.msk [vmem:[%s3988] ss:$-63 sm:$0xf] %vm3987, %v3986
  %s3990 = scalar_lea.vmem %s1, 2528
  %3991 = vst.msk [vmem:[%s3990] ss:$-63 sm:$0xf0] %vm3987, %v3986
  %s3992 = smov 3
  %v3993 = vld [vmem:[%s0] ss:$25 sm:%s3992]
  %s3994 = scalar_lea.vmem %s0, 32
  %v3995 = vld [vmem:[%s3994] ss:$-7 sm:$0x1c]
  %vm3996 = vcmask 1044482
  %v3997 = vsel %vm3996, %v3995, %v3993
  %s3998 = scalar_lea.vmem %s0, 64
  %v3999 = vld [vmem:[%s3998] ss:$-7 sm:$0xe0]
  %vm4000 = vcmask 1047557
  %v4001 = vsel %vm4000, %v3999, %v3997
  %4002 = vrot.lane.b32.xlu0 %v4001, 96
  %v4003 = vpop.permute.xlu0 %4002
  %vm4004 = vcmask 31744
  %s4005 = scalar_lea.vmem %s1, 8
  %4006 = vst.msk [vmem:[%s4005] ss:$225 sm:$0x3] %vm4004, %v4003
  %s4007 = scalar_lea.vmem %s1, 296
  %4008 = vst.msk [vmem:[%s4007] ss:$-63 sm:$0x1c] %vm4004, %v4003
  %s4009 = scalar_lea.vmem %s1, 584
  %4010 = vst.msk [vmem:[%s4009] ss:$-63 sm:$0xe0] %vm4004, %v4003
  %s4011 = scalar_lea.vmem %s0, 32
  %s4012 = smov 3
  %v4013 = vld [vmem:[%s4011] ss:$25 sm:%s4012]
  %s4014 = scalar_lea.vmem %s0, 64
  %v4015 = vld [vmem:[%s4014] ss:$-7 sm:$0x1c]
  %vm4016 = vcmask 1044482
  %v4017 = vsel %vm4016, %v4015, %v4013
  %s4018 = scalar_lea.vmem %s0, 96
  %v4019 = vld [vmem:[%s4018] ss:$-7 sm:$0xe0]
  %vm4020 = vcmask 1047557
  %v4021 = vsel %vm4020, %v4019, %v4017
  %4022 = vrot.lane.b32.xlu0 %v4021, 96
  %v4023 = vpop.permute.xlu0 %4022
  %vm4024 = vcmask 31744
  %s4025 = scalar_lea.vmem %s1, 296
  %4026 = vst.msk [vmem:[%s4025] ss:$225 sm:$0x3] %vm4024, %v4023
  %s4027 = scalar_lea.vmem %s1, 584
  %4028 = vst.msk [vmem:[%s4027] ss:$-63 sm:$0x1c] %vm4024, %v4023
  %s4029 = scalar_lea.vmem %s1, 872
  %4030 = vst.msk [vmem:[%s4029] ss:$-63 sm:$0xe0] %vm4024, %v4023
  %s4031 = scalar_lea.vmem %s0, 64
  %s4032 = smov 3
  %v4033 = vld [vmem:[%s4031] ss:$25 sm:%s4032]
  %s4034 = scalar_lea.vmem %s0, 96
  %v4035 = vld [vmem:[%s4034] ss:$-7 sm:$0x1c]
  %vm4036 = vcmask 1044482
  %v4037 = vsel %vm4036, %v4035, %v4033
  %s4038 = scalar_lea.vmem %s0, 128
  %v4039 = vld [vmem:[%s4038] ss:$-7 sm:$0xe0]
  %vm4040 = vcmask 1047557
  %v4041 = vsel %vm4040, %v4039, %v4037
  %4042 = vrot.lane.b32.xlu0 %v4041, 96
  %v4043 = vpop.permute.xlu0 %4042
  %vm4044 = vcmask 31744
  %s4045 = scalar_lea.vmem %s1, 584
  %4046 = vst.msk [vmem:[%s4045] ss:$225 sm:$0x3] %vm4044, %v4043
  %s4047 = scalar_lea.vmem %s1, 872
  %4048 = vst.msk [vmem:[%s4047] ss:$-63 sm:$0x1c] %vm4044, %v4043
  %s4049 = scalar_lea.vmem %s1, 1160
  %4050 = vst.msk [vmem:[%s4049] ss:$-63 sm:$0xe0] %vm4044, %v4043
  %s4051 = scalar_lea.vmem %s0, 96
  %s4052 = smov 3
  %v4053 = vld [vmem:[%s4051] ss:$25 sm:%s4052]
  %s4054 = scalar_lea.vmem %s0, 128
  %v4055 = vld [vmem:[%s4054] ss:$-7 sm:$0x1c]
  %vm4056 = vcmask 1044482
  %v4057 = vsel %vm4056, %v4055, %v4053
  %s4058 = scalar_lea.vmem %s0, 160
  %v4059 = vld [vmem:[%s4058] ss:$-7 sm:$0xe0]
  %vm4060 = vcmask 1047557
  %v4061 = vsel %vm4060, %v4059, %v4057
  %4062 = vrot.lane.b32.xlu0 %v4061, 96
  %v4063 = vpop.permute.xlu0 %4062
  %vm4064 = vcmask 31744
  %s4065 = scalar_lea.vmem %s1, 872
  %4066 = vst.msk [vmem:[%s4065] ss:$225 sm:$0x3] %vm4064, %v4063
  %s4067 = scalar_lea.vmem %s1, 1160
  %4068 = vst.msk [vmem:[%s4067] ss:$-63 sm:$0x1c] %vm4064, %v4063
  %s4069 = scalar_lea.vmem %s1, 1448
  %4070 = vst.msk [vmem:[%s4069] ss:$-63 sm:$0xe0] %vm4064, %v4063
  %s4071 = scalar_lea.vmem %s0, 128
  %s4072 = smov 3
  %v4073 = vld [vmem:[%s4071] ss:$25 sm:%s4072]
  %s4074 = scalar_lea.vmem %s0, 160
  %v4075 = vld [vmem:[%s4074] ss:$-7 sm:$0x1c]
  %vm4076 = vcmask 1044482
  %v4077 = vsel %vm4076, %v4075, %v4073
  %s4078 = scalar_lea.vmem %s0, 192
  %v4079 = vld [vmem:[%s4078] ss:$-7 sm:$0xe0]
  %vm4080 = vcmask 1047557
  %v4081 = vsel %vm4080, %v4079, %v4077
  %4082 = vrot.lane.b32.xlu0 %v4081, 96
  %v4083 = vpop.permute.xlu0 %4082
  %vm4084 = vcmask 31744
  %s4085 = scalar_lea.vmem %s1, 1160
  %4086 = vst.msk [vmem:[%s4085] ss:$225 sm:$0x3] %vm4084, %v4083
  %s4087 = scalar_lea.vmem %s1, 1448
  %4088 = vst.msk [vmem:[%s4087] ss:$-63 sm:$0x1c] %vm4084, %v4083
  %s4089 = scalar_lea.vmem %s1, 1736
  %4090 = vst.msk [vmem:[%s4089] ss:$-63 sm:$0xe0] %vm4084, %v4083
  %s4091 = scalar_lea.vmem %s0, 160
  %s4092 = smov 3
  %v4093 = vld [vmem:[%s4091] ss:$25 sm:%s4092]
  %s4094 = scalar_lea.vmem %s0, 192
  %v4095 = vld [vmem:[%s4094] ss:$-7 sm:$0x1c]
  %vm4096 = vcmask 1044482
  %v4097 = vsel %vm4096, %v4095, %v4093
  %s4098 = scalar_lea.vmem %s0, 224
  %v4099 = vld [vmem:[%s4098] ss:$-7 sm:$0xe0]
  %vm4100 = vcmask 1047557
  %v4101 = vsel %vm4100, %v4099, %v4097
  %4102 = vrot.lane.b32.xlu0 %v4101, 96
  %v4103 = vpop.permute.xlu0 %4102
  %vm4104 = vcmask 31744
  %s4105 = scalar_lea.vmem %s1, 1448
  %4106 = vst.msk [vmem:[%s4105] ss:$225 sm:$0x3] %vm4104, %v4103
  %s4107 = scalar_lea.vmem %s1, 1736
  %4108 = vst.msk [vmem:[%s4107] ss:$-63 sm:$0x1c] %vm4104, %v4103
  %s4109 = scalar_lea.vmem %s1, 2024
  %4110 = vst.msk [vmem:[%s4109] ss:$-63 sm:$0xe0] %vm4104, %v4103
  %s4111 = scalar_lea.vmem %s0, 192
  %s4112 = smov 3
  %v4113 = vld [vmem:[%s4111] ss:$25 sm:%s4112]
  %s4114 = scalar_lea.vmem %s0, 224
  %v4115 = vld [vmem:[%s4114] ss:$-7 sm:$0x1c]
  %vm4116 = vcmask 1044482
  %v4117 = vsel %vm4116, %v4115, %v4113
  %s4118 = scalar_lea.vmem %s0, 256
  %v4119 = vld [vmem:[%s4118] ss:$-7 sm:$0xe0]
  %vm4120 = vcmask 1047557
  %v4121 = vsel %vm4120, %v4119, %v4117
  %4122 = vrot.lane.b32.xlu0 %v4121, 96
  %v4123 = vpop.permute.xlu0 %4122
  %vm4124 = vcmask 31744
  %s4125 = scalar_lea.vmem %s1, 1736
  %4126 = vst.msk [vmem:[%s4125] ss:$225 sm:$0x3] %vm4124, %v4123
  %s4127 = scalar_lea.vmem %s1, 2024
  %4128 = vst.msk [vmem:[%s4127] ss:$-63 sm:$0x1c] %vm4124, %v4123
  %s4129 = scalar_lea.vmem %s1, 2312
  %4130 = vst.msk [vmem:[%s4129] ss:$-63 sm:$0xe0] %vm4124, %v4123
  %s4131 = scalar_lea.vmem %s0, 224
  %s4132 = smov 3
  %v4133 = vld [vmem:[%s4131] ss:$25 sm:%s4132]
  %s4134 = scalar_lea.vmem %s0, 256
  %v4135 = vld [vmem:[%s4134] ss:$-7 sm:$0x1c]
  %vm4136 = vcmask 1044482
  %v4137 = vsel %vm4136, %v4135, %v4133
  %s4138 = scalar_lea.vmem %s0, 288
  %v4139 = vld [vmem:[%s4138] ss:$-7 sm:$0xe0]
  %vm4140 = vcmask 1047557
  %v4141 = vsel %vm4140, %v4139, %v4137
  %4142 = vrot.lane.b32.xlu0 %v4141, 96
  %v4143 = vpop.permute.xlu0 %4142
  %vm4144 = vcmask 31744
  %s4145 = scalar_lea.vmem %s1, 2024
  %4146 = vst.msk [vmem:[%s4145] ss:$225 sm:$0x3] %vm4144, %v4143
  %s4147 = scalar_lea.vmem %s1, 2312
  %4148 = vst.msk [vmem:[%s4147] ss:$-63 sm:$0x1c] %vm4144, %v4143
  %s4149 = scalar_lea.vmem %s1, 2600
  %4150 = vst.msk [vmem:[%s4149] ss:$-63 sm:$0xe0] %vm4144, %v4143
  %s4151 = scalar_lea.vmem %s0, 8
  %s4152 = smov 3
  %v4153 = vld [vmem:[%s4151] ss:$-7 sm:%s4152]
  %s4154 = scalar_lea.vmem %s0, 40
  %v4155 = vld [vmem:[%s4154] ss:$-7 sm:$0x3c]
  %vm4156 = vcmask 1045506
  %v4157 = vsel %vm4156, %v4155, %v4153
  %s4158 = scalar_lea.vmem %s0, 72
  %s4159 = smov 192
  %v4160 = vld [vmem:[%s4158] ss:$-7 sm:%s4159]
  %vm4161 = vcmask 1047558
  %v4162 = vsel %vm4161, %v4160, %v4157
  %4163 = vrot.lane.b32.xlu0 %v4162, 96
  %v4164 = vpop.permute.xlu0 %4163
  %vm4165 = vcmask 31744
  %s4166 = scalar_lea.vmem %s1, 80
  %4167 = vst.msk [vmem:[%s4166] ss:$-63 sm:$0x3] %vm4165, %v4164
  %s4168 = scalar_lea.vmem %s1, 368
  %4169 = vst.msk [vmem:[%s4168] ss:$-63 sm:$0x3c] %vm4165, %v4164
  %s4170 = scalar_lea.vmem %s1, 656
  %4171 = vst.msk [vmem:[%s4170] ss:$-63 sm:$0xc0] %vm4165, %v4164
  %s4172 = scalar_lea.vmem %s0, 40
  %s4173 = smov 3
  %v4174 = vld [vmem:[%s4172] ss:$-7 sm:%s4173]
  %s4175 = scalar_lea.vmem %s0, 72
  %v4176 = vld [vmem:[%s4175] ss:$-7 sm:$0x3c]
  %vm4177 = vcmask 1045506
  %v4178 = vsel %vm4177, %v4176, %v4174
  %s4179 = scalar_lea.vmem %s0, 104
  %s4180 = smov 192
  %v4181 = vld [vmem:[%s4179] ss:$-7 sm:%s4180]
  %vm4182 = vcmask 1047558
  %v4183 = vsel %vm4182, %v4181, %v4178
  %4184 = vrot.lane.b32.xlu0 %v4183, 96
  %v4185 = vpop.permute.xlu0 %4184
  %vm4186 = vcmask 31744
  %s4187 = scalar_lea.vmem %s1, 368
  %4188 = vst.msk [vmem:[%s4187] ss:$-63 sm:$0x3] %vm4186, %v4185
  %s4189 = scalar_lea.vmem %s1, 656
  %4190 = vst.msk [vmem:[%s4189] ss:$-63 sm:$0x3c] %vm4186, %v4185
  %s4191 = scalar_lea.vmem %s1, 944
  %4192 = vst.msk [vmem:[%s4191] ss:$-63 sm:$0xc0] %vm4186, %v4185
  %s4193 = scalar_lea.vmem %s0, 72
  %s4194 = smov 3
  %v4195 = vld [vmem:[%s4193] ss:$-7 sm:%s4194]
  %s4196 = scalar_lea.vmem %s0, 104
  %v4197 = vld [vmem:[%s4196] ss:$-7 sm:$0x3c]
  %vm4198 = vcmask 1045506
  %v4199 = vsel %vm4198, %v4197, %v4195
  %s4200 = scalar_lea.vmem %s0, 136
  %s4201 = smov 192
  %v4202 = vld [vmem:[%s4200] ss:$-7 sm:%s4201]
  %vm4203 = vcmask 1047558
  %v4204 = vsel %vm4203, %v4202, %v4199
  %4205 = vrot.lane.b32.xlu0 %v4204, 96
  %v4206 = vpop.permute.xlu0 %4205
  %vm4207 = vcmask 31744
  %s4208 = scalar_lea.vmem %s1, 656
  %4209 = vst.msk [vmem:[%s4208] ss:$-63 sm:$0x3] %vm4207, %v4206
  %s4210 = scalar_lea.vmem %s1, 944
  %4211 = vst.msk [vmem:[%s4210] ss:$-63 sm:$0x3c] %vm4207, %v4206
  %s4212 = scalar_lea.vmem %s1, 1232
  %4213 = vst.msk [vmem:[%s4212] ss:$-63 sm:$0xc0] %vm4207, %v4206
  %s4214 = scalar_lea.vmem %s0, 104
  %s4215 = smov 3
  %v4216 = vld [vmem:[%s4214] ss:$-7 sm:%s4215]
  %s4217 = scalar_lea.vmem %s0, 136
  %v4218 = vld [vmem:[%s4217] ss:$-7 sm:$0x3c]
  %vm4219 = vcmask 1045506
  %v4220 = vsel %vm4219, %v4218, %v4216
  %s4221 = scalar_lea.vmem %s0, 168
  %s4222 = smov 192
  %v4223 = vld [vmem:[%s4221] ss:$-7 sm:%s4222]
  %vm4224 = vcmask 1047558
  %v4225 = vsel %vm4224, %v4223, %v4220
  %4226 = vrot.lane.b32.xlu0 %v4225, 96
  %v4227 = vpop.permute.xlu0 %4226
  %vm4228 = vcmask 31744
  %s4229 = scalar_lea.vmem %s1, 944
  %4230 = vst.msk [vmem:[%s4229] ss:$-63 sm:$0x3] %vm4228, %v4227
  %s4231 = scalar_lea.vmem %s1, 1232
  %4232 = vst.msk [vmem:[%s4231] ss:$-63 sm:$0x3c] %vm4228, %v4227
  %s4233 = scalar_lea.vmem %s1, 1520
  %4234 = vst.msk [vmem:[%s4233] ss:$-63 sm:$0xc0] %vm4228, %v4227
  %s4235 = scalar_lea.vmem %s0, 136
  %s4236 = smov 3
  %v4237 = vld [vmem:[%s4235] ss:$-7 sm:%s4236]
  %s4238 = scalar_lea.vmem %s0, 168
  %v4239 = vld [vmem:[%s4238] ss:$-7 sm:$0x3c]
  %vm4240 = vcmask 1045506
  %v4241 = vsel %vm4240, %v4239, %v4237
  %s4242 = scalar_lea.vmem %s0, 200
  %s4243 = smov 192
  %v4244 = vld [vmem:[%s4242] ss:$-7 sm:%s4243]
  %vm4245 = vcmask 1047558
  %v4246 = vsel %vm4245, %v4244, %v4241
  %4247 = vrot.lane.b32.xlu0 %v4246, 96
  %v4248 = vpop.permute.xlu0 %4247
  %vm4249 = vcmask 31744
  %s4250 = scalar_lea.vmem %s1, 1232
  %4251 = vst.msk [vmem:[%s4250] ss:$-63 sm:$0x3] %vm4249, %v4248
  %s4252 = scalar_lea.vmem %s1, 1520
  %4253 = vst.msk [vmem:[%s4252] ss:$-63 sm:$0x3c] %vm4249, %v4248
  %s4254 = scalar_lea.vmem %s1, 1808
  %4255 = vst.msk [vmem:[%s4254] ss:$-63 sm:$0xc0] %vm4249, %v4248
  %s4256 = scalar_lea.vmem %s0, 168
  %s4257 = smov 3
  %v4258 = vld [vmem:[%s4256] ss:$-7 sm:%s4257]
  %s4259 = scalar_lea.vmem %s0, 200
  %v4260 = vld [vmem:[%s4259] ss:$-7 sm:$0x3c]
  %vm4261 = vcmask 1045506
  %v4262 = vsel %vm4261, %v4260, %v4258
  %s4263 = scalar_lea.vmem %s0, 232
  %s4264 = smov 192
  %v4265 = vld [vmem:[%s4263] ss:$-7 sm:%s4264]
  %vm4266 = vcmask 1047558
  %v4267 = vsel %vm4266, %v4265, %v4262
  %4268 = vrot.lane.b32.xlu0 %v4267, 96
  %v4269 = vpop.permute.xlu0 %4268
  %vm4270 = vcmask 31744
  %s4271 = scalar_lea.vmem %s1, 1520
  %4272 = vst.msk [vmem:[%s4271] ss:$-63 sm:$0x3] %vm4270, %v4269
  %s4273 = scalar_lea.vmem %s1, 1808
  %4274 = vst.msk [vmem:[%s4273] ss:$-63 sm:$0x3c] %vm4270, %v4269
  %s4275 = scalar_lea.vmem %s1, 2096
  %4276 = vst.msk [vmem:[%s4275] ss:$-63 sm:$0xc0] %vm4270, %v4269
  %s4277 = scalar_lea.vmem %s0, 200
  %s4278 = smov 3
  %v4279 = vld [vmem:[%s4277] ss:$-7 sm:%s4278]
  %s4280 = scalar_lea.vmem %s0, 232
  %v4281 = vld [vmem:[%s4280] ss:$-7 sm:$0x3c]
  %vm4282 = vcmask 1045506
  %v4283 = vsel %vm4282, %v4281, %v4279
  %s4284 = scalar_lea.vmem %s0, 264
  %s4285 = smov 192
  %v4286 = vld [vmem:[%s4284] ss:$-7 sm:%s4285]
  %vm4287 = vcmask 1047558
  %v4288 = vsel %vm4287, %v4286, %v4283
  %4289 = vrot.lane.b32.xlu0 %v4288, 96
  %v4290 = vpop.permute.xlu0 %4289
  %vm4291 = vcmask 31744
  %s4292 = scalar_lea.vmem %s1, 1808
  %4293 = vst.msk [vmem:[%s4292] ss:$-63 sm:$0x3] %vm4291, %v4290
  %s4294 = scalar_lea.vmem %s1, 2096
  %4295 = vst.msk [vmem:[%s4294] ss:$-63 sm:$0x3c] %vm4291, %v4290
  %s4296 = scalar_lea.vmem %s1, 2384
  %4297 = vst.msk [vmem:[%s4296] ss:$-63 sm:$0xc0] %vm4291, %v4290
  %s4298 = scalar_lea.vmem %s0, 232
  %s4299 = smov 3
  %v4300 = vld [vmem:[%s4298] ss:$-7 sm:%s4299]
  %s4301 = scalar_lea.vmem %s0, 264
  %v4302 = vld [vmem:[%s4301] ss:$-7 sm:$0x3c]
  %vm4303 = vcmask 1045506
  %v4304 = vsel %vm4303, %v4302, %v4300
  %s4305 = scalar_lea.vmem %s0, 296
  %s4306 = smov 192
  %v4307 = vld [vmem:[%s4305] ss:$-7 sm:%s4306]
  %vm4308 = vcmask 1047558
  %v4309 = vsel %vm4308, %v4307, %v4304
  %4310 = vrot.lane.b32.xlu0 %v4309, 96
  %v4311 = vpop.permute.xlu0 %4310
  %vm4312 = vcmask 31744
  %s4313 = scalar_lea.vmem %s1, 2096
  %4314 = vst.msk [vmem:[%s4313] ss:$-63 sm:$0x3] %vm4312, %v4311
  %s4315 = scalar_lea.vmem %s1, 2384
  %4316 = vst.msk [vmem:[%s4315] ss:$-63 sm:$0x3c] %vm4312, %v4311
  %s4317 = scalar_lea.vmem %s1, 2672
  %4318 = vst.msk [vmem:[%s4317] ss:$-63 sm:$0xc0] %vm4312, %v4311
  %s4319 = scalar_lea.vmem %s0, 16
  %v4320 = vld [vmem:[%s4319] ss:$-7 sm:$0x7]
  %s4321 = scalar_lea.vmem %s0, 48
  %v4322 = vld [vmem:[%s4321] ss:$-7 sm:$0x78]
  %vm4323 = vcmask 1046531
  %v4324 = vsel %vm4323, %v4322, %v4320
  %s4325 = scalar_lea.vmem %s0, 24
  %v4326 = vld [vmem:[%s4325] sm:$0x80]
  %vm4327 = vcmask 1047559
  %v4328 = vsel %vm4327, %v4326, %v4324
  %4329 = vrot.lane.b32.xlu0 %v4328, 96
  %v4330 = vpop.permute.xlu0 %4329
  %vm4331 = vcmask 31744
  %s4332 = scalar_lea.vmem %s1, 152
  %4333 = vst.msk [vmem:[%s4332] ss:$-63 sm:$0x7] %vm4331, %v4330
  %s4334 = scalar_lea.vmem %s1, 440
  %4335 = vst.msk [vmem:[%s4334] ss:$-63 sm:$0x78] %vm4331, %v4330
  %s4336 = scalar_lea.vmem %s1, 280
  %4337 = vst.msk [vmem:[%s4336] sm:$0x80] %vm4331, %v4330
  %s4338 = scalar_lea.vmem %s0, 48
  %v4339 = vld [vmem:[%s4338] ss:$-7 sm:$0x7]
  %s4340 = scalar_lea.vmem %s0, 80
  %v4341 = vld [vmem:[%s4340] ss:$-7 sm:$0x78]
  %vm4342 = vcmask 1046531
  %v4343 = vsel %vm4342, %v4341, %v4339
  %s4344 = scalar_lea.vmem %s0, 56
  %v4345 = vld [vmem:[%s4344] sm:$0x80]
  %vm4346 = vcmask 1047559
  %v4347 = vsel %vm4346, %v4345, %v4343
  %4348 = vrot.lane.b32.xlu0 %v4347, 96
  %v4349 = vpop.permute.xlu0 %4348
  %vm4350 = vcmask 31744
  %s4351 = scalar_lea.vmem %s1, 440
  %4352 = vst.msk [vmem:[%s4351] ss:$-63 sm:$0x7] %vm4350, %v4349
  %s4353 = scalar_lea.vmem %s1, 728
  %4354 = vst.msk [vmem:[%s4353] ss:$-63 sm:$0x78] %vm4350, %v4349
  %s4355 = scalar_lea.vmem %s1, 568
  %4356 = vst.msk [vmem:[%s4355] sm:$0x80] %vm4350, %v4349
  %s4357 = scalar_lea.vmem %s0, 80
  %v4358 = vld [vmem:[%s4357] ss:$-7 sm:$0x7]
  %s4359 = scalar_lea.vmem %s0, 112
  %v4360 = vld [vmem:[%s4359] ss:$-7 sm:$0x78]
  %vm4361 = vcmask 1046531
  %v4362 = vsel %vm4361, %v4360, %v4358
  %s4363 = scalar_lea.vmem %s0, 88
  %v4364 = vld [vmem:[%s4363] sm:$0x80]
  %vm4365 = vcmask 1047559
  %v4366 = vsel %vm4365, %v4364, %v4362
  %4367 = vrot.lane.b32.xlu0 %v4366, 96
  %v4368 = vpop.permute.xlu0 %4367
  %vm4369 = vcmask 31744
  %s4370 = scalar_lea.vmem %s1, 728
  %4371 = vst.msk [vmem:[%s4370] ss:$-63 sm:$0x7] %vm4369, %v4368
  %s4372 = scalar_lea.vmem %s1, 1016
  %4373 = vst.msk [vmem:[%s4372] ss:$-63 sm:$0x78] %vm4369, %v4368
  %s4374 = scalar_lea.vmem %s1, 856
  %4375 = vst.msk [vmem:[%s4374] sm:$0x80] %vm4369, %v4368
  %s4376 = scalar_lea.vmem %s0, 112
  %v4377 = vld [vmem:[%s4376] ss:$-7 sm:$0x7]
  %s4378 = scalar_lea.vmem %s0, 144
  %v4379 = vld [vmem:[%s4378] ss:$-7 sm:$0x78]
  %vm4380 = vcmask 1046531
  %v4381 = vsel %vm4380, %v4379, %v4377
  %s4382 = scalar_lea.vmem %s0, 120
  %v4383 = vld [vmem:[%s4382] sm:$0x80]
  %vm4384 = vcmask 1047559
  %v4385 = vsel %vm4384, %v4383, %v4381
  %4386 = vrot.lane.b32.xlu0 %v4385, 96
  %v4387 = vpop.permute.xlu0 %4386
  %vm4388 = vcmask 31744
  %s4389 = scalar_lea.vmem %s1, 1016
  %4390 = vst.msk [vmem:[%s4389] ss:$-63 sm:$0x7] %vm4388, %v4387
  %s4391 = scalar_lea.vmem %s1, 1304
  %4392 = vst.msk [vmem:[%s4391] ss:$-63 sm:$0x78] %vm4388, %v4387
  %s4393 = scalar_lea.vmem %s1, 1144
  %4394 = vst.msk [vmem:[%s4393] sm:$0x80] %vm4388, %v4387
  %s4395 = scalar_lea.vmem %s0, 144
  %v4396 = vld [vmem:[%s4395] ss:$-7 sm:$0x7]
  %s4397 = scalar_lea.vmem %s0, 176
  %v4398 = vld [vmem:[%s4397] ss:$-7 sm:$0x78]
  %vm4399 = vcmask 1046531
  %v4400 = vsel %vm4399, %v4398, %v4396
  %s4401 = scalar_lea.vmem %s0, 152
  %v4402 = vld [vmem:[%s4401] sm:$0x80]
  %vm4403 = vcmask 1047559
  %v4404 = vsel %vm4403, %v4402, %v4400
  %4405 = vrot.lane.b32.xlu0 %v4404, 96
  %v4406 = vpop.permute.xlu0 %4405
  %vm4407 = vcmask 31744
  %s4408 = scalar_lea.vmem %s1, 1304
  %4409 = vst.msk [vmem:[%s4408] ss:$-63 sm:$0x7] %vm4407, %v4406
  %s4410 = scalar_lea.vmem %s1, 1592
  %4411 = vst.msk [vmem:[%s4410] ss:$-63 sm:$0x78] %vm4407, %v4406
  %s4412 = scalar_lea.vmem %s1, 1432
  %4413 = vst.msk [vmem:[%s4412] sm:$0x80] %vm4407, %v4406
  %s4414 = scalar_lea.vmem %s0, 176
  %v4415 = vld [vmem:[%s4414] ss:$-7 sm:$0x7]
  %s4416 = scalar_lea.vmem %s0, 208
  %v4417 = vld [vmem:[%s4416] ss:$-7 sm:$0x78]
  %vm4418 = vcmask 1046531
  %v4419 = vsel %vm4418, %v4417, %v4415
  %s4420 = scalar_lea.vmem %s0, 184
  %v4421 = vld [vmem:[%s4420] sm:$0x80]
  %vm4422 = vcmask 1047559
  %v4423 = vsel %vm4422, %v4421, %v4419
  %4424 = vrot.lane.b32.xlu0 %v4423, 96
  %v4425 = vpop.permute.xlu0 %4424
  %vm4426 = vcmask 31744
  %s4427 = scalar_lea.vmem %s1, 1592
  %4428 = vst.msk [vmem:[%s4427] ss:$-63 sm:$0x7] %vm4426, %v4425
  %s4429 = scalar_lea.vmem %s1, 1880
  %4430 = vst.msk [vmem:[%s4429] ss:$-63 sm:$0x78] %vm4426, %v4425
  %s4431 = scalar_lea.vmem %s1, 1720
  %4432 = vst.msk [vmem:[%s4431] sm:$0x80] %vm4426, %v4425
  %s4433 = scalar_lea.vmem %s0, 208
  %v4434 = vld [vmem:[%s4433] ss:$-7 sm:$0x7]
  %s4435 = scalar_lea.vmem %s0, 240
  %v4436 = vld [vmem:[%s4435] ss:$-7 sm:$0x78]
  %vm4437 = vcmask 1046531
  %v4438 = vsel %vm4437, %v4436, %v4434
  %s4439 = scalar_lea.vmem %s0, 216
  %v4440 = vld [vmem:[%s4439] sm:$0x80]
  %vm4441 = vcmask 1047559
  %v4442 = vsel %vm4441, %v4440, %v4438
  %4443 = vrot.lane.b32.xlu0 %v4442, 96
  %v4444 = vpop.permute.xlu0 %4443
  %vm4445 = vcmask 31744
  %s4446 = scalar_lea.vmem %s1, 1880
  %4447 = vst.msk [vmem:[%s4446] ss:$-63 sm:$0x7] %vm4445, %v4444
  %s4448 = scalar_lea.vmem %s1, 2168
  %4449 = vst.msk [vmem:[%s4448] ss:$-63 sm:$0x78] %vm4445, %v4444
  %s4450 = scalar_lea.vmem %s1, 2008
  %4451 = vst.msk [vmem:[%s4450] sm:$0x80] %vm4445, %v4444
  %s4452 = scalar_lea.vmem %s0, 240
  %v4453 = vld [vmem:[%s4452] ss:$-7 sm:$0x7]
  %s4454 = scalar_lea.vmem %s0, 272
  %v4455 = vld [vmem:[%s4454] ss:$-7 sm:$0x78]
  %vm4456 = vcmask 1046531
  %v4457 = vsel %vm4456, %v4455, %v4453
  %s4458 = scalar_lea.vmem %s0, 248
  %v4459 = vld [vmem:[%s4458] sm:$0x80]
  %vm4460 = vcmask 1047559
  %v4461 = vsel %vm4460, %v4459, %v4457
  %4462 = vrot.lane.b32.xlu0 %v4461, 96
  %v4463 = vpop.permute.xlu0 %4462
  %vm4464 = vcmask 31744
  %s4465 = scalar_lea.vmem %s1, 2168
  %4466 = vst.msk [vmem:[%s4465] ss:$-63 sm:$0x7] %vm4464, %v4463
  %s4467 = scalar_lea.vmem %s1, 2456
  %4468 = vst.msk [vmem:[%s4467] ss:$-63 sm:$0x78] %vm4464, %v4463
  %s4469 = scalar_lea.vmem %s1, 2296
  %4470 = vst.msk [vmem:[%s4469] sm:$0x80] %vm4464, %v4463

// kernel: _rpn_device.1
$region0: #{_rpn_device.1}
  #allocation0 [shape = 'u32[]', space=smem, size = 0x4, offset = 0x4, fixed_abs, tag = 'smem constant byte address 0x4 - core index']
  #allocation1 [shape = 'u32[144,128]{1,0:T(1,128)}', space=vmem, size = 0x12000, scoped, tag = 'internal scratch']
  %s0 = inlined_call_operand.vmem [shape: bf16[2,4,96,12], index: 0, kind: input, shape index: {}]
  %s1 = inlined_call_operand.vmem [shape: bf16[3,12,8], index: 1, kind: input, shape index: {}]
  %s2 = inlined_call_operand.vmem [shape: f32[1,8], index: 2, kind: input, shape index: {}]
  %s3 = inlined_call_operand.vmem [shape: bf16[8,128], index: 3, kind: input, shape index: {}]
  %s4 = inlined_call_operand.vmem [shape: f32[1,128], index: 4, kind: input, shape index: {}]
  %s5 = inlined_call_operand.vmem [shape: f32[2,4,64,128], index: 5, kind: output, shape index: {}]
  %s6 = sld [smem:[#allocation0]]
  $region53: #{_rpn_device.1} parent=0
    _
  %s8 = ssub.s32 1, %s6
  %s9 = scalar_select 0, %s8, %s6
  loop: start=0, step=1, limit=10
  $region2: #{_rpn_device.1} parent=0 // loop_pre_header
    _
  $region3: #{_rpn_device.1} parent=0 // loop_header
    %s11 = sphi 0, %s15
    %p12 = scmp.ge.s32.totalorder %s11, 10
    %s18 = sphi 0, %s30
    %s19 = sphi 0, %s26
    %s20 = sphi 0, %s18
    %s21 = sphi 0, %s19
    %s22 = sphi 0, %s20
    %s23 = sphi 0, %s21
    %s35 = sphi 0, %s37
    %s38 = sphi 0, %s35
    %s39 = sphi 0, %s38
    %s55 = sphi 0, %s39
    %s59 = sphi 0, %s59
    %s61 = sphi 0, %s59
    %s62 = sphi 0, %s61
    %s76 = sphi 0, %s62
    %s80 = sphi 0, %s80
    %s82 = sphi 0, %s80
    %s83 = sphi 0, %s82
    %s97 = sphi 0, %s83
    %s101 = sphi 0, %s101
    %s103 = sphi 0, %s101
    %s104 = sphi 0, %s103
    %s118 = sphi 0, %s104
    %s122 = sphi 0, %s122
    %s124 = sphi 0, %s122
    %s125 = sphi 0, %s124
    %s139 = sphi 0, %s125
    %s147 = sphi 0, %s149
    %s150 = sphi 0, %s147
    %s151 = sphi 0, %s150
    %s167 = sphi 0, %s151
  $region4: #{_rpn_device.1} parent=0 // loop_header_branch
    %14 = sbr.rel (%p12) target = $region8
  $region5: #{_rpn_device.1} parent=0 // loop_body
    %s16 = ssub.s32 %s11, 1
    %s17 = ssub.s32 %s11, 2
    %s24 = sadd.s32 1, %s19
    %p25 = scmp.ge.s32.totalorder %s24, 4
    %s26 = scalar_select %p25, 0, %s24
    %s27 = sadd.s32 1, %s18
    %s28 = scalar_select %p25, %s27, %s18
    %p29 = scmp.ge.s32.totalorder %s28, 2
    %s30 = scalar_select %p29, 0, %s28
    %s31 = ssub.s32 %s18, %s30
    %s32 = ssub.s32 %s19, %s26
    %s33 = sor.u32 %s31, %s32
    %p34 = scmp.eq.s32.totalorder %s33, 0
    %s36 = sadd.s32 %s35, 1
    %s37 = scalar_select %p34, %s35, %s36
    %p40 = pneg %p34
    %p41 = scmp.eq.s32.totalorder %s11, 7
    %p42 = por %p40, %p41
    %p43 = scmp.ne.s32.totalorder %s35, %s38
    %p44 = scmp.eq.s32.totalorder %s11, 0
    %p45 = por %p43, %p44
    %p46 = scmp.ne.s32.totalorder %s35, %s38
    %p47 = scmp.eq.s32.totalorder %s16, 7
    %p48 = por %p46, %p47
    %p49 = scmp.ne.s32.totalorder %s38, %s39
    %p50 = scmp.eq.s32.totalorder %s16, 0
    %p51 = por %p49, %p50
    %p52 = scmp.ne.s32.totalorder %s38, %s39
    %p53 = scmp.eq.s32.totalorder %s17, 7
    %p54 = por %p52, %p53
    %p56 = scmp.ne.s32.totalorder %s39, %s55
    %p57 = scmp.eq.s32.totalorder %s17, 0
    %p58 = por %p56, %p57
    %s60 = sadd.s32 %s59, 1
    %p63 = scmp.eq.s32.totalorder %s11, 7
    %p64 = scmp.ne.s32.totalorder %s59, %s61
    %p65 = scmp.eq.s32.totalorder %s11, 0
    %p66 = por %p64, %p65
    %p67 = scmp.ne.s32.totalorder %s59, %s61
    %p68 = scmp.eq.s32.totalorder %s16, 7
    %p69 = por %p67, %p68
    %p70 = scmp.ne.s32.totalorder %s61, %s62
    %p71 = scmp.eq.s32.totalorder %s16, 0
    %p72 = por %p70, %p71
    %p73 = scmp.ne.s32.totalorder %s61, %s62
    %p74 = scmp.eq.s32.totalorder %s17, 7
    %p75 = por %p73, %p74
    %p77 = scmp.ne.s32.totalorder %s62, %s76
    %p78 = scmp.eq.s32.totalorder %s17, 0
    %p79 = por %p77, %p78
    %s81 = sadd.s32 %s80, 1
    %p84 = scmp.eq.s32.totalorder %s11, 7
    %p85 = scmp.ne.s32.totalorder %s80, %s82
    %p86 = scmp.eq.s32.totalorder %s11, 0
    %p87 = por %p85, %p86
    %p88 = scmp.ne.s32.totalorder %s80, %s82
    %p89 = scmp.eq.s32.totalorder %s16, 7
    %p90 = por %p88, %p89
    %p91 = scmp.ne.s32.totalorder %s82, %s83
    %p92 = scmp.eq.s32.totalorder %s16, 0
    %p93 = por %p91, %p92
    %p94 = scmp.ne.s32.totalorder %s82, %s83
    %p95 = scmp.eq.s32.totalorder %s17, 7
    %p96 = por %p94, %p95
    %p98 = scmp.ne.s32.totalorder %s83, %s97
    %p99 = scmp.eq.s32.totalorder %s17, 0
    %p100 = por %p98, %p99
    %s102 = sadd.s32 %s101, 1
    %p105 = scmp.eq.s32.totalorder %s11, 7
    %p106 = scmp.ne.s32.totalorder %s101, %s103
    %p107 = scmp.eq.s32.totalorder %s11, 0
    %p108 = por %p106, %p107
    %p109 = scmp.ne.s32.totalorder %s101, %s103
    %p110 = scmp.eq.s32.totalorder %s16, 7
    %p111 = por %p109, %p110
    %p112 = scmp.ne.s32.totalorder %s103, %s104
    %p113 = scmp.eq.s32.totalorder %s16, 0
    %p114 = por %p112, %p113
    %p115 = scmp.ne.s32.totalorder %s103, %s104
    %p116 = scmp.eq.s32.totalorder %s17, 7
    %p117 = por %p115, %p116
    %p119 = scmp.ne.s32.totalorder %s104, %s118
    %p120 = scmp.eq.s32.totalorder %s17, 0
    %p121 = por %p119, %p120
    %s123 = sadd.s32 %s122, 1
    %p126 = scmp.eq.s32.totalorder %s11, 7
    %p127 = scmp.ne.s32.totalorder %s122, %s124
    %p128 = scmp.eq.s32.totalorder %s11, 0
    %p129 = por %p127, %p128
    %p130 = scmp.ne.s32.totalorder %s122, %s124
    %p131 = scmp.eq.s32.totalorder %s16, 7
    %p132 = por %p130, %p131
    %p133 = scmp.ne.s32.totalorder %s124, %s125
    %p134 = scmp.eq.s32.totalorder %s16, 0
    %p135 = por %p133, %p134
    %p136 = scmp.ne.s32.totalorder %s124, %s125
    %p137 = scmp.eq.s32.totalorder %s17, 7
    %p138 = por %p136, %p137
    %p140 = scmp.ne.s32.totalorder %s125, %s139
    %p141 = scmp.eq.s32.totalorder %s17, 0
    %p142 = por %p140, %p141
    %s143 = ssub.s32 %s18, %s30
    %s144 = ssub.s32 %s19, %s26
    %s145 = sor.u32 %s143, %s144
    %p146 = scmp.eq.s32.totalorder %s145, 0
    %s148 = sadd.s32 %s147, 1
    %s149 = scalar_select %p146, %s147, %s148
    %p152 = pneg %p146
    %p153 = scmp.eq.s32.totalorder %s11, 7
    %p154 = por %p152, %p153
    %p155 = scmp.ne.s32.totalorder %s147, %s150
    %p156 = scmp.eq.s32.totalorder %s11, 0
    %p157 = por %p155, %p156
    %p158 = scmp.ne.s32.totalorder %s147, %s150
    %p159 = scmp.eq.s32.totalorder %s16, 7
    %p160 = por %p158, %p159
    %p161 = scmp.ne.s32.totalorder %s150, %s151
    %p162 = scmp.eq.s32.totalorder %s16, 0
    %p163 = por %p161, %p162
    %p164 = scmp.ne.s32.totalorder %s150, %s151
    %p165 = scmp.eq.s32.totalorder %s17, 7
    %p166 = por %p164, %p165
    %p168 = scmp.ne.s32.totalorder %s151, %s167
    %p169 = scmp.eq.s32.totalorder %s17, 0
    %p170 = por %p168, %p169
    %p171 = scmp.le.s32.totalorder 1, %s11
    %p172 = scmp.lt.s32.totalorder %s11, 9
    %p173 = pnand %p171, %p172
    %p174 = pneg %p173
    // Predicated region
    $region9: #{_rpn_device.1} parent=5 // pred_check
      _
    $region10: #{_rpn_device.1} parent=5 // pred_check_branch
      %176 = sbr.rel (%p173) target = $region12
    $region11: #{_rpn_device.1} parent=5 // pred_region
      %s177 = ssub.s32 %s11, 1
      // Predicated region
      $region13: #{_rpn_device.1} parent=11 // pred_check
        %p178 = pneg %p72
      $region14: #{_rpn_device.1} parent=11 // pred_check_branch
        %180 = sbr.rel (%p178) target = $region16
      $region15: #{_rpn_device.1} parent=11 // pred_region
        _
      $region16: #{_rpn_device.1} parent=11 // pred_fallthru
        _
      // Predicated region
      $region17: #{_rpn_device.1} parent=11 // pred_check
        %p181 = pneg %p93
      $region18: #{_rpn_device.1} parent=11 // pred_check_branch
        %183 = sbr.rel (%p181) target = $region20
      $region19: #{_rpn_device.1} parent=11 // pred_region
        _
      $region20: #{_rpn_device.1} parent=11 // pred_fallthru
        _
      // Predicated region
      $region21: #{_rpn_device.1} parent=11 // pred_check
        %p184 = pneg %p114
      $region22: #{_rpn_device.1} parent=11 // pred_check_branch
        %186 = sbr.rel (%p184) target = $region24
      $region23: #{_rpn_device.1} parent=11 // pred_region
        _
      $region24: #{_rpn_device.1} parent=11 // pred_fallthru
        _
      // Predicated region
      $region25: #{_rpn_device.1} parent=11 // pred_check
        %p187 = pneg %p135
      $region26: #{_rpn_device.1} parent=11 // pred_check_branch
        %189 = sbr.rel (%p187) target = $region28
      $region27: #{_rpn_device.1} parent=11 // pred_region
        _
      $region28: #{_rpn_device.1} parent=11 // pred_fallthru
        _
    $region12: #{_rpn_device.1} parent=5 // pred_fallthru
      _
    %p190 = scmp.lt.s32.totalorder %s11, 8
    // Predicated region
    $region29: #{_rpn_device.1} parent=5 // pred_check
      %p191 = pneg %p190
    $region30: #{_rpn_device.1} parent=5 // pred_check_branch
      %193 = sbr.rel (%p191) target = $region32
    $region31: #{_rpn_device.1} parent=5 // pred_region
      // Predicated region
      $region33: #{_rpn_device.1} parent=31 // pred_check
        %p194 = pneg %p45
      $region34: #{_rpn_device.1} parent=31 // pred_check_branch
        %196 = sbr.rel (%p194) target = $region36
      $region35: #{_rpn_device.1} parent=31 // pred_region
        %p197 = scmp.lt.s32.totalorder %s18, 1
        %s198 = scalar_select %p197, %s18, 1
        %p199 = scmp.lt.s32.totalorder %s19, 3
        %s200 = scalar_select %p199, %s19, 3
        %s201 = smul.addr %s200, 12
        %s202 = smul.addr %s198, 48
        %s203 = sadd.s32 %s201, %s202
        %s204 = smul.addr %s203, 4
        %s205 = scalar_lea.vmem %s0, %s204
      $region36: #{_rpn_device.1} parent=31 // pred_fallthru
        _
    $region32: #{_rpn_device.1} parent=5 // pred_fallthru
      _
    %p206 = scmp.le.s32.totalorder 1, %s11
    %p207 = scmp.lt.s32.totalorder %s11, 9
    %p208 = pnand %p206, %p207
    %p209 = pneg %p208
    // Predicated region
    $region37: #{_rpn_device.1} parent=5 // pred_check
      _
    $region38: #{_rpn_device.1} parent=5 // pred_check_branch
      %211 = sbr.rel (%p208) target = $region40
    $region39: #{_rpn_device.1} parent=5 // pred_region
      %s212 = ssub.s32 %s11, 1
      %p213 = scmp.lt.s32.totalorder %s20, 1
      %s214 = scalar_select %p213, %s20, 1
      %p215 = scmp.lt.s32.totalorder %s21, 3
      %s216 = scalar_select %p215, %s21, 3
      %s217 = smul.addr %s216, 12
      %s218 = smul.addr %s214, 48
      %s219 = sadd.s32 %s217, %s218
      %s220 = smul.addr %s219, 4
      %s221 = scalar_lea.vmem %s0, %s220
      %p222 = pneg %p51
      %p223 = pneg %p48
      %p224 = pneg %p72
      %p225 = pneg %p69
      %p226 = pneg %p93
      %p227 = pneg %p90
      %p228 = pneg %p114
      %p229 = pneg %p111
      %p230 = pneg %p135
      %p231 = pneg %p132
      %p232 = pneg %p163
      %p233 = pneg %p160
      %p234 = scmp.lt.s32.totalorder %s20, 1
      %s235 = scalar_select %p234, %s20, 1
      %p236 = scmp.lt.s32.totalorder %s21, 3
      %s237 = scalar_select %p236, %s21, 3
      %s238 = smul.addr %s237, 8
      %s239 = smul.addr %s235, 32
      %s240 = sadd.s32 %s238, %s239
      %s241 = smul.addr %s240, 8
      %s242 = scalar_lea.vmem %s5, %s241
      %p243 = scmp.lt.s32.totalorder %s20, 1
      %s244 = scalar_select %p243, %s20, 1
      %p245 = scmp.lt.s32.totalorder %s21, 3
      %s246 = scalar_select %p245, %s21, 3
      %s247 = smul.addr %s246, 12
      %s248 = smul.addr %s244, 48
      %s249 = sadd.s32 %s247, %s248
      %s250 = smul.addr %s249, 4
      %s251 = scalar_lea.vmem %s0, %s250
      %p252 = scmp.lt.s32.totalorder %s20, 1
      %s253 = scalar_select %p252, %s20, 1
      %p254 = scmp.lt.s32.totalorder %s21, 3
      %s255 = scalar_select %p254, %s21, 3
      %s256 = smul.addr %s255, 8
      %s257 = smul.addr %s253, 32
      %s258 = sadd.s32 %s256, %s257
      %s259 = smul.addr %s258, 8
      %s260 = scalar_lea.vmem %s5, %s259
      %v262 = vld [vmem:[%s251] sm:$0xf]
      %v263 = vld [vmem:[%s251 + $0x4] sm:$0xf]
      %v264 = vld [vmem:[%s251 + $0x8] sm:$0xf]
      %v265 = vld [vmem:[%s251 + $0xc] sm:$0xf]
      %v266 = vld [vmem:[%s251 + $0x10] sm:$0xf]
      %v267 = vld [vmem:[%s251 + $0x14] sm:$0xf]
      %v268 = vld [vmem:[%s251 + $0x18] sm:$0xf]
      %v269 = vld [vmem:[%s251 + $0x1c] sm:$0xf]
      %v270 = vld [vmem:[%s1] sm:$0xf]
      %v271 = vld [vmem:[%s1 + $0x4] sm:$0x3]
      %v272 = vld [vmem:[%s251 + $0x20] sm:$0xf]
      %v273 = vld [vmem:[%s251 + $0x24] sm:$0xf]
      %s274 = scalar_lea.vmem %s1, 8
      %v275 = vld [vmem:[%s274] sm:$0xf]
      %v276 = vld [vmem:[%s274 + $0x4] sm:$0x3]
      %v285 = vunpack.c.l.b16 %v264
      %v286 = vunpack.c.l.b16 %v265
      %v287 = vunpack.c.l.b16 %v266
      %v288 = vunpack.c.l.b16 %v267
      %v289 = vunpack.c.l.b16 %v268
      %v290 = vunpack.c.l.b16 %v269
      %v291 = vunpack.c.l.b16 %v272
      %v292 = vunpack.c.l.b16 %v273
      %v293 = vpack.c.b16 %v286, %v285
      %v294 = vpack.c.b16 %v288, %v287
      %v295 = vpack.c.b16 %v290, %v289
      %v296 = vpack.c.b16 %v292, %v291
      %v299 = vunpack.c.l.b16 %v275
      %v300 = vunpack.c.l.b16 %v276
      %v301 = vpack.c.b16 %v300, %v299
      %vm302 = vcmask 97280
      %v304 = vsel %vm302, %v293, 0
      %v307 = vsel %vm302, %v294, 0
      %v310 = vsel %vm302, %v295, 0
      %v313 = vsel %vm302, %v296, 0
      %vm315 = vcmask 1045504
      %v317 = vsel %vm315, %v301, 0
      %319 = vmatprep.subr.bf16.mxu0 0
      %320 = vmatpush1.bf16.msra.mxu0 %v317
      %321 = vmatprep.subr.bf16.mxu0 0
      %322 = vmatpush1.bf16.msra.mxu0 0
      %323 = vmatprep.subr.bf16.mxu0 0
      %324 = vmatpush1.bf16.msra.mxu0 0
      %325 = vmatprep.subr.bf16.mxu0 0
      %326 = vmatpush1.bf16.msra.mxu0 0
      %327 = vmatprep.subr.bf16.mxu0 0
      %328 = vmatpush1.bf16.msra.mxu0 0
      %329 = vmatprep.subr.bf16.mxu0 0
      %330 = vmatpush1.bf16.msra.mxu0 0
      %331 = vmatprep.subr.bf16.mxu0 0
      %332 = vmatpush1.bf16.msra.mxu0 0
      %333 = vmatprep.subr.bf16.mxu0 0
      %334 = vmatpush1.bf16.msra.mxu0 0
      %335 = vmatprep.subr.bf16.mxu0 0
      %336 = vmatpush1.bf16.msra.mxu0 0
      %337 = vmatprep.subr.bf16.mxu0 0
      %338 = vmatpush1.bf16.msra.mxu0 0
      %339 = vmatprep.subr.bf16.mxu0 0
      %340 = vmatpush1.bf16.msra.mxu0 0
      %341 = vmatprep.subr.bf16.mxu0 0
      %342 = vmatpush1.bf16.msra.mxu0 0
      %343 = vmatprep.subr.bf16.mxu0 0
      %344 = vmatpush1.bf16.msra.mxu0 0
      %345 = vmatprep.subr.bf16.mxu0 0
      %346 = vmatpush1.bf16.msra.mxu0 0
      %347 = vmatprep.subr.bf16.mxu0 0
      %348 = vmatpush1.bf16.msra.mxu0 0
      %349 = vmatprep.subr.bf16.mxu0 0
      %350 = vmatpush1.bf16.msra.mxu0 0
      %351 = vmatprep.mubr.bf16.mxu0 0
      %352 = vmatmul.mubr.bf16.gmra.mrb[0].mxu0 %v304
      %v353 = vpop.f32.mrb[0].mxu0
      %v354 = vadd.f32 0.0, %v353
      %v355 = vpop.f32.mrb[0].mxu0
      %v356 = vpop.f32.mrb[0].mxu0
      %v357 = vadd.f32 0.0, %v356
      %v358 = vpop.f32.mrb[0].mxu0
      %359 = vmatprep.mubr.bf16.mxu0 0
      %360 = vmatmul.mubr.bf16.gmra.mrb[0].mxu0 %v307
      %v361 = vpop.f32.mrb[0].mxu0
      %v362 = vadd.f32 0.0, %v361
      %v363 = vpop.f32.mrb[0].mxu0
      %v364 = vpop.f32.mrb[0].mxu0
      %v365 = vadd.f32 0.0, %v364
      %v366 = vpop.f32.mrb[0].mxu0
      %367 = vmatprep.mubr.bf16.mxu0 0
      %368 = vmatmul.mubr.bf16.gmra.mrb[0].mxu0 %v310
      %v369 = vpop.f32.mrb[0].mxu0
      %v370 = vadd.f32 0.0, %v369
      %v371 = vpop.f32.mrb[0].mxu0
      %v372 = vpop.f32.mrb[0].mxu0
      %v373 = vadd.f32 0.0, %v372
      %v374 = vpop.f32.mrb[0].mxu0
      %375 = vmatprep.mubr.bf16.mxu0 0
      %376 = vmatmul.mubr.bf16.gmra.mrb[0].mxu0 %v313
      %v377 = vpop.f32.mrb[0].mxu0
      %v378 = vadd.f32 0.0, %v377
      %v379 = vpop.f32.mrb[0].mxu0
      %v380 = vpop.f32.mrb[0].mxu0
      %v381 = vadd.f32 0.0, %v380
      %v382 = vpop.f32.mrb[0].mxu0
      %383 = vdwg.mxu0
      %v386 = vunpack.c.l.b16 %v262
      %v387 = vunpack.c.l.b16 %v263
      %v388 = vpack.c.b16 %v387, %v386
      %v391 = vunpack.c.l.b16 %v270
      %v392 = vunpack.c.l.b16 %v271
      %v393 = vpack.c.b16 %v392, %v391
      %v395 = vsel %vm302, %v388, 0
      %v398 = vsel %vm315, %v393, 0
      %400 = vmatprep.subr.bf16.mxu0 0
      %401 = vmatpush1.bf16.msra.mxu0 %v398
      %402 = vmatprep.subr.bf16.mxu0 0
      %403 = vmatpush1.bf16.msra.mxu0 0
      %404 = vmatprep.subr.bf16.mxu0 0
      %405 = vmatpush1.bf16.msra.mxu0 0
      %406 = vmatprep.subr.bf16.mxu0 0
      %407 = vmatpush1.bf16.msra.mxu0 0
      %408 = vmatprep.subr.bf16.mxu0 0
      %409 = vmatpush1.bf16.msra.mxu0 0
      %410 = vmatprep.subr.bf16.mxu0 0
      %411 = vmatpush1.bf16.msra.mxu0 0
      %412 = vmatprep.subr.bf16.mxu0 0
      %413 = vmatpush1.bf16.msra.mxu0 0
      %414 = vmatprep.subr.bf16.mxu0 0
      %415 = vmatpush1.bf16.msra.mxu0 0
      %416 = vmatprep.subr.bf16.mxu0 0
      %417 = vmatpush1.bf16.msra.mxu0 0
      %418 = vmatprep.subr.bf16.mxu0 0
      %419 = vmatpush1.bf16.msra.mxu0 0
      %420 = vmatprep.subr.bf16.mxu0 0
      %421 = vmatpush1.bf16.msra.mxu0 0
      %422 = vmatprep.subr.bf16.mxu0 0
      %423 = vmatpush1.bf16.msra.mxu0 0
      %424 = vmatprep.subr.bf16.mxu0 0
      %425 = vmatpush1.bf16.msra.mxu0 0
      %426 = vmatprep.subr.bf16.mxu0 0
      %427 = vmatpush1.bf16.msra.mxu0 0
      %428 = vmatprep.subr.bf16.mxu0 0
      %429 = vmatpush1.bf16.msra.mxu0 0
      %430 = vmatprep.subr.bf16.mxu0 0
      %431 = vmatpush1.bf16.msra.mxu0 0
      %432 = vmatprep.mubr.bf16.mxu0 0
      %433 = vmatmul.mubr.bf16.gmra.mrb[0].mxu0 %v395
      %v434 = vpop.f32.mrb[0].mxu0
      %v435 = vadd.f32 %v354, %v434
      %v436 = vpop.f32.mrb[0].mxu0
      %v437 = vpop.f32.mrb[0].mxu0
      %v438 = vadd.f32 %v357, %v437
      %v439 = vpop.f32.mrb[0].mxu0
      %440 = vmatprep.mubr.bf16.mxu0 0
      %441 = vmatmul.mubr.bf16.gmra.mrb[0].mxu0 %v304
      %v442 = vpop.f32.mrb[0].mxu0
      %v443 = vadd.f32 %v362, %v442
      %v444 = vpop.f32.mrb[0].mxu0
      %v445 = vpop.f32.mrb[0].mxu0
      %v446 = vadd.f32 %v365, %v445
      %v447 = vpop.f32.mrb[0].mxu0
      %448 = vmatprep.mubr.bf16.mxu0 0
      %449 = vmatmul.mubr.bf16.gmra.mrb[0].mxu0 %v307
      %v450 = vpop.f32.mrb[0].mxu0
      %v451 = vadd.f32 %v370, %v450
      %v452 = vpop.f32.mrb[0].mxu0
      %v453 = vpop.f32.mrb[0].mxu0
      %v454 = vadd.f32 %v373, %v453
      %v455 = vpop.f32.mrb[0].mxu0
      %456 = vmatprep.mubr.bf16.mxu0 0
      %457 = vmatmul.mubr.bf16.gmra.mrb[0].mxu0 %v310
      %v458 = vpop.f32.mrb[0].mxu0
      %v459 = vadd.f32 %v378, %v458
      %v460 = vpop.f32.mrb[0].mxu0
      %v461 = vpop.f32.mrb[0].mxu0
      %v462 = vadd.f32 %v381, %v461
      %v463 = vpop.f32.mrb[0].mxu0
      %464 = vdwg.mxu0
      %v465 = vld [vmem:[%s251 + $0x10] sm:$0xf]
      %v466 = vld [vmem:[%s251 + $0x14] sm:$0xf]
      %v467 = vld [vmem:[%s251 + $0x18] sm:$0xf]
      %v468 = vld [vmem:[%s251 + $0x1c] sm:$0xf]
      %v469 = vld [vmem:[%s251 + $0x20] sm:$0xf]
      %v470 = vld [vmem:[%s251 + $0x24] sm:$0xf]
      %v471 = vld [vmem:[%s251 + $0x28] sm:$0xf]
      %v472 = vld [vmem:[%s251 + $0x2c] sm:$0xf]
      %s473 = scalar_lea.vmem %s1, 16
      %v474 = vld [vmem:[%s473] sm:$0xf]
      %v475 = vld [vmem:[%s473 + $0x4] sm:$0x3]
      %v484 = vunpack.c.l.b16 %v465
      %v485 = vunpack.c.l.b16 %v466
      %v486 = vunpack.c.l.b16 %v467
      %v487 = vunpack.c.l.b16 %v468
      %v488 = vunpack.c.l.b16 %v469
      %v489 = vunpack.c.l.b16 %v470
      %v490 = vunpack.c.l.b16 %v471
      %v491 = vunpack.c.l.b16 %v472
      %v492 = vpack.c.b16 %v485, %v484
      %v493 = vpack.c.b16 %v487, %v486
      %v494 = vpack.c.b16 %v489, %v488
      %v495 = vpack.c.b16 %v491, %v490
      %v498 = vunpack.c.l.b16 %v474
      %v499 = vunpack.c.l.b16 %v475
      %v500 = vpack.c.b16 %v499, %v498
      %v502 = vsel %vm302, %v492, 0
      %v505 = vsel %vm302, %v493, 0
      %v508 = vsel %vm302, %v494, 0
      %v511 = vsel %vm302, %v495, 0
      %v514 = vsel %vm315, %v500, 0
      %516 = vmatprep.subr.bf16.mxu0 0
      %517 = vmatpush1.bf16.msra.mxu0 %v514
      %518 = vmatprep.subr.bf16.mxu0 0
      %519 = vmatpush1.bf16.msra.mxu0 0
      %520 = vmatprep.subr.bf16.mxu0 0
      %521 = vmatpush1.bf16.msra.mxu0 0
      %522 = vmatprep.subr.bf16.mxu0 0
      %523 = vmatpush1.bf16.msra.mxu0 0
      %524 = vmatprep.subr.bf16.mxu0 0
      %525 = vmatpush1.bf16.msra.mxu0 0
      %526 = vmatprep.subr.bf16.mxu0 0
      %527 = vmatpush1.bf16.msra.mxu0 0
      %528 = vmatprep.subr.bf16.mxu0 0
      %529 = vmatpush1.bf16.msra.mxu0 0
      %530 = vmatprep.subr.bf16.mxu0 0
      %531 = vmatpush1.bf16.msra.mxu0 0
      %532 = vmatprep.subr.bf16.mxu0 0
      %533 = vmatpush1.bf16.msra.mxu0 0
      %534 = vmatprep.subr.bf16.mxu0 0
      %535 = vmatpush1.bf16.msra.mxu0 0
      %536 = vmatprep.subr.bf16.mxu0 0
      %537 = vmatpush1.bf16.msra.mxu0 0
      %538 = vmatprep.subr.bf16.mxu0 0
      %539 = vmatpush1.bf16.msra.mxu0 0
      %540 = vmatprep.subr.bf16.mxu0 0
      %541 = vmatpush1.bf16.msra.mxu0 0
      %542 = vmatprep.subr.bf16.mxu0 0
      %543 = vmatpush1.bf16.msra.mxu0 0
      %544 = vmatprep.subr.bf16.mxu0 0
      %545 = vmatpush1.bf16.msra.mxu0 0
      %546 = vmatprep.subr.bf16.mxu0 0
      %547 = vmatpush1.bf16.msra.mxu0 0
      %548 = vmatprep.mubr.bf16.mxu0 0
      %549 = vmatmul.mubr.bf16.gmra.mrb[0].mxu0 %v502
      %v550 = vpop.f32.mrb[0].mxu0
      %v551 = vadd.f32 0.0, %v550
      %v552 = vpop.f32.mrb[0].mxu0
      %v553 = vpop.f32.mrb[0].mxu0
      %v554 = vadd.f32 0.0, %v553
      %v555 = vpop.f32.mrb[0].mxu0
      %556 = vmatprep.mubr.bf16.mxu0 0
      %557 = vmatmul.mubr.bf16.gmra.mrb[0].mxu0 %v505
      %v558 = vpop.f32.mrb[0].mxu0
      %v559 = vadd.f32 0.0, %v558
      %v560 = vpop.f32.mrb[0].mxu0
      %v561 = vpop.f32.mrb[0].mxu0
      %v562 = vadd.f32 0.0, %v561
      %v563 = vpop.f32.mrb[0].mxu0
      %564 = vmatprep.mubr.bf16.mxu0 0
      %565 = vmatmul.mubr.bf16.gmra.mrb[0].mxu0 %v508
      %v566 = vpop.f32.mrb[0].mxu0
      %v567 = vadd.f32 0.0, %v566
      %v568 = vpop.f32.mrb[0].mxu0
      %v569 = vpop.f32.mrb[0].mxu0
      %v570 = vadd.f32 0.0, %v569
      %v571 = vpop.f32.mrb[0].mxu0
      %572 = vmatprep.mubr.bf16.mxu0 0
      %573 = vmatmul.mubr.bf16.gmra.mrb[0].mxu0 %v511
      %v574 = vpop.f32.mrb[0].mxu0
      %v575 = vadd.f32 0.0, %v574
      %v576 = vpop.f32.mrb[0].mxu0
      %v577 = vpop.f32.mrb[0].mxu0
      %v578 = vadd.f32 0.0, %v577
      %v579 = vpop.f32.mrb[0].mxu0
      %580 = vdwg.mxu0
      %v581 = vadd.f32 %v435, %v551
      %v582 = vadd.f32 %v438, %v554
      %v583 = vadd.f32 %v443, %v559
      %v584 = vadd.f32 %v446, %v562
      %v585 = vadd.f32 %v451, %v567
      %v586 = vadd.f32 %v454, %v570
      %v587 = vadd.f32 %v459, %v575
      %v588 = vadd.f32 %v462, %v578
      %v589 = vld [vmem:[%s2] sm:$0x1]
      %v591 = vlaneseq
      %v592 = vshrl.u32 %v591, 7
      %v593 = vsub.s32 0, %v592
      %v594 = vrot.slane %v589, %v593
      %v596 = vadd.f32 %v581, %v594
      %v597 = vadd.f32 %v582, %v594
      %v598 = vadd.f32 %v583, %v594
      %v599 = vadd.f32 %v584, %v594
      %v600 = vadd.f32 %v585, %v594
      %v601 = vadd.f32 %v586, %v594
      %v602 = vadd.f32 %v587, %v594
      %v603 = vadd.f32 %v588, %v594
      %v604 = vmax.f32 %v596, 0.0
      %v605 = vmax.f32 %v597, 0.0
      %v606 = vmax.f32 %v598, 0.0
      %v607 = vmax.f32 %v599, 0.0
      %v608 = vmax.f32 %v600, 0.0
      %v609 = vmax.f32 %v601, 0.0
      %v610 = vmax.f32 %v602, 0.0
      %v611 = vmax.f32 %v603, 0.0
      %v612 = vpack.c.bf16 %v605, %v604
      %v613 = vpack.c.bf16 %v607, %v606
      %v614 = vpack.c.bf16 %v609, %v608
      %v615 = vpack.c.bf16 %v611, %v610
      %v616 = vld [vmem:[%s3] sm:$0xf]
      %v617 = vld [vmem:[%s4] sm:$0x1]
      %v619 = vlaneseq
      %v620 = vshrl.u32 %v619, 7
      %v621 = vsub.s32 0, %v620
      %v622 = vrot.slane %v617, %v621
      %vm624 = vcmask 64512
      %v626 = vsel %vm624, %v612, 0
      %v629 = vsel %vm624, %v613, 0
      %v632 = vsel %vm624, %v614, 0
      %v635 = vsel %vm624, %v615, 0
      %vm637 = vcmask 1043456
      %v639 = vsel %vm637, %v616, 0
      %641 = vmatprep.subr.bf16.mxu0 0
      %642 = vmatpush1.bf16.msra.mxu0 %v639
      %643 = vmatprep.subr.bf16.mxu0 0
      %644 = vmatpush1.bf16.msra.mxu0 0
      %645 = vmatprep.subr.bf16.mxu0 0
      %646 = vmatpush1.bf16.msra.mxu0 0
      %647 = vmatprep.subr.bf16.mxu0 0
      %648 = vmatpush1.bf16.msra.mxu0 0
      %649 = vmatprep.subr.bf16.mxu0 0
      %650 = vmatpush1.bf16.msra.mxu0 0
      %651 = vmatprep.subr.bf16.mxu0 0
      %652 = vmatpush1.bf16.msra.mxu0 0
      %653 = vmatprep.subr.bf16.mxu0 0
      %654 = vmatpush1.bf16.msra.mxu0 0
      %655 = vmatprep.subr.bf16.mxu0 0
      %656 = vmatpush1.bf16.msra.mxu0 0
      %657 = vmatprep.subr.bf16.mxu0 0
      %658 = vmatpush1.bf16.msra.mxu0 0
      %659 = vmatprep.subr.bf16.mxu0 0
      %660 = vmatpush1.bf16.msra.mxu0 0
      %661 = vmatprep.subr.bf16.mxu0 0
      %662 = vmatpush1.bf16.msra.mxu0 0
      %663 = vmatprep.subr.bf16.mxu0 0
      %664 = vmatpush1.bf16.msra.mxu0 0
      %665 = vmatprep.subr.bf16.mxu0 0
      %666 = vmatpush1.bf16.msra.mxu0 0
      %667 = vmatprep.subr.bf16.mxu0 0
      %668 = vmatpush1.bf16.msra.mxu0 0
      %669 = vmatprep.subr.bf16.mxu0 0
      %670 = vmatpush1.bf16.msra.mxu0 0
      %671 = vmatprep.subr.bf16.mxu0 0
      %672 = vmatpush1.bf16.msra.mxu0 0
      %673 = vmatprep.mubr.bf16.mxu0 0
      %674 = vmatmul.mubr.bf16.gmra.mrb[0].mxu0 %v626
      %v675 = vpop.f32.mrb[0].mxu0
      %v676 = vadd.f32 %v622, %v675
      %v677 = vpop.f32.mrb[0].mxu0
      %v678 = vpop.f32.mrb[0].mxu0
      %v679 = vadd.f32 %v622, %v678
      %v680 = vpop.f32.mrb[0].mxu0
      %681 = vmatprep.mubr.bf16.mxu0 0
      %682 = vmatmul.mubr.bf16.gmra.mrb[0].mxu0 %v629
      %v683 = vpop.f32.mrb[0].mxu0
      %v684 = vadd.f32 %v622, %v683
      %v685 = vpop.f32.mrb[0].mxu0
      %v686 = vpop.f32.mrb[0].mxu0
      %v687 = vadd.f32 %v622, %v686
      %v688 = vpop.f32.mrb[0].mxu0
      %689 = vmatprep.mubr.bf16.mxu0 0
      %690 = vmatmul.mubr.bf16.gmra.mrb[0].mxu0 %v632
      %v691 = vpop.f32.mrb[0].mxu0
      %v692 = vadd.f32 %v622, %v691
      %v693 = vpop.f32.mrb[0].mxu0
      %v694 = vpop.f32.mrb[0].mxu0
      %v695 = vadd.f32 %v622, %v694
      %v696 = vpop.f32.mrb[0].mxu0
      %697 = vmatprep.mubr.bf16.mxu0 0
      %698 = vmatmul.mubr.bf16.gmra.mrb[0].mxu0 %v635
      %v699 = vpop.f32.mrb[0].mxu0
      %v700 = vadd.f32 %v622, %v699
      %v701 = vpop.f32.mrb[0].mxu0
      %v702 = vpop.f32.mrb[0].mxu0
      %v703 = vadd.f32 %v622, %v702
      %v704 = vpop.f32.mrb[0].mxu0
      %705 = vdwg.mxu0
      %706 = vst [vmem:[%s260] sm:$0xff] %v676
      %707 = vst [vmem:[%s260 + $0x8] sm:$0xff] %v679
      %708 = vst [vmem:[%s260 + $0x10] sm:$0xff] %v684
      %709 = vst [vmem:[%s260 + $0x18] sm:$0xff] %v687
      %710 = vst [vmem:[%s260 + $0x20] sm:$0xff] %v692
      %711 = vst [vmem:[%s260 + $0x28] sm:$0xff] %v695
      %712 = vst [vmem:[%s260 + $0x30] sm:$0xff] %v700
      %713 = vst [vmem:[%s260 + $0x38] sm:$0xff] %v703
      %p714 = scmp.lt.s32.totalorder %s20, 1
      %s715 = scalar_select %p714, %s20, 1
      %p716 = scmp.lt.s32.totalorder %s21, 3
      %s717 = scalar_select %p716, %s21, 3
      %s718 = smul.addr %s717, 8
      %s719 = smul.addr %s715, 32
      %s720 = sadd.s32 %s718, %s719
      %s721 = smul.addr %s720, 8
      %s722 = scalar_lea.vmem %s5, %s721
      // Predicated region
      $region41: #{_rpn_device.1} parent=39 // pred_check
        %p723 = pneg %p160
      $region42: #{_rpn_device.1} parent=39 // pred_check_branch
        %725 = sbr.rel (%p723) target = $region44
      $region43: #{_rpn_device.1} parent=39 // pred_region
        _
      $region44: #{_rpn_device.1} parent=39 // pred_fallthru
        _
    $region40: #{_rpn_device.1} parent=5 // pred_fallthru
      _
    %p726 = scmp.le.s32.totalorder 2, %s11
    // Predicated region
    $region45: #{_rpn_device.1} parent=5 // pred_check
      %p727 = pneg %p726
    $region46: #{_rpn_device.1} parent=5 // pred_check_branch
      %729 = sbr.rel (%p727) target = $region48
    $region47: #{_rpn_device.1} parent=5 // pred_region
      %s730 = ssub.s32 %s11, 2
      // Predicated region
      $region49: #{_rpn_device.1} parent=47 // pred_check
        %p731 = pneg %p166
      $region50: #{_rpn_device.1} parent=47 // pred_check_branch
        %733 = sbr.rel (%p731) target = $region52
      $region51: #{_rpn_device.1} parent=47 // pred_region
        %p734 = scmp.lt.s32.totalorder %s22, 1
        %s735 = scalar_select %p734, %s22, 1
        %p736 = scmp.lt.s32.totalorder %s23, 3
        %s737 = scalar_select %p736, %s23, 3
        %s738 = smul.addr %s737, 8
        %s739 = smul.addr %s735, 32
        %s740 = sadd.s32 %s738, %s739
        %s741 = smul.addr %s740, 8
        %s742 = scalar_lea.vmem %s5, %s741
      $region52: #{_rpn_device.1} parent=47 // pred_fallthru
        _
    $region48: #{_rpn_device.1} parent=5 // pred_fallthru
      _
  $region6: #{_rpn_device.1} parent=0 // loop_footer
    %s15 = sadd.s32 1, %s11
  $region7: #{_rpn_device.1} parent=0 // loop_footer_branch
    %10 = sbr.rel target = $region3
  $region8: #{_rpn_device.1} parent=0 // loop_exit
    _

</llo_original>
